<compile_context>
chip_gen: v7x
topology: tpu7x:2x2x1
jax: 0.10.0
libtpu: 0.0.40
codegen_flags: <defaults>
</compile_context>

<pallas_src>
import functools

import jax
import jax.numpy as jnp
from jax.experimental import pallas as pl
from jax.experimental.pallas import tpu as pltpu

F32 = jnp.float32
BF16 = jnp.bfloat16

NUM_CLASSES = 35     # module-fixed
HIDDEN = 128         # module-fixed GRU hidden size (per direction)
FC_DIM = 256         # module-fixed fc_layer
NUM_CAPS = 5
DIM_CAPS = 5
ROUTINGS = 4
BN_EPS = 1e-5
CAPS_EPS = 1e-7      # Caps_Layer.T_epsilon
ATT_EPS = 1e-10
OUT_PAD = 128        # lane-dense padded logits width (sliced to 35 outside)


def _vmem():
    return pl.BlockSpec(memory_space=pltpu.MemorySpace.VMEM)


# --------------------------- generic row-tiled matmul + bias ---------------------------

def _matmul_bias_kernel(x_ref, w_ref, b_ref, o_ref):
    o_ref[...] = (
        jnp.dot(x_ref[...].astype(BF16), w_ref[...],
                preferred_element_type=jnp.float32)
        + b_ref[...]
    ).astype(o_ref.dtype)


def matmul_bias(x, w, b, tm=512):
    """x:(M,K) f32 @ w:(K,N) bf16 + b:(1,N) f32 -> (M,N) f32, tiled over rows."""
    M, K = x.shape
    N = w.shape[1]
    tm = min(tm, M)
    return pl.pallas_call(
        _matmul_bias_kernel,
        grid=(pl.cdiv(M, tm),),
        out_shape=jax.ShapeDtypeStruct((M, N), F32),
        in_specs=[
            pl.BlockSpec((tm, K), lambda i: (i, 0)),
            pl.BlockSpec((K, N), lambda i: (0, 0)),
            pl.BlockSpec((1, N), lambda i: (0, 0)),
        ],
        out_specs=pl.BlockSpec((tm, N), lambda i: (i, 0)),
        compiler_params=pltpu.CompilerParams(dimension_semantics=("parallel",)),
    )(x, w, b)


# --------------------------- fused bidirectional GRU layer ---------------------------

def _bigru_step_kernel(gxf_ref, gxb_ref, whhf_ref, whhb_ref, bhnf_ref, bhnb_ref,
                       outf_ref, outb_ref, hf_ref, hb_ref, *, hidden):
    """One time step for BOTH directions.  gx*_ref:(1,N,3H) precomputed input gates
    (bih + r/z hidden-bias already folded in), whh*_ref:(H,3H) bf16 (pre-transposed),
    bhn*_ref:(1,H), out*_ref:(1,N,H), h*_ref scratch:(N,H) carried hidden state."""
    H = hidden

    @pl.when(pl.program_id(0) == 0)
    def _():
        hf_ref[...] = jnp.zeros_like(hf_ref)
        hb_ref[...] = jnp.zeros_like(hb_ref)

    def one_dir(gx, h, whht_ref, bhn_ref):
        gh = jnp.dot(h.astype(BF16), whht_ref[...],
                     preferred_element_type=jnp.float32)             # (N, 3H)
        r = jax.nn.sigmoid(gx[:, :H] + gh[:, :H])
        z = jax.nn.sigmoid(gx[:, H:2 * H] + gh[:, H:2 * H])
        n = jnp.tanh(gx[:, 2 * H:] + r * (gh[:, 2 * H:] + bhn_ref[...]))
        return (1.0 - z) * n + z * h                                 # PyTorch GRU update

    hf = one_dir(gxf_ref[0], hf_ref[...], whhf_ref, bhnf_ref)
    hf_ref[...] = hf
    outf_ref[0] = hf
    hb = one_dir(gxb_ref[0], hb_ref[...], whhb_ref, bhnb_ref)
    hb_ref[...] = hb
    outb_ref[0] = hb


def bigru_layer(x_tm, lp, hidden=HIDDEN):
    """One bidirectional GRU layer, time-major.  x_tm:(L,N,Din) -> (L,N,2*hidden)."""
    L, N, Din = x_tm.shape
    H = hidden
    # fwd+bwd input-gate projection fused into one matmul; x read once, no transposes.
    gates = matmul_bias(x_tm.reshape(L * N, Din), lp["wih_cat"], lp["bias_cat"])
    gates = gates.reshape(L, N, 6 * H)

    out_f, out_b = pl.pallas_call(
        functools.partial(_bigru_step_kernel, hidden=H),
        grid=(L,),
        out_shape=(jax.ShapeDtypeStruct((L, N, H), F32),
                   jax.ShapeDtypeStruct((L, N, H), F32)),
        in_specs=[
            pl.BlockSpec((1, N, 3 * H), lambda t: (t, 0, 0)),          # fwd gates, time t
            pl.BlockSpec((1, N, 3 * H), lambda t: (L - 1 - t, 0, 1)),  # bwd gates, time L-1-t
            pl.BlockSpec((H, 3 * H), lambda t: (0, 0)),
            pl.BlockSpec((H, 3 * H), lambda t: (0, 0)),
            pl.BlockSpec((1, H), lambda t: (0, 0)),
            pl.BlockSpec((1, H), lambda t: (0, 0)),
        ],
        out_specs=(
            pl.BlockSpec((1, N, H), lambda t: (t, 0, 0)),
            pl.BlockSpec((1, N, H), lambda t: (L - 1 - t, 0, 0)),
        ),
        scratch_shapes=[pltpu.VMEM((N, H), F32), pltpu.VMEM((N, H), F32)],
        compiler_params=pltpu.CompilerParams(dimension_semantics=("arbitrary",)),
    )(gates, gates, lp["whht_f"], lp["whht_b"], lp["bhn_f"], lp["bhn_b"])
    return jnp.concatenate([out_f, out_b], axis=-1)


# --------------------------- attention (whole batch, fused pooling) ---------------------------

def _attention_core(x, w, b):
    s = jnp.sum(x * w, axis=-1, keepdims=True)            # (L, N, 1) scores
    a = jnp.exp(jnp.tanh(s + b))                          # tanh then exp (as in torch module)
    a = a / jnp.sum(a, axis=0, keepdims=True) + ATT_EPS   # divide then +1e-10 (as in torch)
    return jnp.sum(a * x, axis=0)                         # (N, F)


def _attention_kernel(x_ref, w_ref, b_ref, att_ref):
    att_ref[...] = _attention_core(x_ref[...], w_ref[...], b_ref[...])


def _attention_pool_kernel(x_ref, w_ref, b_ref, att_ref, avg_ref, max_ref):
    x = x_ref[...]
    att_ref[...] = _attention_core(x, w_ref[...], b_ref[...])
    avg_ref[...] = jnp.mean(x, axis=0)                    # avg_pool over time
    max_ref[...] = jnp.max(x, axis=0)                     # max_pool over time


def attention(x_tm, p):
    L, N, Fd = x_tm.shape
    return pl.pallas_call(
        _attention_kernel,
        out_shape=jax.ShapeDtypeStruct((N, Fd), F32),
        in_specs=[_vmem()] * 3,
        out_specs=_vmem(),
    )(x_tm, p["w"], p["b"])


def attention_with_pools(x_tm, p):
    L, N, Fd = x_tm.shape
    sds = jax.ShapeDtypeStruct((N, Fd), F32)
    return pl.pallas_call(
        _attention_pool_kernel,
        out_shape=(sds, sds, sds),
        in_specs=[_vmem()] * 3,
        out_specs=(_vmem(),) * 3,
    )(x_tm, p["w"], p["b"])


# --------------------------- capsule dynamic routing ---------------------------

def _caps_routing_kernel(u_ref, o_ref, *, routings):
    """u_ref:(B, num_caps, L, dim_caps) -> o_ref:(B, num_caps, 1, dim_caps)."""
    u = u_ref[...]
    B, C, L, D = u.shape
    b = jnp.zeros((B, C, L, 1), jnp.float32)               # routing logits
    out = jnp.zeros((B, C, 1, D), jnp.float32)
    for i in range(routings):
        # softmax over the output-capsule axis (torch: softmax(dim=2) of (B, L, C))
        bm = b - jnp.max(b, axis=1, keepdims=True)
        e = jnp.exp(bm)
        c = e / jnp.sum(e, axis=1, keepdims=True)           # (B, C, L, 1)
        out = jnp.sum(c * u, axis=2, keepdims=True)          # (B, C, 1, D)
        out = out / jnp.sqrt(jnp.sum(out * out, axis=-1, keepdims=True) + CAPS_EPS)  # squash
        if i < routings - 1:
            b = jnp.sum(out * u, axis=3, keepdims=True)      # (B, C, L, 1)
    o_ref[...] = out


def caps_routing(u4):
    B = u4.shape[0]
    return pl.pallas_call(
        functools.partial(_caps_routing_kernel, routings=ROUTINGS),
        out_shape=jax.ShapeDtypeStruct((B, NUM_CAPS, 1, DIM_CAPS), F32),
        in_specs=[_vmem()],
        out_specs=_vmem(),
    )(u4)


# --------------------------- fused classifier head ---------------------------

def _head_kernel(feats_ref, caps_ref, wc_ref, bc_ref, w1f_ref, w1c_ref, b1_ref,
                 bns_ref, bnb_ref, w2_ref, b2_ref, o_ref):
    # content3 = ReLU(lincaps(caps.view(B, 25)))
    c3 = jnp.maximum(
        jnp.sum(caps_ref[...] * wc_ref[...], axis=-1, keepdims=True) + bc_ref[...], 0.0)
    # Linear(1025 -> 256): 1024 feature columns + the single content3 column
    h = jnp.dot(feats_ref[...].astype(BF16), w1f_ref[...],
                preferred_element_type=jnp.float32)
    h = h + c3 * w1c_ref[...] + b1_ref[...]
    h = jnp.maximum(h, 0.0)                                 # ReLU (before BN, as in the module)
    h = h * bns_ref[...] + bnb_ref[...]                     # BatchNorm1d (eval, folded affine)
    o_ref[...] = (jnp.dot(h.astype(BF16), w2_ref[...],
                          preferred_element_type=jnp.float32) + b2_ref[...]
                  ).astype(o_ref.dtype)                     # lane-padded (B, 128) logits


def head(feats, caps_flat, p):
    B = feats.shape[0]
    return pl.pallas_call(
        _head_kernel,
        out_shape=jax.ShapeDtypeStruct((B, OUT_PAD), F32),
        in_specs=[_vmem()] * 11,
        out_specs=_vmem(),
    )(feats, caps_flat, p["wc"], p["bc"], p["w1f"], p["w1c"], p["b1"],
      p["bn_scale"], p["bn_shift"], p["w2"], p["b2"])


# --------------------------- CapsuleNet forward ---------------------------

def capsulenet_forward(params, ids):
    """ids: (B, MAX_LEN) int32 token ids -> logits (B, 35)."""
    B, L = ids.shape
    # TODO(synk): nn.Dropout2d / nn.Dropout layers are identity here (inference / eval semantics);
    # the embedding-table gather below is XLA glue (no clean single-kernel Pallas equivalent).
    ids_tm = ids.T                                                          # (L, B), time-major
    x_tm = jnp.take(params["embedding"], ids_tm.reshape(-1), axis=0).reshape(L, B, -1)

    h = x_tm
    for lp in params["lstm_layers"]:                                        # nn.GRU(E,128,2,bidir)
        h = bigru_layer(h, lp)
    h_lstm_tm = h                                                           # (L, B, 256)
    for lp in params["gru_layers"]:                                         # nn.GRU(256,128,2,bidir)
        h = bigru_layer(h, lp)
    h_gru_tm = h                                                            # (L, B, 256)

    # Caps_Layer: shared-weight projection + dynamic routing
    uhat = matmul_bias(h_gru_tm.reshape(L * B, 2 * HIDDEN),
                       params["caps_w"], params["caps_b0"])                 # (L*B, 25)
    u4 = jnp.transpose(uhat.reshape(L, B, NUM_CAPS, DIM_CAPS), (1, 2, 0, 3))  # (B,5,L,5)
    caps_flat = caps_routing(u4).reshape(B, NUM_CAPS * DIM_CAPS)            # (B, 25)

    lstm_att = attention(h_lstm_tm, params["att_lstm"])                     # (B, 256)
    gru_att, avg_pool, max_pool = attention_with_pools(h_gru_tm, params["att_gru"])

    feats = jnp.concatenate([lstm_att, gru_att, avg_pool, max_pool], axis=-1)  # (B, 1024)
    logits = head(feats, caps_flat, params["head"])                         # (B, 128) padded
    return logits[:, :NUM_CLASSES]


# --------------------------- deterministic parameters ---------------------------

def init_params(key, vocab_size, embedding_dim, max_len):
    keys = iter(jax.random.split(key, 64))

    def norm(shape, scale=1.0):
        return (scale * jax.random.normal(next(keys), shape)).astype(F32)

    def gru_layer(in_dim, H=HIDDEN):
        s = 1.0 / float(H) ** 0.5

        def one_dir():
            return {"wih": norm((3 * H, in_dim), s), "whh": norm((3 * H, H), s),
                    "bih": norm((3 * H,), s), "bhh": norm((3 * H,), s)}

        f, b = one_dir(), one_dir()

        def folded_bias(d):   # bih + [bhh_r, bhh_z, 0]; bhh_n stays inside r*(...)
            return d["bih"] + jnp.concatenate([d["bhh"][:2 * H], jnp.zeros((H,), F32)])

        return {
            "wih_cat": jnp.concatenate([f["wih"].T, b["wih"].T], axis=1).astype(BF16),   # (Din,6H)
            "bias_cat": jnp.concatenate([folded_bias(f), folded_bias(b)]).reshape(1, 6 * H),
            "whht_f": f["whh"].T.astype(BF16), "whht_b": b["whh"].T.astype(BF16),        # (H,3H)
            "bhn_f": f["bhh"][2 * H:].reshape(1, H), "bhn_b": b["bhh"][2 * H:].reshape(1, H),
        }

    p = {}
    # tdbn = BatchNorm2d(1) eval mode with default stats (gamma=1, beta=0, rm=0, rv=1)
    # folded into the embedding table.  With a trained checkpoint recompute this fold.
    bn2d_scale = 1.0 / float(1.0 + BN_EPS) ** 0.5
    p["embedding"] = norm((vocab_size, embedding_dim)) * bn2d_scale

    p["lstm_layers"] = [gru_layer(embedding_dim), gru_layer(2 * HIDDEN)]
    p["gru_layers"] = [gru_layer(2 * HIDDEN), gru_layer(2 * HIDDEN)]

    feat = 2 * HIDDEN

    def att_params():
        return {"w": norm((1, 1, feat), 1.0 / float(feat) ** 0.5),   # Attention.weight^T
                "b": jnp.zeros((max_len, 1, 1), F32)}                # Attention.b (zeros init)

    p["att_lstm"] = att_params()
    p["att_gru"] = att_params()

    # Caps_Layer shared W: (input_dim_capsule, num_capsule*dim_capsule)
    p["caps_w"] = norm((feat, NUM_CAPS * DIM_CAPS), 1.0 / float(feat) ** 0.5).astype(BF16)
    p["caps_b0"] = jnp.zeros((1, NUM_CAPS * DIM_CAPS), F32)

    # classifier head: lincaps(25->1), Linear(1025->256), BatchNorm1d(256), Linear(256->35)
    sc = 1.0 / float(NUM_CAPS * DIM_CAPS) ** 0.5
    wc = norm((1, NUM_CAPS * DIM_CAPS), sc)
    bc = norm((1, 1), sc)
    in1 = 8 * HIDDEN + 1                                             # 1025
    w1 = norm((FC_DIM, in1), 1.0 / float(in1) ** 0.5)                # torch Linear weight (256,1025)
    b1 = norm((FC_DIM,), 1.0 / float(in1) ** 0.5)
    # conc column order: [lstm_att(256) | gru_att(256) | content3(1) | avg(256) | max(256)]
    w1_feats = jnp.concatenate([w1[:, :2 * feat], w1[:, 2 * feat + 1:]], axis=1).T   # (1024,256)
    w1_caps = w1[:, 2 * feat:2 * feat + 1].T                                         # (1,256)
    w2 = norm((NUM_CLASSES, FC_DIM), 1.0 / float(FC_DIM) ** 0.5)
    b2 = norm((NUM_CLASSES,), 1.0 / float(FC_DIM) ** 0.5)
    w2p = jnp.zeros((FC_DIM, OUT_PAD), F32).at[:, :NUM_CLASSES].set(w2.T)
    b2p = jnp.zeros((1, OUT_PAD), F32).at[0, :NUM_CLASSES].set(b2)
    p["head"] = {
        "wc": wc, "bc": bc,
        "w1f": w1_feats.astype(BF16), "w1c": w1_caps, "b1": b1.reshape(1, -1),
        # BatchNorm1d(256), eval mode with default params -> pure affine
        "bn_scale": jnp.full((1, FC_DIM), 1.0 / (1.0 + BN_EPS) ** 0.5, F32),
        "bn_shift": jnp.zeros((1, FC_DIM), F32),
        "w2": w2p.astype(BF16), "b2": b2p,
    }
    return p


# --------------------------- demo ---------------------------

if __name__ == "__main__":
    B = 2
    MAX_LEN = 8      # args.MAX_LEN (sequence length == attention step_dim)
    VOCAB = 100
    EMB_DIM = 64

    key = jax.random.PRNGKey(0)
    pkey, dkey = jax.random.split(key)
    params = init_params(pkey, VOCAB, EMB_DIM, MAX_LEN)
    ids = jax.random.randint(dkey, (B, MAX_LEN), 0, VOCAB, dtype=jnp.int32)

    fwd = jax.jit(capsulenet_forward)
    out = jax.block_until_ready(fwd(params, ids))

    assert out.shape == (B, NUM_CLASSES), out.shape
    assert bool(jnp.all(jnp.isfinite(out)))
    print("KERNEL_OK")
</pallas_src>

<mosaic_0001>
module attributes {stable_mosaic.version = 11 : i64} {
  func.func @_matmul_bias_kernel(%arg0: i32, %arg1: memref<16x64xf32, #tpu.memory_space<vmem>>, %arg2: memref<64x768xbf16, #tpu.memory_space<vmem>>, %arg3: memref<1x768xf32, #tpu.memory_space<vmem>>, %arg4: memref<16x768xf32, #tpu.memory_space<vmem>>) attributes {dimension_semantics = [#tpu.dimension_semantics<parallel>], iteration_bounds = array<i64: 1>, scalar_prefetch = 0 : i64, scratch_operands = 0 : i64, tpu.core_type = #tpu.core_type<tc>, window_params = [{transform_indices = @transform_0, window_bounds = array<i64: 16, 64>}, {pipeline_mode = #tpu.pipeline_mode<synchronous>, transform_indices = @transform_1, window_bounds = array<i64: 64, 768>}, {pipeline_mode = #tpu.pipeline_mode<synchronous>, transform_indices = @transform_2, window_bounds = array<i64: 1, 768>}, {transform_indices = @transform_3, window_bounds = array<i64: 16, 768>}]} {
    %c0 = arith.constant 0 : index
    %c0_0 = arith.constant 0 : index
    %0 = vector.load %arg1[%c0, %c0_0] : memref<16x64xf32, #tpu.memory_space<vmem>>, vector<16x64xf32>
    %1 = arith.truncf %0 : vector<16x64xf32> to vector<16x64xbf16>
    %c0_1 = arith.constant 0 : index
    %c0_2 = arith.constant 0 : index
    %2 = vector.load %arg2[%c0_1, %c0_2] : memref<64x768xbf16, #tpu.memory_space<vmem>>, vector<64x768xbf16>
    %cst = arith.constant dense<0.000000e+00> : vector<16x768xf32>
    %3 = tpu.matmul %1, %2, %cst {dimension_numbers = #tpu.dot_dimension_numbers<[1], [0], [0], [1], [0, 0, 1, 1], [], []>} : vector<16x64xbf16>, vector<64x768xbf16>, vector<16x768xf32> -> vector<16x768xf32>
    %c0_3 = arith.constant 0 : index
    %c0_4 = arith.constant 0 : index
    %4 = vector.load %arg3[%c0_3, %c0_4] : memref<1x768xf32, #tpu.memory_space<vmem>>, vector<1x768xf32>
    %5 = vector.broadcast %4 : vector<1x768xf32> to vector<16x768xf32>
    %6 = arith.addf %3, %5 : vector<16x768xf32>
    %c0_5 = arith.constant 0 : index
    %c0_6 = arith.constant 0 : index
    %7 = vector.load %arg4[%c0_5, %c0_6] : memref<16x768xf32, #tpu.memory_space<vmem>>, vector<16x768xf32>
    tpu.vector_store %arg4[%c0_5, %c0_6], %6 {strides = array<i32>} : memref<16x768xf32, #tpu.memory_space<vmem>>, vector<16x768xf32>,
    return
  }
  func.func @transform_0(%arg0: i32) -> (i32, i32) {
    %c0_i32 = arith.constant 0 : i32
    %c0_i32_0 = arith.constant 0 : i32
    return %arg0, %c0_i32 : i32, i32
  }
  func.func @transform_1(%arg0: i32) -> (i32, i32) {
    %c0_i32 = arith.constant 0 : i32
    %c0_i32_0 = arith.constant 0 : i32
    %c0_i32_1 = arith.constant 0 : i32
    return %c0_i32, %c0_i32_0 : i32, i32
  }
  func.func @transform_2(%arg0: i32) -> (i32, i32) {
    %c0_i32 = arith.constant 0 : i32
    %c0_i32_0 = arith.constant 0 : i32
    %c0_i32_1 = arith.constant 0 : i32
    return %c0_i32, %c0_i32_0 : i32, i32
  }
  func.func @transform_3(%arg0: i32) -> (i32, i32) {
    %c0_i32 = arith.constant 0 : i32
    %c0_i32_0 = arith.constant 0 : i32
    return %arg0, %c0_i32 : i32, i32
  }
}

module attributes {stable_mosaic.version = 11 : i64} {
  func.func @_bigru_step_kernel(%arg0: i32, %arg1: memref<1x2x384xf32, #tpu.memory_space<vmem>>, %arg2: memref<1x2x384xf32, #tpu.memory_space<vmem>>, %arg3: memref<128x384xbf16, #tpu.memory_space<vmem>>, %arg4: memref<128x384xbf16, #tpu.memory_space<vmem>>, %arg5: memref<1x128xf32, #tpu.memory_space<vmem>>, %arg6: memref<1x128xf32, #tpu.memory_space<vmem>>, %arg7: memref<1x2x128xf32, #tpu.memory_space<vmem>>, %arg8: memref<1x2x128xf32, #tpu.memory_space<vmem>>, %arg9: memref<2x128xf32, #tpu.memory_space<vmem>>, %arg10: memref<2x128xf32, #tpu.memory_space<vmem>>) attributes {dimension_semantics = [#tpu.dimension_semantics<arbitrary>], iteration_bounds = array<i64: 8>, scalar_prefetch = 0 : i64, scratch_operands = 2 : i64, tpu.core_type = #tpu.core_type<tc>, window_params = [{transform_indices = @transform_0, window_bounds = array<i64: 1, 2, 384>}, {transform_indices = @transform_1, window_bounds = array<i64: 1, 2, 384>}, {pipeline_mode = #tpu.pipeline_mode<synchronous>, transform_indices = @transform_2, window_bounds = array<i64: 128, 384>}, {pipeline_mode = #tpu.pipeline_mode<synchronous>, transform_indices = @transform_3, window_bounds = array<i64: 128, 384>}, {pipeline_mode = #tpu.pipeline_mode<synchronous>, transform_indices = @transform_4, window_bounds = array<i64: 1, 128>}, {pipeline_mode = #tpu.pipeline_mode<synchronous>, transform_indices = @transform_5, window_bounds = array<i64: 1, 128>}, {transform_indices = @transform_6, window_bounds = array<i64: 1, 2, 128>}, {transform_indices = @transform_7, window_bounds = array<i64: 1, 2, 128>}]} {
    %c0_i32 = arith.constant 0 : i32
    %0 = arith.cmpi eq, %arg0, %c0_i32 : i32
    %1 = arith.extui %0 : i1 to i32
    %c0_i32_0 = arith.constant 0 : i32
    %2 = arith.cmpi ne, %1, %c0_i32_0 : i32
    scf.if %2 {
      %cst_35 = arith.constant 0.000000e+00 : f32
      %81 = vector.broadcast %cst_35 : f32 to vector<2x128xf32>
      %c0_36 = arith.constant 0 : index
      %c0_37 = arith.constant 0 : index
      %82 = vector.load %arg9[%c0_36, %c0_37] : memref<2x128xf32, #tpu.memory_space<vmem>>, vector<2x128xf32>
      tpu.vector_store %arg9[%c0_36, %c0_37], %81 {strides = array<i32>} : memref<2x128xf32, #tpu.memory_space<vmem>>, vector<2x128xf32>,
      %cst_38 = arith.constant 0.000000e+00 : f32
      %83 = vector.broadcast %cst_38 : f32 to vector<2x128xf32>
      %c0_39 = arith.constant 0 : index
      %c0_40 = arith.constant 0 : index
      %84 = vector.load %arg10[%c0_39, %c0_40] : memref<2x128xf32, #tpu.memory_space<vmem>>, vector<2x128xf32>
      tpu.vector_store %arg10[%c0_39, %c0_40], %83 {strides = array<i32>} : memref<2x128xf32, #tpu.memory_space<vmem>>, vector<2x128xf32>,
    } else {
    }
    %c0 = arith.constant 0 : index
    %c0_1 = arith.constant 0 : index
    %c0_2 = arith.constant 0 : index
    %3 = vector.load %arg1[%c0, %c0_1, %c0_2] : memref<1x2x384xf32, #tpu.memory_space<vmem>>, vector<1x2x384xf32>
    %4 = vector.shape_cast %3 : vector<1x2x384xf32> to vector<2x384xf32>
    %c0_3 = arith.constant 0 : index
    %c0_4 = arith.constant 0 : index
    %5 = vector.load %arg9[%c0_3, %c0_4] : memref<2x128xf32, #tpu.memory_space<vmem>>, vector<2x128xf32>
    %6 = arith.truncf %5 : vector<2x128xf32> to vector<2x128xbf16>
    %c0_5 = arith.constant 0 : index
    %c0_6 = arith.constant 0 : index
    %7 = vector.load %arg3[%c0_5, %c0_6] : memref<128x384xbf16, #tpu.memory_space<vmem>>, vector<128x384xbf16>
    %cst = arith.constant dense<0.000000e+00> : vector<2x384xf32>
    %8 = tpu.matmul %6, %7, %cst {dimension_numbers = #tpu.dot_dimension_numbers<[1], [0], [0], [1], [0, 0, 1, 1], [], []>} : vector<2x128xbf16>, vector<128x384xbf16>, vector<2x384xf32> -> vector<2x384xf32>
    %9 = vector.extract_strided_slice %4 {offsets = [0, 0], sizes = [2, 128], strides = [1, 1]} : vector<2x384xf32> to vector<2x128xf32>
    %10 = vector.extract_strided_slice %8 {offsets = [0, 0], sizes = [2, 128], strides = [1, 1]} : vector<2x384xf32> to vector<2x128xf32>
    %11 = arith.addf %9, %10 : vector<2x128xf32>
    %12 = arith.negf %11 : vector<2x128xf32>
    %13 = math.exp %12 : vector<2x128xf32>
    %cst_7 = arith.constant 1.000000e+00 : f32
    %14 = vector.broadcast %cst_7 : f32 to vector<2x128xf32>
    %15 = arith.addf %14, %13 : vector<2x128xf32>
    %16 = arith.divf %14, %15 : vector<2x128xf32>
    %17 = vector.extract_strided_slice %4 {offsets = [0, 128], sizes = [2, 128], strides = [1, 1]} : vector<2x384xf32> to vector<2x128xf32>
    %18 = vector.extract_strided_slice %8 {offsets = [0, 128], sizes = [2, 128], strides = [1, 1]} : vector<2x384xf32> to vector<2x128xf32>
    %19 = arith.addf %17, %18 : vector<2x128xf32>
    %20 = arith.negf %19 : vector<2x128xf32>
    %21 = math.exp %20 : vector<2x128xf32>
    %cst_8 = arith.constant 1.000000e+00 : f32
    %22 = vector.broadcast %cst_8 : f32 to vector<2x128xf32>
    %23 = arith.addf %22, %21 : vector<2x128xf32>
    %24 = arith.divf %22, %23 : vector<2x128xf32>
    %25 = vector.extract_strided_slice %4 {offsets = [0, 256], sizes = [2, 128], strides = [1, 1]} : vector<2x384xf32> to vector<2x128xf32>
    %26 = vector.extract_strided_slice %8 {offsets = [0, 256], sizes = [2, 128], strides = [1, 1]} : vector<2x384xf32> to vector<2x128xf32>
    %c0_9 = arith.constant 0 : index
    %c0_10 = arith.constant 0 : index
    %27 = vector.load %arg5[%c0_9, %c0_10] : memref<1x128xf32, #tpu.memory_space<vmem>>, vector<1x128xf32>
    %28 = vector.broadcast %27 : vector<1x128xf32> to vector<2x128xf32>
    %29 = arith.addf %26, %28 : vector<2x128xf32>
    %30 = arith.mulf %16, %29 : vector<2x128xf32>
    %31 = arith.addf %25, %30 : vector<2x128xf32>
    %32 = math.tanh %31 : vector<2x128xf32>
    %cst_11 = arith.constant 1.000000e+00 : f32
    %33 = vector.broadcast %cst_11 : f32 to vector<2x128xf32>
    %34 = arith.subf %33, %24 : vector<2x128xf32>
    %35 = arith.mulf %34, %32 : vector<2x128xf32>
    %36 = arith.mulf %24, %5 : vector<2x128xf32>
    %37 = arith.addf %35, %36 : vector<2x128xf32>
    %c0_12 = arith.constant 0 : index
    %c0_13 = arith.constant 0 : index
    %38 = vector.load %arg9[%c0_12, %c0_13] : memref<2x128xf32, #tpu.memory_space<vmem>>, vector<2x128xf32>
    tpu.vector_store %arg9[%c0_12, %c0_13], %37 {strides = array<i32>} : memref<2x128xf32, #tpu.memory_space<vmem>>, vector<2x128xf32>,
    %c0_14 = arith.constant 0 : index
    %c0_15 = arith.constant 0 : index
    %c0_16 = arith.constant 0 : index
    %39 = vector.load %arg7[%c0_14, %c0_15, %c0_16] : memref<1x2x128xf32, #tpu.memory_space<vmem>>, vector<1x2x128xf32>
    %40 = vector.shape_cast %39 : vector<1x2x128xf32> to vector<2x128xf32>
    %41 = vector.shape_cast %37 : vector<2x128xf32> to vector<1x2x128xf32>
    tpu.vector_store %arg7[%c0_14, %c0_15, %c0_16], %41 {strides = array<i32>} : memref<1x2x128xf32, #tpu.memory_space<vmem>>, vector<1x2x128xf32>,
    %c0_17 = arith.constant 0 : index
    %c0_18 = arith.constant 0 : index
    %c0_19 = arith.constant 0 : index
    %42 = vector.load %arg2[%c0_17, %c0_18, %c0_19] : memref<1x2x384xf32, #tpu.memory_space<vmem>>, vector<1x2x384xf32>
    %43 = vector.shape_cast %42 : vector<1x2x384xf32> to vector<2x384xf32>
    %c0_20 = arith.constant 0 : index
    %c0_21 = arith.constant 0 : index
    %44 = vector.load %arg10[%c0_20, %c0_21] : memref<2x128xf32, #tpu.memory_space<vmem>>, vector<2x128xf32>
    %45 = arith.truncf %44 : vector<2x128xf32> to vector<2x128xbf16>
    %c0_22 = arith.constant 0 : index
    %c0_23 = arith.constant 0 : index
    %46 = vector.load %arg4[%c0_22, %c0_23] : memref<128x384xbf16, #tpu.memory_space<vmem>>, vector<128x384xbf16>
    %cst_24 = arith.constant dense<0.000000e+00> : vector<2x384xf32>
    %47 = tpu.matmul %45, %46, %cst_24 {dimension_numbers = #tpu.dot_dimension_numbers<[1], [0], [0], [1], [0, 0, 1, 1], [], []>} : vector<2x128xbf16>, vector<128x384xbf16>, vector<2x384xf32> -> vector<2x384xf32>
    %48 = vector.extract_strided_slice %43 {offsets = [0, 0], sizes = [2, 128], strides = [1, 1]} : vector<2x384xf32> to vector<2x128xf32>
    %49 = vector.extract_strided_slice %47 {offsets = [0, 0], sizes = [2, 128], strides = [1, 1]} : vector<2x384xf32> to vector<2x128xf32>
    %50 = arith.addf %48, %49 : vector<2x128xf32>
    %51 = arith.negf %50 : vector<2x128xf32>
    %52 = math.exp %51 : vector<2x128xf32>
    %cst_25 = arith.constant 1.000000e+00 : f32
    %53 = vector.broadcast %cst_25 : f32 to vector<2x128xf32>
    %54 = arith.addf %53, %52 : vector<2x128xf32>
    %55 = arith.divf %53, %54 : vector<2x128xf32>
    %56 = vector.extract_strided_slice %43 {offsets = [0, 128], sizes = [2, 128], strides = [1, 1]} : vector<2x384xf32> to vector<2x128xf32>
    %57 = vector.extract_strided_slice %47 {offsets = [0, 128], sizes = [2, 128], strides = [1, 1]} : vector<2x384xf32> to vector<2x128xf32>
    %58 = arith.addf %56, %57 : vector<2x128xf32>
    %59 = arith.negf %58 : vector<2x128xf32>
    %60 = math.exp %59 : vector<2x128xf32>
    %cst_26 = arith.constant 1.000000e+00 : f32
    %61 = vector.broadcast %cst_26 : f32 to vector<2x128xf32>
    %62 = arith.addf %61, %60 : vector<2x128xf32>
    %63 = arith.divf %61, %62 : vector<2x128xf32>
    %64 = vector.extract_strided_slice %43 {offsets = [0, 256], sizes = [2, 128], strides = [1, 1]} : vector<2x384xf32> to vector<2x128xf32>
    %65 = vector.extract_strided_slice %47 {offsets = [0, 256], sizes = [2, 128], strides = [1, 1]} : vector<2x384xf32> to vector<2x128xf32>
    %c0_27 = arith.constant 0 : index
    %c0_28 = arith.constant 0 : index
    %66 = vector.load %arg6[%c0_27, %c0_28] : memref<1x128xf32, #tpu.memory_space<vmem>>, vector<1x128xf32>
    %67 = vector.broadcast %66 : vector<1x128xf32> to vector<2x128xf32>
    %68 = arith.addf %65, %67 : vector<2x128xf32>
    %69 = arith.mulf %55, %68 : vector<2x128xf32>
    %70 = arith.addf %64, %69 : vector<2x128xf32>
    %71 = math.tanh %70 : vector<2x128xf32>
    %cst_29 = arith.constant 1.000000e+00 : f32
    %72 = vector.broadcast %cst_29 : f32 to vector<2x128xf32>
    %73 = arith.subf %72, %63 : vector<2x128xf32>
    %74 = arith.mulf %73, %71 : vector<2x128xf32>
    %75 = arith.mulf %63, %44 : vector<2x128xf32>
    %76 = arith.addf %74, %75 : vector<2x128xf32>
    %c0_30 = arith.constant 0 : index
    %c0_31 = arith.constant 0 : index
    %77 = vector.load %arg10[%c0_30, %c0_31] : memref<2x128xf32, #tpu.memory_space<vmem>>, vector<2x128xf32>
    tpu.vector_store %arg10[%c0_30, %c0_31], %76 {strides = array<i32>} : memref<2x128xf32, #tpu.memory_space<vmem>>, vector<2x128xf32>,
    %c0_32 = arith.constant 0 : index
    %c0_33 = arith.constant 0 : index
    %c0_34 = arith.constant 0 : index
    %78 = vector.load %arg8[%c0_32, %c0_33, %c0_34] : memref<1x2x128xf32, #tpu.memory_space<vmem>>, vector<1x2x128xf32>
    %79 = vector.shape_cast %78 : vector<1x2x128xf32> to vector<2x128xf32>
    %80 = vector.shape_cast %76 : vector<2x128xf32> to vector<1x2x128xf32>
    tpu.vector_store %arg8[%c0_32, %c0_33, %c0_34], %80 {strides = array<i32>} : memref<1x2x128xf32, #tpu.memory_space<vmem>>, vector<1x2x128xf32>,
    return
  }
  func.func @transform_0(%arg0: i32) -> (i32, i32, i32) {
    %c0_i32 = arith.constant 0 : i32
    %c0_i32_0 = arith.constant 0 : i32
    %c0_i32_1 = arith.constant 0 : i32
    return %arg0, %c0_i32, %c0_i32_0 : i32, i32, i32
  }
  func.func @transform_1(%arg0: i32) -> (i32, i32, i32) {
    %c7_i32 = arith.constant 7 : i32
    %0 = arith.subi %c7_i32, %arg0 : i32
    %c0_i32 = arith.constant 0 : i32
    %c1_i32 = arith.constant 1 : i32
    %c0_i32_0 = arith.constant 0 : i32
    return %0, %c0_i32, %c1_i32 : i32, i32, i32
  }
  func.func @transform_2(%arg0: i32) -> (i32, i32) {
    %c0_i32 = arith.constant 0 : i32
    %c0_i32_0 = arith.constant 0 : i32
    %c0_i32_1 = arith.constant 0 : i32
    return %c0_i32, %c0_i32_0 : i32, i32
  }
  func.func @transform_3(%arg0: i32) -> (i32, i32) {
    %c0_i32 = arith.constant 0 : i32
    %c0_i32_0 = arith.constant 0 : i32
    %c0_i32_1 = arith.constant 0 : i32
    return %c0_i32, %c0_i32_0 : i32, i32
  }
  func.func @transform_4(%arg0: i32) -> (i32, i32) {
    %c0_i32 = arith.constant 0 : i32
    %c0_i32_0 = arith.constant 0 : i32
    %c0_i32_1 = arith.constant 0 : i32
    return %c0_i32, %c0_i32_0 : i32, i32
  }
  func.func @transform_5(%arg0: i32) -> (i32, i32) {
    %c0_i32 = arith.constant 0 : i32
    %c0_i32_0 = arith.constant 0 : i32
    %c0_i32_1 = arith.constant 0 : i32
    return %c0_i32, %c0_i32_0 : i32, i32
  }
  func.func @transform_6(%arg0: i32) -> (i32, i32, i32) {
    %c0_i32 = arith.constant 0 : i32
    %c0_i32_0 = arith.constant 0 : i32
    %c0_i32_1 = arith.constant 0 : i32
    return %arg0, %c0_i32, %c0_i32_0 : i32, i32, i32
  }
  func.func @transform_7(%arg0: i32) -> (i32, i32, i32) {
    %c7_i32 = arith.constant 7 : i32
    %0 = arith.subi %c7_i32, %arg0 : i32
    %c0_i32 = arith.constant 0 : i32
    %c0_i32_0 = arith.constant 0 : i32
    %c0_i32_1 = arith.constant 0 : i32
    return %0, %c0_i32, %c0_i32_0 : i32, i32, i32
  }
}

module attributes {stable_mosaic.version = 11 : i64} {
  func.func @_matmul_bias_kernel(%arg0: i32, %arg1: memref<16x256xf32, #tpu.memory_space<vmem>>, %arg2: memref<256x768xbf16, #tpu.memory_space<vmem>>, %arg3: memref<1x768xf32, #tpu.memory_space<vmem>>, %arg4: memref<16x768xf32, #tpu.memory_space<vmem>>) attributes {dimension_semantics = [#tpu.dimension_semantics<parallel>], iteration_bounds = array<i64: 1>, scalar_prefetch = 0 : i64, scratch_operands = 0 : i64, tpu.core_type = #tpu.core_type<tc>, window_params = [{transform_indices = @transform_0, window_bounds = array<i64: 16, 256>}, {pipeline_mode = #tpu.pipeline_mode<synchronous>, transform_indices = @transform_1, window_bounds = array<i64: 256, 768>}, {pipeline_mode = #tpu.pipeline_mode<synchronous>, transform_indices = @transform_2, window_bounds = array<i64: 1, 768>}, {transform_indices = @transform_3, window_bounds = array<i64: 16, 768>}]} {
    %c0 = arith.constant 0 : index
    %c0_0 = arith.constant 0 : index
    %0 = vector.load %arg1[%c0, %c0_0] : memref<16x256xf32, #tpu.memory_space<vmem>>, vector<16x256xf32>
    %1 = arith.truncf %0 : vector<16x256xf32> to vector<16x256xbf16>
    %c0_1 = arith.constant 0 : index
    %c0_2 = arith.constant 0 : index
    %2 = vector.load %arg2[%c0_1, %c0_2] : memref<256x768xbf16, #tpu.memory_space<vmem>>, vector<256x768xbf16>
    %cst = arith.constant dense<0.000000e+00> : vector<16x768xf32>
    %3 = tpu.matmul %1, %2, %cst {dimension_numbers = #tpu.dot_dimension_numbers<[1], [0], [0], [1], [0, 0, 1, 1], [], []>} : vector<16x256xbf16>, vector<256x768xbf16>, vector<16x768xf32> -> vector<16x768xf32>
    %c0_3 = arith.constant 0 : index
    %c0_4 = arith.constant 0 : index
    %4 = vector.load %arg3[%c0_3, %c0_4] : memref<1x768xf32, #tpu.memory_space<vmem>>, vector<1x768xf32>
    %5 = vector.broadcast %4 : vector<1x768xf32> to vector<16x768xf32>
    %6 = arith.addf %3, %5 : vector<16x768xf32>
    %c0_5 = arith.constant 0 : index
    %c0_6 = arith.constant 0 : index
    %7 = vector.load %arg4[%c0_5, %c0_6] : memref<16x768xf32, #tpu.memory_space<vmem>>, vector<16x768xf32>
    tpu.vector_store %arg4[%c0_5, %c0_6], %6 {strides = array<i32>} : memref<16x768xf32, #tpu.memory_space<vmem>>, vector<16x768xf32>,
    return
  }
  func.func @transform_0(%arg0: i32) -> (i32, i32) {
    %c0_i32 = arith.constant 0 : i32
    %c0_i32_0 = arith.constant 0 : i32
    return %arg0, %c0_i32 : i32, i32
  }
  func.func @transform_1(%arg0: i32) -> (i32, i32) {
    %c0_i32 = arith.constant 0 : i32
    %c0_i32_0 = arith.constant 0 : i32
    %c0_i32_1 = arith.constant 0 : i32
    return %c0_i32, %c0_i32_0 : i32, i32
  }
  func.func @transform_2(%arg0: i32) -> (i32, i32) {
    %c0_i32 = arith.constant 0 : i32
    %c0_i32_0 = arith.constant 0 : i32
    %c0_i32_1 = arith.constant 0 : i32
    return %c0_i32, %c0_i32_0 : i32, i32
  }
  func.func @transform_3(%arg0: i32) -> (i32, i32) {
    %c0_i32 = arith.constant 0 : i32
    %c0_i32_0 = arith.constant 0 : i32
    return %arg0, %c0_i32 : i32, i32
  }
}

module attributes {stable_mosaic.version = 11 : i64} {
  func.func @_attention_pool_kernel(%arg0: memref<8x2x256xf32, #tpu.memory_space<vmem>>, %arg1: memref<1x1x256xf32, #tpu.memory_space<vmem>>, %arg2: memref<8x1x1xf32, #tpu.memory_space<vmem>>, %arg3: memref<2x256xf32, #tpu.memory_space<vmem>>, %arg4: memref<2x256xf32, #tpu.memory_space<vmem>>, %arg5: memref<2x256xf32, #tpu.memory_space<vmem>>) attributes {dimension_semantics = [], scalar_prefetch = 0 : i64, scratch_operands = 0 : i64, tpu.core_type = #tpu.core_type<tc>} {
    %c0 = arith.constant 0 : index
    %c0_0 = arith.constant 0 : index
    %c0_1 = arith.constant 0 : index
    %0 = vector.load %arg0[%c0, %c0_0, %c0_1] : memref<8x2x256xf32, #tpu.memory_space<vmem>>, vector<8x2x256xf32>
    %c0_2 = arith.constant 0 : index
    %c0_3 = arith.constant 0 : index
    %c0_4 = arith.constant 0 : index
    %1 = vector.load %arg1[%c0_2, %c0_3, %c0_4] : memref<1x1x256xf32, #tpu.memory_space<vmem>>, vector<1x1x256xf32>
    %c0_5 = arith.constant 0 : index
    %c0_6 = arith.constant 0 : index
    %c0_7 = arith.constant 0 : index
    %2 = vector.load %arg2[%c0_5, %c0_6, %c0_7] : memref<8x1x1xf32, #tpu.memory_space<vmem>>, vector<8x1x1xf32>
    %3 = vector.broadcast %1 : vector<1x1x256xf32> to vector<8x2x256xf32>
    %4 = arith.mulf %0, %3 : vector<8x2x256xf32>
    %cst = arith.constant dense<0.000000e+00> : vector<8x2xf32>
    %5 = vector.multi_reduction <add>, %4, %cst [2] : vector<8x2x256xf32> to vector<8x2xf32>
    %6 = vector.shape_cast %5 : vector<8x2xf32> to vector<8x2x1xf32>
    %7 = vector.broadcast %2 : vector<8x1x1xf32> to vector<8x2x1xf32>
    %8 = arith.addf %6, %7 : vector<8x2x1xf32>
    %9 = math.tanh %8 : vector<8x2x1xf32>
    %10 = math.exp %9 : vector<8x2x1xf32>
    %cst_8 = arith.constant dense<0.000000e+00> : vector<2x1xf32>
    %11 = vector.multi_reduction <add>, %10, %cst_8 [0] : vector<8x2x1xf32> to vector<2x1xf32>
    %12 = vector.shape_cast %11 : vector<2x1xf32> to vector<1x2x1xf32>
    %13 = vector.broadcast %12 : vector<1x2x1xf32> to vector<8x2x1xf32>
    %14 = arith.divf %10, %13 : vector<8x2x1xf32>
    %cst_9 = arith.constant 1.000000e-10 : f32
    %15 = vector.broadcast %cst_9 : f32 to vector<8x2x1xf32>
    %16 = arith.addf %14, %15 : vector<8x2x1xf32>
    %17 = vector.broadcast %16 : vector<8x2x1xf32> to vector<8x2x256xf32>
    %18 = arith.mulf %17, %0 : vector<8x2x256xf32>
    %cst_10 = arith.constant dense<0.000000e+00> : vector<2x256xf32>
    %19 = vector.multi_reduction <add>, %18, %cst_10 [0] : vector<8x2x256xf32> to vector<2x256xf32>
    %c0_11 = arith.constant 0 : index
    %c0_12 = arith.constant 0 : index
    %20 = vector.load %arg3[%c0_11, %c0_12] : memref<2x256xf32, #tpu.memory_space<vmem>>, vector<2x256xf32>
    tpu.vector_store %arg3[%c0_11, %c0_12], %19 {strides = array<i32>} : memref<2x256xf32, #tpu.memory_space<vmem>>, vector<2x256xf32>,
    %cst_13 = arith.constant dense<0.000000e+00> : vector<2x256xf32>
    %21 = vector.multi_reduction <add>, %0, %cst_13 [0] : vector<8x2x256xf32> to vector<2x256xf32>
    %cst_14 = arith.constant 8.000000e+00 : f32
    %22 = vector.broadcast %cst_14 : f32 to vector<2x256xf32>
    %23 = arith.divf %21, %22 : vector<2x256xf32>
    %c0_15 = arith.constant 0 : index
    %c0_16 = arith.constant 0 : index
    %24 = vector.load %arg4[%c0_15, %c0_16] : memref<2x256xf32, #tpu.memory_space<vmem>>, vector<2x256xf32>
    tpu.vector_store %arg4[%c0_15, %c0_16], %23 {strides = array<i32>} : memref<2x256xf32, #tpu.memory_space<vmem>>, vector<2x256xf32>,
    %cst_17 = arith.constant dense<0xFF800000> : vector<2x256xf32>
    %25 = vector.multi_reduction <maximumf>, %0, %cst_17 [0] : vector<8x2x256xf32> to vector<2x256xf32>
    %c0_18 = arith.constant 0 : index
    %c0_19 = arith.constant 0 : index
    %26 = vector.load %arg5[%c0_18, %c0_19] : memref<2x256xf32, #tpu.memory_space<vmem>>, vector<2x256xf32>
    tpu.vector_store %arg5[%c0_18, %c0_19], %25 {strides = array<i32>} : memref<2x256xf32, #tpu.memory_space<vmem>>, vector<2x256xf32>,
    return
  }
}

module attributes {stable_mosaic.version = 11 : i64} {
  func.func @_attention_kernel(%arg0: memref<8x2x256xf32, #tpu.memory_space<vmem>>, %arg1: memref<1x1x256xf32, #tpu.memory_space<vmem>>, %arg2: memref<8x1x1xf32, #tpu.memory_space<vmem>>, %arg3: memref<2x256xf32, #tpu.memory_space<vmem>>) attributes {dimension_semantics = [], scalar_prefetch = 0 : i64, scratch_operands = 0 : i64, tpu.core_type = #tpu.core_type<tc>} {
    %c0 = arith.constant 0 : index
    %c0_0 = arith.constant 0 : index
    %c0_1 = arith.constant 0 : index
    %0 = vector.load %arg0[%c0, %c0_0, %c0_1] : memref<8x2x256xf32, #tpu.memory_space<vmem>>, vector<8x2x256xf32>
    %c0_2 = arith.constant 0 : index
    %c0_3 = arith.constant 0 : index
    %c0_4 = arith.constant 0 : index
    %1 = vector.load %arg1[%c0_2, %c0_3, %c0_4] : memref<1x1x256xf32, #tpu.memory_space<vmem>>, vector<1x1x256xf32>
    %c0_5 = arith.constant 0 : index
    %c0_6 = arith.constant 0 : index
    %c0_7 = arith.constant 0 : index
    %2 = vector.load %arg2[%c0_5, %c0_6, %c0_7] : memref<8x1x1xf32, #tpu.memory_space<vmem>>, vector<8x1x1xf32>
    %3 = vector.broadcast %1 : vector<1x1x256xf32> to vector<8x2x256xf32>
    %4 = arith.mulf %0, %3 : vector<8x2x256xf32>
    %cst = arith.constant dense<0.000000e+00> : vector<8x2xf32>
    %5 = vector.multi_reduction <add>, %4, %cst [2] : vector<8x2x256xf32> to vector<8x2xf32>
    %6 = vector.shape_cast %5 : vector<8x2xf32> to vector<8x2x1xf32>
    %7 = vector.broadcast %2 : vector<8x1x1xf32> to vector<8x2x1xf32>
    %8 = arith.addf %6, %7 : vector<8x2x1xf32>
    %9 = math.tanh %8 : vector<8x2x1xf32>
    %10 = math.exp %9 : vector<8x2x1xf32>
    %cst_8 = arith.constant dense<0.000000e+00> : vector<2x1xf32>
    %11 = vector.multi_reduction <add>, %10, %cst_8 [0] : vector<8x2x1xf32> to vector<2x1xf32>
    %12 = vector.shape_cast %11 : vector<2x1xf32> to vector<1x2x1xf32>
    %13 = vector.broadcast %12 : vector<1x2x1xf32> to vector<8x2x1xf32>
    %14 = arith.divf %10, %13 : vector<8x2x1xf32>
    %cst_9 = arith.constant 1.000000e-10 : f32
    %15 = vector.broadcast %cst_9 : f32 to vector<8x2x1xf32>
    %16 = arith.addf %14, %15 : vector<8x2x1xf32>
    %17 = vector.broadcast %16 : vector<8x2x1xf32> to vector<8x2x256xf32>
    %18 = arith.mulf %17, %0 : vector<8x2x256xf32>
    %cst_10 = arith.constant dense<0.000000e+00> : vector<2x256xf32>
    %19 = vector.multi_reduction <add>, %18, %cst_10 [0] : vector<8x2x256xf32> to vector<2x256xf32>
    %c0_11 = arith.constant 0 : index
    %c0_12 = arith.constant 0 : index
    %20 = vector.load %arg3[%c0_11, %c0_12] : memref<2x256xf32, #tpu.memory_space<vmem>>, vector<2x256xf32>
    tpu.vector_store %arg3[%c0_11, %c0_12], %19 {strides = array<i32>} : memref<2x256xf32, #tpu.memory_space<vmem>>, vector<2x256xf32>,
    return
  }
}

module attributes {stable_mosaic.version = 11 : i64} {
  func.func @_matmul_bias_kernel(%arg0: i32, %arg1: memref<16x256xf32, #tpu.memory_space<vmem>>, %arg2: memref<256x25xbf16, #tpu.memory_space<vmem>>, %arg3: memref<1x25xf32, #tpu.memory_space<vmem>>, %arg4: memref<16x25xf32, #tpu.memory_space<vmem>>) attributes {dimension_semantics = [#tpu.dimension_semantics<parallel>], iteration_bounds = array<i64: 1>, scalar_prefetch = 0 : i64, scratch_operands = 0 : i64, tpu.core_type = #tpu.core_type<tc>, window_params = [{transform_indices = @transform_0, window_bounds = array<i64: 16, 256>}, {pipeline_mode = #tpu.pipeline_mode<synchronous>, transform_indices = @transform_1, window_bounds = array<i64: 256, 25>}, {pipeline_mode = #tpu.pipeline_mode<synchronous>, transform_indices = @transform_2, window_bounds = array<i64: 1, 25>}, {transform_indices = @transform_3, window_bounds = array<i64: 16, 25>}]} {
    %c0 = arith.constant 0 : index
    %c0_0 = arith.constant 0 : index
    %0 = vector.load %arg1[%c0, %c0_0] : memref<16x256xf32, #tpu.memory_space<vmem>>, vector<16x256xf32>
    %1 = arith.truncf %0 : vector<16x256xf32> to vector<16x256xbf16>
    %c0_1 = arith.constant 0 : index
    %c0_2 = arith.constant 0 : index
    %2 = vector.load %arg2[%c0_1, %c0_2] : memref<256x25xbf16, #tpu.memory_space<vmem>>, vector<256x25xbf16>
    %cst = arith.constant dense<0.000000e+00> : vector<16x25xf32>
    %3 = tpu.matmul %1, %2, %cst {dimension_numbers = #tpu.dot_dimension_numbers<[1], [0], [0], [1], [0, 0, 1, 1], [], []>} : vector<16x256xbf16>, vector<256x25xbf16>, vector<16x25xf32> -> vector<16x25xf32>
    %c0_3 = arith.constant 0 : index
    %c0_4 = arith.constant 0 : index
    %4 = vector.load %arg3[%c0_3, %c0_4] : memref<1x25xf32, #tpu.memory_space<vmem>>, vector<1x25xf32>
    %5 = vector.broadcast %4 : vector<1x25xf32> to vector<16x25xf32>
    %6 = arith.addf %3, %5 : vector<16x25xf32>
    %c0_5 = arith.constant 0 : index
    %c0_6 = arith.constant 0 : index
    %7 = vector.load %arg4[%c0_5, %c0_6] : memref<16x25xf32, #tpu.memory_space<vmem>>, vector<16x25xf32>
    tpu.vector_store %arg4[%c0_5, %c0_6], %6 {strides = array<i32>} : memref<16x25xf32, #tpu.memory_space<vmem>>, vector<16x25xf32>,
    return
  }
  func.func @transform_0(%arg0: i32) -> (i32, i32) {
    %c0_i32 = arith.constant 0 : i32
    %c0_i32_0 = arith.constant 0 : i32
    return %arg0, %c0_i32 : i32, i32
  }
  func.func @transform_1(%arg0: i32) -> (i32, i32) {
    %c0_i32 = arith.constant 0 : i32
    %c0_i32_0 = arith.constant 0 : i32
    %c0_i32_1 = arith.constant 0 : i32
    return %c0_i32, %c0_i32_0 : i32, i32
  }
  func.func @transform_2(%arg0: i32) -> (i32, i32) {
    %c0_i32 = arith.constant 0 : i32
    %c0_i32_0 = arith.constant 0 : i32
    %c0_i32_1 = arith.constant 0 : i32
    return %c0_i32, %c0_i32_0 : i32, i32
  }
  func.func @transform_3(%arg0: i32) -> (i32, i32) {
    %c0_i32 = arith.constant 0 : i32
    %c0_i32_0 = arith.constant 0 : i32
    return %arg0, %c0_i32 : i32, i32
  }
}

module attributes {stable_mosaic.version = 11 : i64} {
  func.func @_caps_routing_kernel(%arg0: memref<2x5x8x5xf32, #tpu.memory_space<vmem>>, %arg1: memref<2x5x1x5xf32, #tpu.memory_space<vmem>>) attributes {dimension_semantics = [], scalar_prefetch = 0 : i64, scratch_operands = 0 : i64, tpu.core_type = #tpu.core_type<tc>} {
    %c0 = arith.constant 0 : index
    %c0_0 = arith.constant 0 : index
    %c0_1 = arith.constant 0 : index
    %c0_2 = arith.constant 0 : index
    %0 = vector.load %arg0[%c0, %c0_0, %c0_1, %c0_2] : memref<2x5x8x5xf32, #tpu.memory_space<vmem>>, vector<2x5x8x5xf32>
    %cst = arith.constant 0.000000e+00 : f32
    %1 = vector.broadcast %cst : f32 to vector<2x5x8x1xf32>
    %cst_3 = arith.constant dense<0xFF800000> : vector<2x8x1xf32>
    %2 = vector.multi_reduction <maximumf>, %1, %cst_3 [1] : vector<2x5x8x1xf32> to vector<2x8x1xf32>
    %3 = vector.shape_cast %2 : vector<2x8x1xf32> to vector<2x1x8x1xf32>
    %4 = vector.broadcast %3 : vector<2x1x8x1xf32> to vector<2x5x8x1xf32>
    %5 = arith.subf %1, %4 : vector<2x5x8x1xf32>
    %6 = math.exp %5 : vector<2x5x8x1xf32>
    %cst_4 = arith.constant dense<0.000000e+00> : vector<2x8x1xf32>
    %7 = vector.multi_reduction <add>, %6, %cst_4 [1] : vector<2x5x8x1xf32> to vector<2x8x1xf32>
    %8 = vector.shape_cast %7 : vector<2x8x1xf32> to vector<2x1x8x1xf32>
    %9 = vector.broadcast %8 : vector<2x1x8x1xf32> to vector<2x5x8x1xf32>
    %10 = arith.divf %6, %9 : vector<2x5x8x1xf32>
    %11 = vector.broadcast %10 : vector<2x5x8x1xf32> to vector<2x5x8x5xf32>
    %12 = arith.mulf %11, %0 : vector<2x5x8x5xf32>
    %cst_5 = arith.constant dense<0.000000e+00> : vector<2x5x5xf32>
    %13 = vector.multi_reduction <add>, %12, %cst_5 [2] : vector<2x5x8x5xf32> to vector<2x5x5xf32>
    %14 = vector.shape_cast %13 : vector<2x5x5xf32> to vector<2x5x1x5xf32>
    %15 = arith.mulf %14, %14 : vector<2x5x1x5xf32>
    %cst_6 = arith.constant dense<0.000000e+00> : vector<2x5x1xf32>
    %16 = vector.multi_reduction <add>, %15, %cst_6 [3] : vector<2x5x1x5xf32> to vector<2x5x1xf32>
    %17 = vector.shape_cast %16 : vector<2x5x1xf32> to vector<2x5x1x1xf32>
    %cst_7 = arith.constant 1.000000e-07 : f32
    %18 = vector.broadcast %cst_7 : f32 to vector<2x5x1x1xf32>
    %19 = arith.addf %17, %18 : vector<2x5x1x1xf32>
    %20 = math.sqrt %19 : vector<2x5x1x1xf32>
    %21 = vector.broadcast %20 : vector<2x5x1x1xf32> to vector<2x5x1x5xf32>
    %22 = arith.divf %14, %21 : vector<2x5x1x5xf32>
    %23 = vector.broadcast %22 : vector<2x5x1x5xf32> to vector<2x5x8x5xf32>
    %24 = arith.mulf %23, %0 : vector<2x5x8x5xf32>
    %cst_8 = arith.constant dense<0.000000e+00> : vector<2x5x8xf32>
    %25 = vector.multi_reduction <add>, %24, %cst_8 [3] : vector<2x5x8x5xf32> to vector<2x5x8xf32>
    %26 = vector.shape_cast %25 : vector<2x5x8xf32> to vector<2x5x8x1xf32>
    %cst_9 = arith.constant dense<0xFF800000> : vector<2x8x1xf32>
    %27 = vector.multi_reduction <maximumf>, %26, %cst_9 [1] : vector<2x5x8x1xf32> to vector<2x8x1xf32>
    %28 = vector.shape_cast %27 : vector<2x8x1xf32> to vector<2x1x8x1xf32>
    %29 = vector.broadcast %28 : vector<2x1x8x1xf32> to vector<2x5x8x1xf32>
    %30 = arith.subf %26, %29 : vector<2x5x8x1xf32>
    %31 = math.exp %30 : vector<2x5x8x1xf32>
    %cst_10 = arith.constant dense<0.000000e+00> : vector<2x8x1xf32>
    %32 = vector.multi_reduction <add>, %31, %cst_10 [1] : vector<2x5x8x1xf32> to vector<2x8x1xf32>
    %33 = vector.shape_cast %32 : vector<2x8x1xf32> to vector<2x1x8x1xf32>
    %34 = vector.broadcast %33 : vector<2x1x8x1xf32> to vector<2x5x8x1xf32>
    %35 = arith.divf %31, %34 : vector<2x5x8x1xf32>
    %36 = vector.broadcast %35 : vector<2x5x8x1xf32> to vector<2x5x8x5xf32>
    %37 = arith.mulf %36, %0 : vector<2x5x8x5xf32>
    %cst_11 = arith.constant dense<0.000000e+00> : vector<2x5x5xf32>
    %38 = vector.multi_reduction <add>, %37, %cst_11 [2] : vector<2x5x8x5xf32> to vector<2x5x5xf32>
    %39 = vector.shape_cast %38 : vector<2x5x5xf32> to vector<2x5x1x5xf32>
    %40 = arith.mulf %39, %39 : vector<2x5x1x5xf32>
    %cst_12 = arith.constant dense<0.000000e+00> : vector<2x5x1xf32>
    %41 = vector.multi_reduction <add>, %40, %cst_12 [3] : vector<2x5x1x5xf32> to vector<2x5x1xf32>
    %42 = vector.shape_cast %41 : vector<2x5x1xf32> to vector<2x5x1x1xf32>
    %cst_13 = arith.constant 1.000000e-07 : f32
    %43 = vector.broadcast %cst_13 : f32 to vector<2x5x1x1xf32>
    %44 = arith.addf %42, %43 : vector<2x5x1x1xf32>
    %45 = math.sqrt %44 : vector<2x5x1x1xf32>
    %46 = vector.broadcast %45 : vector<2x5x1x1xf32> to vector<2x5x1x5xf32>
    %47 = arith.divf %39, %46 : vector<2x5x1x5xf32>
    %48 = vector.broadcast %47 : vector<2x5x1x5xf32> to vector<2x5x8x5xf32>
    %49 = arith.mulf %48, %0 : vector<2x5x8x5xf32>
    %cst_14 = arith.constant dense<0.000000e+00> : vector<2x5x8xf32>
    %50 = vector.multi_reduction <add>, %49, %cst_14 [3] : vector<2x5x8x5xf32> to vector<2x5x8xf32>
    %51 = vector.shape_cast %50 : vector<2x5x8xf32> to vector<2x5x8x1xf32>
    %cst_15 = arith.constant dense<0xFF800000> : vector<2x8x1xf32>
    %52 = vector.multi_reduction <maximumf>, %51, %cst_15 [1] : vector<2x5x8x1xf32> to vector<2x8x1xf32>
    %53 = vector.shape_cast %52 : vector<2x8x1xf32> to vector<2x1x8x1xf32>
    %54 = vector.broadcast %53 : vector<2x1x8x1xf32> to vector<2x5x8x1xf32>
    %55 = arith.subf %51, %54 : vector<2x5x8x1xf32>
    %56 = math.exp %55 : vector<2x5x8x1xf32>
    %cst_16 = arith.constant dense<0.000000e+00> : vector<2x8x1xf32>
    %57 = vector.multi_reduction <add>, %56, %cst_16 [1] : vector<2x5x8x1xf32> to vector<2x8x1xf32>
    %58 = vector.shape_cast %57 : vector<2x8x1xf32> to vector<2x1x8x1xf32>
    %59 = vector.broadcast %58 : vector<2x1x8x1xf32> to vector<2x5x8x1xf32>
    %60 = arith.divf %56, %59 : vector<2x5x8x1xf32>
    %61 = vector.broadcast %60 : vector<2x5x8x1xf32> to vector<2x5x8x5xf32>
    %62 = arith.mulf %61, %0 : vector<2x5x8x5xf32>
    %cst_17 = arith.constant dense<0.000000e+00> : vector<2x5x5xf32>
    %63 = vector.multi_reduction <add>, %62, %cst_17 [2] : vector<2x5x8x5xf32> to vector<2x5x5xf32>
    %64 = vector.shape_cast %63 : vector<2x5x5xf32> to vector<2x5x1x5xf32>
    %65 = arith.mulf %64, %64 : vector<2x5x1x5xf32>
    %cst_18 = arith.constant dense<0.000000e+00> : vector<2x5x1xf32>
    %66 = vector.multi_reduction <add>, %65, %cst_18 [3] : vector<2x5x1x5xf32> to vector<2x5x1xf32>
    %67 = vector.shape_cast %66 : vector<2x5x1xf32> to vector<2x5x1x1xf32>
    %cst_19 = arith.constant 1.000000e-07 : f32
    %68 = vector.broadcast %cst_19 : f32 to vector<2x5x1x1xf32>
    %69 = arith.addf %67, %68 : vector<2x5x1x1xf32>
    %70 = math.sqrt %69 : vector<2x5x1x1xf32>
    %71 = vector.broadcast %70 : vector<2x5x1x1xf32> to vector<2x5x1x5xf32>
    %72 = arith.divf %64, %71 : vector<2x5x1x5xf32>
    %73 = vector.broadcast %72 : vector<2x5x1x5xf32> to vector<2x5x8x5xf32>
    %74 = arith.mulf %73, %0 : vector<2x5x8x5xf32>
    %cst_20 = arith.constant dense<0.000000e+00> : vector<2x5x8xf32>
    %75 = vector.multi_reduction <add>, %74, %cst_20 [3] : vector<2x5x8x5xf32> to vector<2x5x8xf32>
    %76 = vector.shape_cast %75 : vector<2x5x8xf32> to vector<2x5x8x1xf32>
    %cst_21 = arith.constant dense<0xFF800000> : vector<2x8x1xf32>
    %77 = vector.multi_reduction <maximumf>, %76, %cst_21 [1] : vector<2x5x8x1xf32> to vector<2x8x1xf32>
    %78 = vector.shape_cast %77 : vector<2x8x1xf32> to vector<2x1x8x1xf32>
    %79 = vector.broadcast %78 : vector<2x1x8x1xf32> to vector<2x5x8x1xf32>
    %80 = arith.subf %76, %79 : vector<2x5x8x1xf32>
    %81 = math.exp %80 : vector<2x5x8x1xf32>
    %cst_22 = arith.constant dense<0.000000e+00> : vector<2x8x1xf32>
    %82 = vector.multi_reduction <add>, %81, %cst_22 [1] : vector<2x5x8x1xf32> to vector<2x8x1xf32>
    %83 = vector.shape_cast %82 : vector<2x8x1xf32> to vector<2x1x8x1xf32>
    %84 = vector.broadcast %83 : vector<2x1x8x1xf32> to vector<2x5x8x1xf32>
    %85 = arith.divf %81, %84 : vector<2x5x8x1xf32>
    %86 = vector.broadcast %85 : vector<2x5x8x1xf32> to vector<2x5x8x5xf32>
    %87 = arith.mulf %86, %0 : vector<2x5x8x5xf32>
    %cst_23 = arith.constant dense<0.000000e+00> : vector<2x5x5xf32>
    %88 = vector.multi_reduction <add>, %87, %cst_23 [2] : vector<2x5x8x5xf32> to vector<2x5x5xf32>
    %89 = vector.shape_cast %88 : vector<2x5x5xf32> to vector<2x5x1x5xf32>
    %90 = arith.mulf %89, %89 : vector<2x5x1x5xf32>
    %cst_24 = arith.constant dense<0.000000e+00> : vector<2x5x1xf32>
    %91 = vector.multi_reduction <add>, %90, %cst_24 [3] : vector<2x5x1x5xf32> to vector<2x5x1xf32>
    %92 = vector.shape_cast %91 : vector<2x5x1xf32> to vector<2x5x1x1xf32>
    %cst_25 = arith.constant 1.000000e-07 : f32
    %93 = vector.broadcast %cst_25 : f32 to vector<2x5x1x1xf32>
    %94 = arith.addf %92, %93 : vector<2x5x1x1xf32>
    %95 = math.sqrt %94 : vector<2x5x1x1xf32>
    %96 = vector.broadcast %95 : vector<2x5x1x1xf32> to vector<2x5x1x5xf32>
    %97 = arith.divf %89, %96 : vector<2x5x1x5xf32>
    %c0_26 = arith.constant 0 : index
    %c0_27 = arith.constant 0 : index
    %c0_28 = arith.constant 0 : index
    %c0_29 = arith.constant 0 : index
    %98 = vector.load %arg1[%c0_26, %c0_27, %c0_28, %c0_29] : memref<2x5x1x5xf32, #tpu.memory_space<vmem>>, vector<2x5x1x5xf32>
    tpu.vector_store %arg1[%c0_26, %c0_27, %c0_28, %c0_29], %97 {strides = array<i32>} : memref<2x5x1x5xf32, #tpu.memory_space<vmem>>, vector<2x5x1x5xf32>,
    return
  }
}

module attributes {stable_mosaic.version = 11 : i64} {
  func.func @_head_kernel(%arg0: memref<2x1024xf32, #tpu.memory_space<vmem>>, %arg1: memref<2x25xf32, #tpu.memory_space<vmem>>, %arg2: memref<1x25xf32, #tpu.memory_space<vmem>>, %arg3: memref<1x1xf32, #tpu.memory_space<vmem>>, %arg4: memref<1024x256xbf16, #tpu.memory_space<vmem>>, %arg5: memref<1x256xf32, #tpu.memory_space<vmem>>, %arg6: memref<1x256xf32, #tpu.memory_space<vmem>>, %arg7: memref<1x256xf32, #tpu.memory_space<vmem>>, %arg8: memref<1x256xf32, #tpu.memory_space<vmem>>, %arg9: memref<256x128xbf16, #tpu.memory_space<vmem>>, %arg10: memref<1x128xf32, #tpu.memory_space<vmem>>, %arg11: memref<2x128xf32, #tpu.memory_space<vmem>>) attributes {dimension_semantics = [], scalar_prefetch = 0 : i64, scratch_operands = 0 : i64, tpu.core_type = #tpu.core_type<tc>} {
    %c0 = arith.constant 0 : index
    %c0_0 = arith.constant 0 : index
    %0 = vector.load %arg1[%c0, %c0_0] : memref<2x25xf32, #tpu.memory_space<vmem>>, vector<2x25xf32>
    %c0_1 = arith.constant 0 : index
    %c0_2 = arith.constant 0 : index
    %1 = vector.load %arg2[%c0_1, %c0_2] : memref<1x25xf32, #tpu.memory_space<vmem>>, vector<1x25xf32>
    %2 = vector.broadcast %1 : vector<1x25xf32> to vector<2x25xf32>
    %3 = arith.mulf %0, %2 : vector<2x25xf32>
    %cst = arith.constant dense<0.000000e+00> : vector<2xf32>
    %4 = vector.multi_reduction <add>, %3, %cst [1] : vector<2x25xf32> to vector<2xf32>
    %5 = vector.shape_cast %4 : vector<2xf32> to vector<2x1xf32>
    %c0_3 = arith.constant 0 : index
    %c0_4 = arith.constant 0 : index
    %6 = vector.load %arg3[%c0_3, %c0_4] : memref<1x1xf32, #tpu.memory_space<vmem>>, vector<1x1xf32>
    %7 = vector.broadcast %6 : vector<1x1xf32> to vector<2x1xf32>
    %8 = arith.addf %5, %7 : vector<2x1xf32>
    %cst_5 = arith.constant 0.000000e+00 : f32
    %9 = vector.broadcast %cst_5 : f32 to vector<2x1xf32>
    %10 = arith.maximumf %8, %9 : vector<2x1xf32>
    %c0_6 = arith.constant 0 : index
    %c0_7 = arith.constant 0 : index
    %11 = vector.load %arg0[%c0_6, %c0_7] : memref<2x1024xf32, #tpu.memory_space<vmem>>, vector<2x1024xf32>
    %12 = arith.truncf %11 : vector<2x1024xf32> to vector<2x1024xbf16>
    %c0_8 = arith.constant 0 : index
    %c0_9 = arith.constant 0 : index
    %13 = vector.load %arg4[%c0_8, %c0_9] : memref<1024x256xbf16, #tpu.memory_space<vmem>>, vector<1024x256xbf16>
    %cst_10 = arith.constant dense<0.000000e+00> : vector<2x256xf32>
    %14 = tpu.matmul %12, %13, %cst_10 {dimension_numbers = #tpu.dot_dimension_numbers<[1], [0], [0], [1], [0, 0, 1, 1], [], []>} : vector<2x1024xbf16>, vector<1024x256xbf16>, vector<2x256xf32> -> vector<2x256xf32>
    %c0_11 = arith.constant 0 : index
    %c0_12 = arith.constant 0 : index
    %15 = vector.load %arg5[%c0_11, %c0_12] : memref<1x256xf32, #tpu.memory_space<vmem>>, vector<1x256xf32>
    %16 = vector.broadcast %10 : vector<2x1xf32> to vector<2x256xf32>
    %17 = vector.broadcast %15 : vector<1x256xf32> to vector<2x256xf32>
    %18 = arith.mulf %16, %17 : vector<2x256xf32>
    %19 = arith.addf %14, %18 : vector<2x256xf32>
    %c0_13 = arith.constant 0 : index
    %c0_14 = arith.constant 0 : index
    %20 = vector.load %arg6[%c0_13, %c0_14] : memref<1x256xf32, #tpu.memory_space<vmem>>, vector<1x256xf32>
    %21 = vector.broadcast %20 : vector<1x256xf32> to vector<2x256xf32>
    %22 = arith.addf %19, %21 : vector<2x256xf32>
    %cst_15 = arith.constant 0.000000e+00 : f32
    %23 = vector.broadcast %cst_15 : f32 to vector<2x256xf32>
    %24 = arith.maximumf %22, %23 : vector<2x256xf32>
    %c0_16 = arith.constant 0 : index
    %c0_17 = arith.constant 0 : index
    %25 = vector.load %arg7[%c0_16, %c0_17] : memref<1x256xf32, #tpu.memory_space<vmem>>, vector<1x256xf32>
    %26 = vector.broadcast %25 : vector<1x256xf32> to vector<2x256xf32>
    %27 = arith.mulf %24, %26 : vector<2x256xf32>
    %c0_18 = arith.constant 0 : index
    %c0_19 = arith.constant 0 : index
    %28 = vector.load %arg8[%c0_18, %c0_19] : memref<1x256xf32, #tpu.memory_space<vmem>>, vector<1x256xf32>
    %29 = vector.broadcast %28 : vector<1x256xf32> to vector<2x256xf32>
    %30 = arith.addf %27, %29 : vector<2x256xf32>
    %31 = arith.truncf %30 : vector<2x256xf32> to vector<2x256xbf16>
    %c0_20 = arith.constant 0 : index
    %c0_21 = arith.constant 0 : index
    %32 = vector.load %arg9[%c0_20, %c0_21] : memref<256x128xbf16, #tpu.memory_space<vmem>>, vector<256x128xbf16>
    %cst_22 = arith.constant dense<0.000000e+00> : vector<2x128xf32>
    %33 = tpu.matmul %31, %32, %cst_22 {dimension_numbers = #tpu.dot_dimension_numbers<[1], [0], [0], [1], [0, 0, 1, 1], [], []>} : vector<2x256xbf16>, vector<256x128xbf16>, vector<2x128xf32> -> vector<2x128xf32>
    %c0_23 = arith.constant 0 : index
    %c0_24 = arith.constant 0 : index
    %34 = vector.load %arg10[%c0_23, %c0_24] : memref<1x128xf32, #tpu.memory_space<vmem>>, vector<1x128xf32>
    %35 = vector.broadcast %34 : vector<1x128xf32> to vector<2x128xf32>
    %36 = arith.addf %33, %35 : vector<2x128xf32>
    %c0_25 = arith.constant 0 : index
    %c0_26 = arith.constant 0 : index
    %37 = vector.load %arg11[%c0_25, %c0_26] : memref<2x128xf32, #tpu.memory_space<vmem>>, vector<2x128xf32>
    tpu.vector_store %arg11[%c0_25, %c0_26], %36 {strides = array<i32>} : memref<2x128xf32, #tpu.memory_space<vmem>>, vector<2x128xf32>,
    return
  }
}

</mosaic_0001>

<llo_original>
// kernel: capsulenet_forward.13
$region0: #{capsulenet_forward.13}
  #allocation0 [shape = 'u32[]', space=smem, size = 0x4, offset = 0x4, fixed_abs, tag = 'smem constant byte address 0x4 - core index']
  #allocation1 [shape = 'u32[144,128]{1,0:T(1,128)}', space=vmem, size = 0x12000, scoped, tag = 'internal scratch']
  %s0 = inlined_call_operand.vmem [shape: f32[16,64], index: 0, kind: input, shape index: {}]
  %s1 = inlined_call_operand.vmem [shape: bf16[64,768], index: 1, kind: input, shape index: {}]
  %s2 = inlined_call_operand.vmem [shape: f32[1,768], index: 2, kind: input, shape index: {}]
  %s3 = inlined_call_operand.vmem [shape: f32[16,768], index: 3, kind: output, shape index: {}]
  %s4 = sld [smem:[#allocation0]]
  $region22: #{capsulenet_forward.13} parent=0
    _
  %s6 = ssub.s32 1, %s4
  %s7 = scalar_select 0, %s6, %s4
  // Predicated region
  $region2: #{capsulenet_forward.13} parent=0 // pred_check
    _
  $region3: #{capsulenet_forward.13} parent=0 // pred_check_branch
    %9 = sbr.rel (0) target = $region5
  $region4: #{capsulenet_forward.13} parent=0 // pred_region
    _
  $region5: #{capsulenet_forward.13} parent=0 // pred_fallthru
    _
  // Predicated region
  $region6: #{capsulenet_forward.13} parent=0 // pred_check
    _
  $region7: #{capsulenet_forward.13} parent=0 // pred_check_branch
    %11 = sbr.rel (0) target = $region9
  $region8: #{capsulenet_forward.13} parent=0 // pred_region
    _
  $region9: #{capsulenet_forward.13} parent=0 // pred_fallthru
    _
  // Predicated region
  $region10: #{capsulenet_forward.13} parent=0 // pred_check
    _
  $region11: #{capsulenet_forward.13} parent=0 // pred_check_branch
    %13 = sbr.rel (0) target = $region13
  $region12: #{capsulenet_forward.13} parent=0 // pred_region
    _
  $region13: #{capsulenet_forward.13} parent=0 // pred_fallthru
    _
  %v15 = vld [vmem:[%s0] sm:$0xff]
  %v16 = vld [vmem:[%s0 + $0x8] sm:$0xff]
  %v17 = vpack.c.bf16 %v16, %v15
  %v18 = vld [vmem:[%s1] sm:$0xff]
  %v19 = vld [vmem:[%s1 + $0x8] sm:$0xff]
  %v20 = vld [vmem:[%s1 + $0x10] sm:$0xff]
  %v21 = vld [vmem:[%s1 + $0x18] sm:$0xff]
  %v22 = vld [vmem:[%s1 + $0x20] sm:$0xff]
  %v23 = vld [vmem:[%s1 + $0x28] sm:$0xff]
  %v24 = vld [vmem:[%s1 + $0x30] sm:$0xff]
  %v25 = vld [vmem:[%s1 + $0x38] sm:$0xff]
  %v26 = vld [vmem:[%s1 + $0x40] sm:$0xff]
  %v27 = vld [vmem:[%s1 + $0x48] sm:$0xff]
  %v28 = vld [vmem:[%s1 + $0x50] sm:$0xff]
  %v29 = vld [vmem:[%s1 + $0x58] sm:$0xff]
  %v30 = vld [vmem:[%s1 + $0x60] sm:$0xff]
  %v31 = vld [vmem:[%s1 + $0x68] sm:$0xff]
  %v32 = vld [vmem:[%s1 + $0x70] sm:$0xff]
  %v33 = vld [vmem:[%s1 + $0x78] sm:$0xff]
  %v34 = vld [vmem:[%s1 + $0x80] sm:$0xff]
  %v35 = vld [vmem:[%s1 + $0x88] sm:$0xff]
  %v36 = vld [vmem:[%s1 + $0x90] sm:$0xff]
  %v37 = vld [vmem:[%s1 + $0x98] sm:$0xff]
  %v38 = vld [vmem:[%s1 + $0xa0] sm:$0xff]
  %v39 = vld [vmem:[%s1 + $0xa8] sm:$0xff]
  %v40 = vld [vmem:[%s1 + $0xb0] sm:$0xff]
  %v41 = vld [vmem:[%s1 + $0xb8] sm:$0xff]
  %v42 = vld [vmem:[%s2] sm:$0x3f]
  %v44 = vlaneseq
  %v45 = vshrl.u32 %v44, 7
  %v46 = vsub.s32 0, %v45
  %v47 = vrot.slane %v42, %v46
  %v48 = vlaneseq
  %v49 = vshrl.u32 %v48, 7
  %v50 = vsub.s32 1, %v49
  %v51 = vrot.slane %v42, %v50
  %v52 = vlaneseq
  %v53 = vshrl.u32 %v52, 7
  %v54 = vsub.s32 2, %v53
  %v55 = vrot.slane %v42, %v54
  %v56 = vlaneseq
  %v57 = vshrl.u32 %v56, 7
  %v58 = vsub.s32 3, %v57
  %v59 = vrot.slane %v42, %v58
  %v60 = vlaneseq
  %v61 = vshrl.u32 %v60, 7
  %v62 = vsub.s32 4, %v61
  %v63 = vrot.slane %v42, %v62
  %v64 = vlaneseq
  %v65 = vshrl.u32 %v64, 7
  %v66 = vsub.s32 5, %v65
  %v67 = vrot.slane %v42, %v66
  %v98 = vunpack.c.l.b16 %v18
  %v99 = vunpack.c.h.b16 %v18
  %v100 = vunpack.c.l.b16 %v19
  %v101 = vunpack.c.h.b16 %v19
  %v102 = vunpack.c.l.b16 %v20
  %v103 = vunpack.c.h.b16 %v20
  %v104 = vunpack.c.l.b16 %v21
  %v105 = vunpack.c.h.b16 %v21
  %v106 = vunpack.c.l.b16 %v22
  %v107 = vunpack.c.h.b16 %v22
  %v108 = vunpack.c.l.b16 %v23
  %v109 = vunpack.c.h.b16 %v23
  %v110 = vunpack.c.l.b16 %v24
  %v111 = vunpack.c.h.b16 %v24
  %v112 = vunpack.c.l.b16 %v25
  %v113 = vunpack.c.h.b16 %v25
  %v114 = vunpack.c.l.b16 %v26
  %v115 = vunpack.c.h.b16 %v26
  %v116 = vunpack.c.l.b16 %v27
  %v117 = vunpack.c.h.b16 %v27
  %v118 = vunpack.c.l.b16 %v28
  %v119 = vunpack.c.h.b16 %v28
  %v120 = vunpack.c.l.b16 %v29
  %v121 = vunpack.c.h.b16 %v29
  %v122 = vunpack.c.l.b16 %v30
  %v123 = vunpack.c.h.b16 %v30
  %v124 = vunpack.c.l.b16 %v31
  %v125 = vunpack.c.h.b16 %v31
  %v126 = vunpack.c.l.b16 %v32
  %v127 = vunpack.c.h.b16 %v32
  %v128 = vunpack.c.l.b16 %v33
  %v129 = vunpack.c.h.b16 %v33
  %v130 = vunpack.c.l.b16 %v34
  %v131 = vunpack.c.h.b16 %v34
  %v132 = vunpack.c.l.b16 %v35
  %v133 = vunpack.c.h.b16 %v35
  %v134 = vunpack.c.l.b16 %v36
  %v135 = vunpack.c.h.b16 %v36
  %v136 = vunpack.c.l.b16 %v37
  %v137 = vunpack.c.h.b16 %v37
  %v138 = vunpack.c.l.b16 %v38
  %v139 = vunpack.c.h.b16 %v38
  %v140 = vunpack.c.l.b16 %v39
  %v141 = vunpack.c.h.b16 %v39
  %v142 = vunpack.c.l.b16 %v40
  %v143 = vunpack.c.h.b16 %v40
  %v144 = vunpack.c.l.b16 %v41
  %v145 = vunpack.c.h.b16 %v41
  %v146 = vpack.c.b16 %v104, %v98
  %v147 = vpack.c.b16 %v105, %v99
  %v148 = vpack.c.b16 %v106, %v100
  %v149 = vpack.c.b16 %v107, %v101
  %v150 = vpack.c.b16 %v108, %v102
  %v151 = vpack.c.b16 %v109, %v103
  %v152 = vpack.c.b16 %v116, %v110
  %v153 = vpack.c.b16 %v117, %v111
  %v154 = vpack.c.b16 %v118, %v112
  %v155 = vpack.c.b16 %v119, %v113
  %v156 = vpack.c.b16 %v120, %v114
  %v157 = vpack.c.b16 %v121, %v115
  %v158 = vpack.c.b16 %v128, %v122
  %v159 = vpack.c.b16 %v129, %v123
  %v160 = vpack.c.b16 %v130, %v124
  %v161 = vpack.c.b16 %v131, %v125
  %v162 = vpack.c.b16 %v132, %v126
  %v163 = vpack.c.b16 %v133, %v127
  %v164 = vpack.c.b16 %v140, %v134
  %v165 = vpack.c.b16 %v141, %v135
  %v166 = vpack.c.b16 %v142, %v136
  %v167 = vpack.c.b16 %v143, %v137
  %v168 = vpack.c.b16 %v144, %v138
  %v169 = vpack.c.b16 %v145, %v139
  %vm194 = vcmask 523264
  %v196 = vsel %vm194, %v17, 0
  %198 = vmatprep.subr.bf16.mxu0 %v147
  %199 = vmatpush1.bf16.msra.mxu0 %v146
  %200 = vmatprep.subr.bf16.mxu0 %v153
  %201 = vmatpush1.bf16.msra.mxu0 %v152
  %202 = vmatprep.subr.bf16.mxu0 %v159
  %203 = vmatpush1.bf16.msra.mxu0 %v158
  %204 = vmatprep.subr.bf16.mxu0 %v165
  %205 = vmatpush1.bf16.msra.mxu0 %v164
  %206 = vmatprep.subr.bf16.mxu0 0
  %207 = vmatpush1.bf16.msra.mxu0 0
  %208 = vmatprep.subr.bf16.mxu0 0
  %209 = vmatpush1.bf16.msra.mxu0 0
  %210 = vmatprep.subr.bf16.mxu0 0
  %211 = vmatpush1.bf16.msra.mxu0 0
  %212 = vmatprep.subr.bf16.mxu0 0
  %213 = vmatpush1.bf16.msra.mxu0 0
  %214 = vmatprep.subr.bf16.mxu0 0
  %215 = vmatpush1.bf16.msra.mxu0 0
  %216 = vmatprep.subr.bf16.mxu0 0
  %217 = vmatpush1.bf16.msra.mxu0 0
  %218 = vmatprep.subr.bf16.mxu0 0
  %219 = vmatpush1.bf16.msra.mxu0 0
  %220 = vmatprep.subr.bf16.mxu0 0
  %221 = vmatpush1.bf16.msra.mxu0 0
  %222 = vmatprep.subr.bf16.mxu0 0
  %223 = vmatpush1.bf16.msra.mxu0 0
  %224 = vmatprep.subr.bf16.mxu0 0
  %225 = vmatpush1.bf16.msra.mxu0 0
  %226 = vmatprep.subr.bf16.mxu0 0
  %227 = vmatpush1.bf16.msra.mxu0 0
  %228 = vmatprep.subr.bf16.mxu0 0
  %229 = vmatpush1.bf16.msra.mxu0 0
  %230 = vmatprep.mubr.bf16.mxu0 0
  %231 = vmatmul.mubr.bf16.gmra.mrb[0].mxu0 %v196
  %v232 = vpop.f32.mrb[0].mxu0
  %v233 = vadd.f32 %v47, %v232
  %v234 = vpop.f32.mrb[0].mxu0
  %v235 = vadd.f32 %v51, %v234
  %v236 = vpop.f32.mrb[0].mxu0
  %v237 = vadd.f32 %v47, %v236
  %v238 = vpop.f32.mrb[0].mxu0
  %v239 = vadd.f32 %v51, %v238
  %240 = vdwg.mxu0
  %241 = vmatprep.subr.bf16.mxu0 %v149
  %242 = vmatpush1.bf16.msra.mxu0 %v148
  %243 = vmatprep.subr.bf16.mxu0 %v155
  %244 = vmatpush1.bf16.msra.mxu0 %v154
  %245 = vmatprep.subr.bf16.mxu0 %v161
  %246 = vmatpush1.bf16.msra.mxu0 %v160
  %247 = vmatprep.subr.bf16.mxu0 %v167
  %248 = vmatpush1.bf16.msra.mxu0 %v166
  %249 = vmatprep.subr.bf16.mxu0 0
  %250 = vmatpush1.bf16.msra.mxu0 0
  %251 = vmatprep.subr.bf16.mxu0 0
  %252 = vmatpush1.bf16.msra.mxu0 0
  %253 = vmatprep.subr.bf16.mxu0 0
  %254 = vmatpush1.bf16.msra.mxu0 0
  %255 = vmatprep.subr.bf16.mxu0 0
  %256 = vmatpush1.bf16.msra.mxu0 0
  %257 = vmatprep.subr.bf16.mxu0 0
  %258 = vmatpush1.bf16.msra.mxu0 0
  %259 = vmatprep.subr.bf16.mxu0 0
  %260 = vmatpush1.bf16.msra.mxu0 0
  %261 = vmatprep.subr.bf16.mxu0 0
  %262 = vmatpush1.bf16.msra.mxu0 0
  %263 = vmatprep.subr.bf16.mxu0 0
  %264 = vmatpush1.bf16.msra.mxu0 0
  %265 = vmatprep.subr.bf16.mxu0 0
  %266 = vmatpush1.bf16.msra.mxu0 0
  %267 = vmatprep.subr.bf16.mxu0 0
  %268 = vmatpush1.bf16.msra.mxu0 0
  %269 = vmatprep.subr.bf16.mxu0 0
  %270 = vmatpush1.bf16.msra.mxu0 0
  %271 = vmatprep.subr.bf16.mxu0 0
  %272 = vmatpush1.bf16.msra.mxu0 0
  %273 = vmatprep.mubr.bf16.mxu0 0
  %274 = vmatmul.mubr.bf16.gmra.mrb[0].mxu0 %v196
  %v275 = vpop.f32.mrb[0].mxu0
  %v276 = vadd.f32 %v55, %v275
  %v277 = vpop.f32.mrb[0].mxu0
  %v278 = vadd.f32 %v59, %v277
  %v279 = vpop.f32.mrb[0].mxu0
  %v280 = vadd.f32 %v55, %v279
  %v281 = vpop.f32.mrb[0].mxu0
  %v282 = vadd.f32 %v59, %v281
  %283 = vdwg.mxu0
  %284 = vmatprep.subr.bf16.mxu0 %v151
  %285 = vmatpush1.bf16.msra.mxu0 %v150
  %286 = vmatprep.subr.bf16.mxu0 %v157
  %287 = vmatpush1.bf16.msra.mxu0 %v156
  %288 = vmatprep.subr.bf16.mxu0 %v163
  %289 = vmatpush1.bf16.msra.mxu0 %v162
  %290 = vmatprep.subr.bf16.mxu0 %v169
  %291 = vmatpush1.bf16.msra.mxu0 %v168
  %292 = vmatprep.subr.bf16.mxu0 0
  %293 = vmatpush1.bf16.msra.mxu0 0
  %294 = vmatprep.subr.bf16.mxu0 0
  %295 = vmatpush1.bf16.msra.mxu0 0
  %296 = vmatprep.subr.bf16.mxu0 0
  %297 = vmatpush1.bf16.msra.mxu0 0
  %298 = vmatprep.subr.bf16.mxu0 0
  %299 = vmatpush1.bf16.msra.mxu0 0
  %300 = vmatprep.subr.bf16.mxu0 0
  %301 = vmatpush1.bf16.msra.mxu0 0
  %302 = vmatprep.subr.bf16.mxu0 0
  %303 = vmatpush1.bf16.msra.mxu0 0
  %304 = vmatprep.subr.bf16.mxu0 0
  %305 = vmatpush1.bf16.msra.mxu0 0
  %306 = vmatprep.subr.bf16.mxu0 0
  %307 = vmatpush1.bf16.msra.mxu0 0
  %308 = vmatprep.subr.bf16.mxu0 0
  %309 = vmatpush1.bf16.msra.mxu0 0
  %310 = vmatprep.subr.bf16.mxu0 0
  %311 = vmatpush1.bf16.msra.mxu0 0
  %312 = vmatprep.subr.bf16.mxu0 0
  %313 = vmatpush1.bf16.msra.mxu0 0
  %314 = vmatprep.subr.bf16.mxu0 0
  %315 = vmatpush1.bf16.msra.mxu0 0
  %316 = vmatprep.mubr.bf16.mxu0 0
  %317 = vmatmul.mubr.bf16.gmra.mrb[0].mxu0 %v196
  %v318 = vpop.f32.mrb[0].mxu0
  %v319 = vadd.f32 %v63, %v318
  %v320 = vpop.f32.mrb[0].mxu0
  %v321 = vadd.f32 %v67, %v320
  %v322 = vpop.f32.mrb[0].mxu0
  %v323 = vadd.f32 %v63, %v322
  %v324 = vpop.f32.mrb[0].mxu0
  %v325 = vadd.f32 %v67, %v324
  %326 = vdwg.mxu0
  %327 = vst [vmem:[%s3] sm:$0xff] %v233
  %328 = vst [vmem:[%s3 + $0x8] sm:$0xff] %v235
  %329 = vst [vmem:[%s3 + $0x10] sm:$0xff] %v276
  %330 = vst [vmem:[%s3 + $0x18] sm:$0xff] %v278
  %331 = vst [vmem:[%s3 + $0x20] sm:$0xff] %v319
  %332 = vst [vmem:[%s3 + $0x28] sm:$0xff] %v321
  %333 = vst [vmem:[%s3 + $0x30] sm:$0xff] %v237
  %334 = vst [vmem:[%s3 + $0x38] sm:$0xff] %v239
  %335 = vst [vmem:[%s3 + $0x40] sm:$0xff] %v280
  %336 = vst [vmem:[%s3 + $0x48] sm:$0xff] %v282
  %337 = vst [vmem:[%s3 + $0x50] sm:$0xff] %v323
  %338 = vst [vmem:[%s3 + $0x58] sm:$0xff] %v325
  // Predicated region
  $region14: #{capsulenet_forward.13} parent=0 // pred_check
    _
  $region15: #{capsulenet_forward.13} parent=0 // pred_check_branch
    %340 = sbr.rel (0) target = $region17
  $region16: #{capsulenet_forward.13} parent=0 // pred_region
    _
  $region17: #{capsulenet_forward.13} parent=0 // pred_fallthru
    _
  // Predicated region
  $region18: #{capsulenet_forward.13} parent=0 // pred_check
    _
  $region19: #{capsulenet_forward.13} parent=0 // pred_check_branch
    %342 = sbr.rel (0) target = $region21
  $region20: #{capsulenet_forward.13} parent=0 // pred_region
    _
  $region21: #{capsulenet_forward.13} parent=0 // pred_fallthru
    _

// kernel: capsulenet_forward.24
$region0: #{capsulenet_forward.24}
  #allocation0 [shape = 'u32[]', space=smem, size = 0x4, offset = 0x4, fixed_abs, tag = 'smem constant byte address 0x4 - core index']
  #allocation1 [shape = 'u32[144,128]{1,0:T(1,128)}', space=vmem, size = 0x12000, scoped, tag = 'internal scratch']
  %s0 = inlined_call_operand.vmem [shape: f32[8,2,256], index: 0, kind: input, shape index: {}]
  %s1 = inlined_call_operand.vmem [shape: f32[1,1,256], index: 1, kind: input, shape index: {}]
  %s2 = inlined_call_operand.vmem [shape: f32[8,1,1], index: 2, kind: input, shape index: {}]
  %s3 = inlined_call_operand.vmem [shape: f32[2,256], index: 3, kind: output, shape index: {0}]
  %s4 = inlined_call_operand.vmem [shape: f32[2,256], index: 4, kind: output, shape index: {1}]
  %s5 = inlined_call_operand.vmem [shape: f32[2,256], index: 5, kind: output, shape index: {2}]
  %6 = xla_tuple %s3, %s4, %s5
  %s7 = sld [smem:[#allocation0]]
  $region38: #{capsulenet_forward.24} parent=0
    _
  %s9 = ssub.s32 1, %s7
  %s10 = scalar_select 0, %s9, %s7
  // Predicated region
  $region2: #{capsulenet_forward.24} parent=0 // pred_check
    _
  $region3: #{capsulenet_forward.24} parent=0 // pred_check_branch
    %12 = sbr.rel (0) target = $region5
  $region4: #{capsulenet_forward.24} parent=0 // pred_region
    _
  $region5: #{capsulenet_forward.24} parent=0 // pred_fallthru
    _
  // Predicated region
  $region6: #{capsulenet_forward.24} parent=0 // pred_check
    _
  $region7: #{capsulenet_forward.24} parent=0 // pred_check_branch
    %14 = sbr.rel (0) target = $region9
  $region8: #{capsulenet_forward.24} parent=0 // pred_region
    _
  $region9: #{capsulenet_forward.24} parent=0 // pred_fallthru
    _
  // Predicated region
  $region10: #{capsulenet_forward.24} parent=0 // pred_check
    _
  $region11: #{capsulenet_forward.24} parent=0 // pred_check_branch
    %16 = sbr.rel (0) target = $region13
  $region12: #{capsulenet_forward.24} parent=0 // pred_region
    _
  $region13: #{capsulenet_forward.24} parent=0 // pred_fallthru
    _
  %v17 = vld [vmem:[%s0] sm:$0xf]
  %v18 = vld [vmem:[%s0 + $0x4] sm:$0xf]
  %v19 = vld [vmem:[%s0 + $0x8] sm:$0xf]
  %v20 = vld [vmem:[%s0 + $0xc] sm:$0xf]
  %v21 = vld [vmem:[%s0 + $0x10] sm:$0xf]
  %v22 = vld [vmem:[%s0 + $0x14] sm:$0xf]
  %v23 = vld [vmem:[%s0 + $0x18] sm:$0xf]
  %v24 = vld [vmem:[%s0 + $0x1c] sm:$0xf]
  %v25 = vld [vmem:[%s1] sm:$0x3]
  %v26 = vld [vmem:[%s2] sm:$0x1]
  %v27 = vld [vmem:[%s2 + $0x1] sm:$0x1]
  %v28 = vld [vmem:[%s2 + $0x2] sm:$0x1]
  %v29 = vld [vmem:[%s2 + $0x3] sm:$0x1]
  %v30 = vld [vmem:[%s2 + $0x4] sm:$0x1]
  %v31 = vld [vmem:[%s2 + $0x5] sm:$0x1]
  %v32 = vld [vmem:[%s2 + $0x6] sm:$0x1]
  %v33 = vld [vmem:[%s2 + $0x7] sm:$0x1]
  %v35 = vlaneseq
  %v36 = vshrl.u32 %v35, 7
  %v37 = vsub.s32 0, %v36
  %v38 = vrot.slane %v25, %v37
  %v39 = vlaneseq
  %v40 = vshrl.u32 %v39, 7
  %v41 = vsub.s32 1, %v40
  %v42 = vrot.slane %v25, %v41
  %v43 = vcombine.low %v38, %v42
  %v45 = vunpack.c.l.s4 1983009808
  %v46 = vunpack.c.0.s8 %v45
  %v47 = vlaneseq
  %v48 = vshrl.u32 %v47, 7
  %v49 = vsub.s32 %v46, %v48
  %v50 = vrot.slane %v43, %v49
  %v52 = vmul.f32 %v17, %v50
  %v53 = vmul.f32 %v18, %v50
  %v54 = vmul.f32 %v19, %v50
  %v55 = vmul.f32 %v20, %v50
  %v56 = vmul.f32 %v21, %v50
  %v57 = vmul.f32 %v22, %v50
  %v58 = vmul.f32 %v23, %v50
  %v59 = vmul.f32 %v24, %v50
  %v69 = vunpack.c.l.s4 1983009808
  %v70 = vunpack.c.0.s8 %v69
  %v71 = vlaneseq
  %v72 = vshrl.u32 %v71, 7
  %v73 = vsub.s32 %v70, %v72
  %v74 = vrot.slane %v52, %v73
  %v75 = vcombine.high %v74, %v74
  %v77 = vunpack.c.l.s4 1983009808
  %v78 = vunpack.c.0.s8 %v77
  %v79 = vlaneseq
  %v80 = vshrl.u32 %v79, 7
  %v81 = vsub.s32 %v78, %v80
  %v82 = vrot.slane %v53, %v81
  %v83 = vcombine.high %v82, %v82
  %v85 = vunpack.c.l.s4 1983009808
  %v86 = vunpack.c.0.s8 %v85
  %v87 = vlaneseq
  %v88 = vshrl.u32 %v87, 7
  %v89 = vsub.s32 %v86, %v88
  %v90 = vrot.slane %v54, %v89
  %v91 = vcombine.high %v90, %v90
  %v93 = vunpack.c.l.s4 1983009808
  %v94 = vunpack.c.0.s8 %v93
  %v95 = vlaneseq
  %v96 = vshrl.u32 %v95, 7
  %v97 = vsub.s32 %v94, %v96
  %v98 = vrot.slane %v55, %v97
  %v99 = vcombine.high %v98, %v98
  %v101 = vunpack.c.l.s4 1983009808
  %v102 = vunpack.c.0.s8 %v101
  %v103 = vlaneseq
  %v104 = vshrl.u32 %v103, 7
  %v105 = vsub.s32 %v102, %v104
  %v106 = vrot.slane %v56, %v105
  %v107 = vcombine.high %v106, %v106
  %v109 = vunpack.c.l.s4 1983009808
  %v110 = vunpack.c.0.s8 %v109
  %v111 = vlaneseq
  %v112 = vshrl.u32 %v111, 7
  %v113 = vsub.s32 %v110, %v112
  %v114 = vrot.slane %v57, %v113
  %v115 = vcombine.high %v114, %v114
  %v117 = vunpack.c.l.s4 1983009808
  %v118 = vunpack.c.0.s8 %v117
  %v119 = vlaneseq
  %v120 = vshrl.u32 %v119, 7
  %v121 = vsub.s32 %v118, %v120
  %v122 = vrot.slane %v58, %v121
  %v123 = vcombine.high %v122, %v122
  %v125 = vunpack.c.l.s4 1983009808
  %v126 = vunpack.c.0.s8 %v125
  %v127 = vlaneseq
  %v128 = vshrl.u32 %v127, 7
  %v129 = vsub.s32 %v126, %v128
  %v130 = vrot.slane %v59, %v129
  %v131 = vcombine.high %v130, %v130
  %vm148 = vcmask 1041408
  %v149 = vsel %vm148, %v74, 0.0
  %v150 = vsel %vm148, %v75, 0.0
  %v151 = vadd.f32 %v149, %v150
  %152 = vadd.xlane.f32.xlu0 %v151
  %v153 = vpop.xlane.xlu0 %152
  %v154 = vsel %vm148, %v82, 0.0
  %v155 = vsel %vm148, %v83, 0.0
  %v156 = vadd.f32 %v154, %v155
  %157 = vadd.xlane.f32.xlu0 %v156
  %v158 = vpop.xlane.xlu0 %157
  %v159 = vsel %vm148, %v90, 0.0
  %v160 = vsel %vm148, %v91, 0.0
  %v161 = vadd.f32 %v159, %v160
  %162 = vadd.xlane.f32.xlu0 %v161
  %v163 = vpop.xlane.xlu0 %162
  %v164 = vsel %vm148, %v98, 0.0
  %v165 = vsel %vm148, %v99, 0.0
  %v166 = vadd.f32 %v164, %v165
  %167 = vadd.xlane.f32.xlu0 %v166
  %v168 = vpop.xlane.xlu0 %167
  %v169 = vsel %vm148, %v106, 0.0
  %v170 = vsel %vm148, %v107, 0.0
  %v171 = vadd.f32 %v169, %v170
  %172 = vadd.xlane.f32.xlu0 %v171
  %v173 = vpop.xlane.xlu0 %172
  %v174 = vsel %vm148, %v114, 0.0
  %v175 = vsel %vm148, %v115, 0.0
  %v176 = vadd.f32 %v174, %v175
  %177 = vadd.xlane.f32.xlu0 %v176
  %v178 = vpop.xlane.xlu0 %177
  %v179 = vsel %vm148, %v122, 0.0
  %v180 = vsel %vm148, %v123, 0.0
  %v181 = vadd.f32 %v179, %v180
  %182 = vadd.xlane.f32.xlu0 %v181
  %v183 = vpop.xlane.xlu0 %182
  %v184 = vsel %vm148, %v130, 0.0
  %v185 = vsel %vm148, %v131, 0.0
  %v186 = vadd.f32 %v184, %v185
  %187 = vadd.xlane.f32.xlu0 %v186
  %v188 = vpop.xlane.xlu0 %187
  %v197 = vlaneseq
  %v198 = vshrl.u32 %v197, 7
  %v199 = vsub.s32 0, %v198
  %v200 = vrot.slane %v26, %v199
  %v201 = vlaneseq
  %v202 = vshrl.u32 %v201, 7
  %v203 = vsub.s32 0, %v202
  %v204 = vrot.slane %v27, %v203
  %v205 = vlaneseq
  %v206 = vshrl.u32 %v205, 7
  %v207 = vsub.s32 0, %v206
  %v208 = vrot.slane %v28, %v207
  %v209 = vlaneseq
  %v210 = vshrl.u32 %v209, 7
  %v211 = vsub.s32 0, %v210
  %v212 = vrot.slane %v29, %v211
  %v213 = vlaneseq
  %v214 = vshrl.u32 %v213, 7
  %v215 = vsub.s32 0, %v214
  %v216 = vrot.slane %v30, %v215
  %v217 = vlaneseq
  %v218 = vshrl.u32 %v217, 7
  %v219 = vsub.s32 0, %v218
  %v220 = vrot.slane %v31, %v219
  %v221 = vlaneseq
  %v222 = vshrl.u32 %v221, 7
  %v223 = vsub.s32 0, %v222
  %v224 = vrot.slane %v32, %v223
  %v225 = vlaneseq
  %v226 = vshrl.u32 %v225, 7
  %v227 = vsub.s32 0, %v226
  %v228 = vrot.slane %v33, %v227
  %v237 = vadd.f32 %v153, %v200
  %v238 = vadd.f32 %v158, %v204
  %v239 = vadd.f32 %v163, %v208
  %v240 = vadd.f32 %v168, %v212
  %v241 = vadd.f32 %v173, %v216
  %v242 = vadd.f32 %v178, %v220
  %v243 = vadd.f32 %v183, %v224
  %v244 = vadd.f32 %v188, %v228
  %v245 = vtanh.pop %v237
  %v246 = vtanh.pop %v238
  %v247 = vtanh.pop %v239
  %v248 = vtanh.pop %v240
  %v249 = vtanh.pop %v241
  %v250 = vtanh.pop %v242
  %v251 = vtanh.pop %v243
  %v252 = vtanh.pop %v244
  %v253 = vmul.f32 %v245, 1.442695
  %v254 = vpow.pop %v253
  %v255 = vmul.f32 %v246, 1.442695
  %v256 = vpow.pop %v255
  %v257 = vmul.f32 %v247, 1.442695
  %v258 = vpow.pop %v257
  %v259 = vmul.f32 %v248, 1.442695
  %v260 = vpow.pop %v259
  %v261 = vmul.f32 %v249, 1.442695
  %v262 = vpow.pop %v261
  %v263 = vmul.f32 %v250, 1.442695
  %v264 = vpow.pop %v263
  %v265 = vmul.f32 %v251, 1.442695
  %v266 = vpow.pop %v265
  %v267 = vmul.f32 %v252, 1.442695
  %v268 = vpow.pop %v267
  %vm269 = vcmask 1024
  %v270 = vsel %vm269, %v254, 0.0
  %v271 = vsel %vm269, %v256, 0.0
  %v272 = vadd.f32 %v270, %v271
  %v273 = vsel %vm269, %v258, 0.0
  %v274 = vadd.f32 %v272, %v273
  %v275 = vsel %vm269, %v260, 0.0
  %v276 = vadd.f32 %v274, %v275
  %v277 = vsel %vm269, %v262, 0.0
  %v278 = vadd.f32 %v276, %v277
  %v279 = vsel %vm269, %v264, 0.0
  %v280 = vadd.f32 %v278, %v279
  %v281 = vsel %vm269, %v266, 0.0
  %v282 = vadd.f32 %v280, %v281
  %v283 = vsel %vm269, %v268, 0.0
  %v284 = vadd.f32 %v282, %v283
  %v285 = vrcp.pop %v284
  %v286 = vmul.f32 %v254, %v285
  %v287 = vmul.f32 %v256, %v285
  %v288 = vmul.f32 %v258, %v285
  %v289 = vmul.f32 %v260, %v285
  %v290 = vmul.f32 %v262, %v285
  %v291 = vmul.f32 %v264, %v285
  %v292 = vmul.f32 %v266, %v285
  %v293 = vmul.f32 %v268, %v285
  %v294 = vadd.f32 %v286, 1e-10
  %v295 = vadd.f32 %v287, 1e-10
  %v296 = vadd.f32 %v288, 1e-10
  %v297 = vadd.f32 %v289, 1e-10
  %v298 = vadd.f32 %v290, 1e-10
  %v299 = vadd.f32 %v291, 1e-10
  %v300 = vadd.f32 %v292, 1e-10
  %v301 = vadd.f32 %v293, 1e-10
  %303 = vset.pattern.permute.xlu0 0
  %304 = vperm.xlu0 %303, %v294
  %v305 = vpop.permute.xlu0 %304
  %308 = vset.pattern.permute.xlu0 0
  %309 = vperm.xlu0 %308, %v295
  %v310 = vpop.permute.xlu0 %309
  %313 = vset.pattern.permute.xlu0 0
  %314 = vperm.xlu0 %313, %v296
  %v315 = vpop.permute.xlu0 %314
  %318 = vset.pattern.permute.xlu0 0
  %319 = vperm.xlu0 %318, %v297
  %v320 = vpop.permute.xlu0 %319
  %323 = vset.pattern.permute.xlu0 0
  %324 = vperm.xlu0 %323, %v298
  %v325 = vpop.permute.xlu0 %324
  %328 = vset.pattern.permute.xlu0 0
  %329 = vperm.xlu0 %328, %v299
  %v330 = vpop.permute.xlu0 %329
  %333 = vset.pattern.permute.xlu0 0
  %334 = vperm.xlu0 %333, %v300
  %v335 = vpop.permute.xlu0 %334
  %338 = vset.pattern.permute.xlu0 0
  %339 = vperm.xlu0 %338, %v301
  %v340 = vpop.permute.xlu0 %339
  %v351 = vunpack.c.l.s4 1983009808
  %v352 = vunpack.c.0.s8 %v351
  %v353 = vlaneseq
  %v354 = vshrl.u32 %v353, 7
  %v355 = vsub.s32 %v352, %v354
  %v356 = vrot.slane %v17, %v355
  %v357 = vcombine.high %v356, %v356
  %v359 = vunpack.c.l.s4 1983009808
  %v360 = vunpack.c.0.s8 %v359
  %v361 = vlaneseq
  %v362 = vshrl.u32 %v361, 7
  %v363 = vsub.s32 %v360, %v362
  %v364 = vrot.slane %v18, %v363
  %v365 = vcombine.high %v364, %v364
  %v367 = vunpack.c.l.s4 1983009808
  %v368 = vunpack.c.0.s8 %v367
  %v369 = vlaneseq
  %v370 = vshrl.u32 %v369, 7
  %v371 = vsub.s32 %v368, %v370
  %v372 = vrot.slane %v19, %v371
  %v373 = vcombine.high %v372, %v372
  %v375 = vunpack.c.l.s4 1983009808
  %v376 = vunpack.c.0.s8 %v375
  %v377 = vlaneseq
  %v378 = vshrl.u32 %v377, 7
  %v379 = vsub.s32 %v376, %v378
  %v380 = vrot.slane %v20, %v379
  %v381 = vcombine.high %v380, %v380
  %v383 = vunpack.c.l.s4 1983009808
  %v384 = vunpack.c.0.s8 %v383
  %v385 = vlaneseq
  %v386 = vshrl.u32 %v385, 7
  %v387 = vsub.s32 %v384, %v386
  %v388 = vrot.slane %v21, %v387
  %v389 = vcombine.high %v388, %v388
  %v391 = vunpack.c.l.s4 1983009808
  %v392 = vunpack.c.0.s8 %v391
  %v393 = vlaneseq
  %v394 = vshrl.u32 %v393, 7
  %v395 = vsub.s32 %v392, %v394
  %v396 = vrot.slane %v22, %v395
  %v397 = vcombine.high %v396, %v396
  %v399 = vunpack.c.l.s4 1983009808
  %v400 = vunpack.c.0.s8 %v399
  %v401 = vlaneseq
  %v402 = vshrl.u32 %v401, 7
  %v403 = vsub.s32 %v400, %v402
  %v404 = vrot.slane %v23, %v403
  %v405 = vcombine.high %v404, %v404
  %v407 = vunpack.c.l.s4 1983009808
  %v408 = vunpack.c.0.s8 %v407
  %v409 = vlaneseq
  %v410 = vshrl.u32 %v409, 7
  %v411 = vsub.s32 %v408, %v410
  %v412 = vrot.slane %v24, %v411
  %v413 = vcombine.high %v412, %v412
  %v430 = vmul.f32 %v305, %v356
  %v431 = vmul.f32 %v305, %v357
  %v432 = vmul.f32 %v310, %v364
  %v433 = vmul.f32 %v310, %v365
  %v434 = vmul.f32 %v315, %v372
  %v435 = vmul.f32 %v315, %v373
  %v436 = vmul.f32 %v320, %v380
  %v437 = vmul.f32 %v320, %v381
  %v438 = vmul.f32 %v325, %v388
  %v439 = vmul.f32 %v325, %v389
  %v440 = vmul.f32 %v330, %v396
  %v441 = vmul.f32 %v330, %v397
  %v442 = vmul.f32 %v335, %v404
  %v443 = vmul.f32 %v335, %v405
  %v444 = vmul.f32 %v340, %v412
  %v445 = vmul.f32 %v340, %v413
  %v446 = vsel %vm148, %v430, 0.0
  %v447 = vsel %vm148, %v432, 0.0
  %v448 = vadd.f32 %v446, %v447
  %v449 = vsel %vm148, %v434, 0.0
  %v450 = vadd.f32 %v448, %v449
  %v451 = vsel %vm148, %v436, 0.0
  %v452 = vadd.f32 %v450, %v451
  %v453 = vsel %vm148, %v438, 0.0
  %v454 = vadd.f32 %v452, %v453
  %v455 = vsel %vm148, %v440, 0.0
  %v456 = vadd.f32 %v454, %v455
  %v457 = vsel %vm148, %v442, 0.0
  %v458 = vadd.f32 %v456, %v457
  %v459 = vsel %vm148, %v444, 0.0
  %v460 = vadd.f32 %v458, %v459
  %v461 = vsel %vm148, %v431, 0.0
  %v462 = vsel %vm148, %v433, 0.0
  %v463 = vadd.f32 %v461, %v462
  %v464 = vsel %vm148, %v435, 0.0
  %v465 = vadd.f32 %v463, %v464
  %v466 = vsel %vm148, %v437, 0.0
  %v467 = vadd.f32 %v465, %v466
  %v468 = vsel %vm148, %v439, 0.0
  %v469 = vadd.f32 %v467, %v468
  %v470 = vsel %vm148, %v441, 0.0
  %v471 = vadd.f32 %v469, %v470
  %v472 = vsel %vm148, %v443, 0.0
  %v473 = vadd.f32 %v471, %v472
  %v474 = vsel %vm148, %v445, 0.0
  %v475 = vadd.f32 %v473, %v474
  %v478 = vcombine.low %v460, %v475
  %v480 = vunpack.c.l.s4 1983009808
  %v481 = vunpack.c.0.s8 %v480
  %v482 = vlaneseq
  %v483 = vshrl.u32 %v482, 7
  %v484 = vsub.s32 %v481, %v483
  %v485 = vrot.slane %v478, %v484
  %487 = vst [vmem:[%s3] sm:$0xf] %v485
  %v488 = vsel %vm148, %v356, 0.0
  %v489 = vsel %vm148, %v364, 0.0
  %v490 = vadd.f32 %v488, %v489
  %v491 = vsel %vm148, %v372, 0.0
  %v492 = vadd.f32 %v490, %v491
  %v493 = vsel %vm148, %v380, 0.0
  %v494 = vadd.f32 %v492, %v493
  %v495 = vsel %vm148, %v388, 0.0
  %v496 = vadd.f32 %v494, %v495
  %v497 = vsel %vm148, %v396, 0.0
  %v498 = vadd.f32 %v496, %v497
  %v499 = vsel %vm148, %v404, 0.0
  %v500 = vadd.f32 %v498, %v499
  %v501 = vsel %vm148, %v412, 0.0
  %v502 = vadd.f32 %v500, %v501
  %v503 = vsel %vm148, %v357, 0.0
  %v504 = vsel %vm148, %v365, 0.0
  %v505 = vadd.f32 %v503, %v504
  %v506 = vsel %vm148, %v373, 0.0
  %v507 = vadd.f32 %v505, %v506
  %v508 = vsel %vm148, %v381, 0.0
  %v509 = vadd.f32 %v507, %v508
  %v510 = vsel %vm148, %v389, 0.0
  %v511 = vadd.f32 %v509, %v510
  %v512 = vsel %vm148, %v397, 0.0
  %v513 = vadd.f32 %v511, %v512
  %v514 = vsel %vm148, %v405, 0.0
  %v515 = vadd.f32 %v513, %v514
  %v516 = vsel %vm148, %v413, 0.0
  %v517 = vadd.f32 %v515, %v516
  %v518 = vrcp.pop 8.0
  %v519 = vmul.f32 %v502, %v518
  %v520 = vmul.f32 %v517, %v518
  %v523 = vcombine.low %v519, %v520
  %v525 = vunpack.c.l.s4 1983009808
  %v526 = vunpack.c.0.s8 %v525
  %v527 = vlaneseq
  %v528 = vshrl.u32 %v527, 7
  %v529 = vsub.s32 %v526, %v528
  %v530 = vrot.slane %v523, %v529
  %532 = vst [vmem:[%s4] sm:$0xf] %v530
  %vm533 = vcmask 1043458
  %vm534 = vmor %vm533, %vm148
  %v535 = vsel %vm534, %v17, -inf
  %v536 = vsel %vm534, %v18, -inf
  %v537 = vsel %vm534, %v19, -inf
  %v538 = vsel %vm534, %v20, -inf
  %v539 = vsel %vm534, %v21, -inf
  %v540 = vmax.f32 %v535, %v539
  %v541 = vsel %vm534, %v22, -inf
  %v542 = vmax.f32 %v536, %v541
  %v543 = vsel %vm534, %v23, -inf
  %v544 = vmax.f32 %v537, %v543
  %v545 = vsel %vm534, %v24, -inf
  %v546 = vmax.f32 %v538, %v545
  %v547 = vmax.f32 %v540, %v542
  %v548 = vmax.f32 %v544, %v546
  %v549 = vmax.f32 %v547, %v548
  %550 = vst [vmem:[%s5] sm:$0xf] %v549
  // Predicated region
  $region14: #{capsulenet_forward.24} parent=0 // pred_check
    _
  $region15: #{capsulenet_forward.24} parent=0 // pred_check_branch
    %552 = sbr.rel (0) target = $region17
  $region16: #{capsulenet_forward.24} parent=0 // pred_region
    _
  $region17: #{capsulenet_forward.24} parent=0 // pred_fallthru
    _
  // Predicated region
  $region18: #{capsulenet_forward.24} parent=0 // pred_check
    _
  $region19: #{capsulenet_forward.24} parent=0 // pred_check_branch
    %554 = sbr.rel (0) target = $region21
  $region20: #{capsulenet_forward.24} parent=0 // pred_region
    _
  $region21: #{capsulenet_forward.24} parent=0 // pred_fallthru
    _
  // Predicated region
  $region22: #{capsulenet_forward.24} parent=0 // pred_check
    _
  $region23: #{capsulenet_forward.24} parent=0 // pred_check_branch
    %556 = sbr.rel (0) target = $region25
  $region24: #{capsulenet_forward.24} parent=0 // pred_region
    _
  $region25: #{capsulenet_forward.24} parent=0 // pred_fallthru
    _
  // Predicated region
  $region26: #{capsulenet_forward.24} parent=0 // pred_check
    _
  $region27: #{capsulenet_forward.24} parent=0 // pred_check_branch
    %558 = sbr.rel (0) target = $region29
  $region28: #{capsulenet_forward.24} parent=0 // pred_region
    _
  $region29: #{capsulenet_forward.24} parent=0 // pred_fallthru
    _
  // Predicated region
  $region30: #{capsulenet_forward.24} parent=0 // pred_check
    _
  $region31: #{capsulenet_forward.24} parent=0 // pred_check_branch
    %560 = sbr.rel (0) target = $region33
  $region32: #{capsulenet_forward.24} parent=0 // pred_region
    _
  $region33: #{capsulenet_forward.24} parent=0 // pred_fallthru
    _
  // Predicated region
  $region34: #{capsulenet_forward.24} parent=0 // pred_check
    _
  $region35: #{capsulenet_forward.24} parent=0 // pred_check_branch
    %562 = sbr.rel (0) target = $region37
  $region36: #{capsulenet_forward.24} parent=0 // pred_region
    _
  $region37: #{capsulenet_forward.24} parent=0 // pred_fallthru
    _

// kernel: capsulenet_forward.14
$region0: #{capsulenet_forward.14}
  #allocation0 [shape = 'u32[]', space=smem, size = 0x4, offset = 0x4, fixed_abs, tag = 'smem constant byte address 0x4 - core index']
  #allocation1 [shape = 'u32[144,128]{1,0:T(1,128)}', space=vmem, size = 0x12000, scoped, tag = 'internal scratch']
  #allocation2 [shape = 'f32[2,128]{1,0:T(2,128)}', space=vmem, size = 0x400, scoped, tag = 'scratch operand']
  #allocation3 [shape = 'f32[2,128]{1,0:T(2,128)}', space=vmem, size = 0x400, scoped, tag = 'scratch operand']
  %s0 = inlined_call_operand.vmem [shape: f32[8,2,768], index: 0, kind: input, shape index: {}, may-alias: {0,1}]
  %s1 = inlined_call_operand.vmem [shape: f32[8,2,768], index: 1, kind: input, shape index: {}, may-alias: {0,1}]
  %s2 = inlined_call_operand.vmem [shape: bf16[128,384], index: 2, kind: input, shape index: {}]
  %s3 = inlined_call_operand.vmem [shape: bf16[128,384], index: 3, kind: input, shape index: {}]
  %s4 = inlined_call_operand.vmem [shape: f32[1,128], index: 4, kind: input, shape index: {}]
  %s5 = inlined_call_operand.vmem [shape: f32[1,128], index: 5, kind: input, shape index: {}]
  %s6 = inlined_call_operand.vmem [shape: f32[8,2,128], index: 6, kind: output, shape index: {0}]
  %s7 = inlined_call_operand.vmem [shape: f32[8,2,128], index: 7, kind: output, shape index: {1}]
  %8 = xla_tuple %s6, %s7
  %s9 = sld [smem:[#allocation0]]
  $region69: #{capsulenet_forward.14} parent=0
    _
  %s11 = ssub.s32 1, %s9
  %s12 = scalar_select 0, %s11, %s9
  loop: start=0, step=1, limit=10
  $region2: #{capsulenet_forward.14} parent=0 // loop_pre_header
    _
  $region3: #{capsulenet_forward.14} parent=0 // loop_header
    %s14 = sphi 0, %s18
    %p15 = scmp.ge.s32.totalorder %s14, 10
    %s24 = sphi 0, %s26
    %s27 = sphi 0, %s24
    %s28 = sphi 0, %s27
    %s44 = sphi 0, %s28
    %s52 = sphi 0, %s54
    %s55 = sphi 0, %s52
    %s56 = sphi 0, %s55
    %s72 = sphi 0, %s56
    %s76 = sphi 0, %s76
    %s78 = sphi 0, %s76
    %s79 = sphi 0, %s78
    %s93 = sphi 0, %s79
    %s97 = sphi 0, %s97
    %s99 = sphi 0, %s97
    %s100 = sphi 0, %s99
    %s114 = sphi 0, %s100
    %s118 = sphi 0, %s118
    %s120 = sphi 0, %s118
    %s121 = sphi 0, %s120
    %s135 = sphi 0, %s121
    %s139 = sphi 0, %s139
    %s141 = sphi 0, %s139
    %s142 = sphi 0, %s141
    %s156 = sphi 0, %s142
    %s162 = sphi 0, %s164
    %s165 = sphi 0, %s162
    %s166 = sphi 0, %s165
    %s182 = sphi 0, %s166
    %s190 = sphi 0, %s192
    %s193 = sphi 0, %s190
    %s194 = sphi 0, %s193
    %s210 = sphi 0, %s194
  $region4: #{capsulenet_forward.14} parent=0 // loop_header_branch
    %17 = sbr.rel (%p15) target = $region8
  $region5: #{capsulenet_forward.14} parent=0 // loop_body
    %s19 = ssub.s32 %s14, 1
    %s20 = ssub.s32 %s14, 2
    %s21 = sadd.s32 %s14, 1
    %s22 = ssub.s32 %s14, %s21
    %p23 = scmp.eq.s32.totalorder %s22, 0
    %s25 = sadd.s32 %s24, 1
    %s26 = scalar_select %p23, %s24, %s25
    %p29 = pneg %p23
    %p30 = scmp.eq.s32.totalorder %s14, 7
    %p31 = por %p29, %p30
    %p32 = scmp.ne.s32.totalorder %s24, %s27
    %p33 = scmp.eq.s32.totalorder %s14, 0
    %p34 = por %p32, %p33
    %p35 = scmp.ne.s32.totalorder %s24, %s27
    %p36 = scmp.eq.s32.totalorder %s19, 7
    %p37 = por %p35, %p36
    %p38 = scmp.ne.s32.totalorder %s27, %s28
    %p39 = scmp.eq.s32.totalorder %s19, 0
    %p40 = por %p38, %p39
    %p41 = scmp.ne.s32.totalorder %s27, %s28
    %p42 = scmp.eq.s32.totalorder %s20, 7
    %p43 = por %p41, %p42
    %p45 = scmp.ne.s32.totalorder %s28, %s44
    %p46 = scmp.eq.s32.totalorder %s20, 0
    %p47 = por %p45, %p46
    %s48 = ssub.s32 7, %s14
    %s49 = ssub.s32 7, %s21
    %s50 = ssub.s32 %s48, %s49
    %p51 = scmp.eq.s32.totalorder %s50, 0
    %s53 = sadd.s32 %s52, 1
    %s54 = scalar_select %p51, %s52, %s53
    %p57 = pneg %p51
    %p58 = scmp.eq.s32.totalorder %s14, 7
    %p59 = por %p57, %p58
    %p60 = scmp.ne.s32.totalorder %s52, %s55
    %p61 = scmp.eq.s32.totalorder %s14, 0
    %p62 = por %p60, %p61
    %p63 = scmp.ne.s32.totalorder %s52, %s55
    %p64 = scmp.eq.s32.totalorder %s19, 7
    %p65 = por %p63, %p64
    %p66 = scmp.ne.s32.totalorder %s55, %s56
    %p67 = scmp.eq.s32.totalorder %s19, 0
    %p68 = por %p66, %p67
    %p69 = scmp.ne.s32.totalorder %s55, %s56
    %p70 = scmp.eq.s32.totalorder %s20, 7
    %p71 = por %p69, %p70
    %p73 = scmp.ne.s32.totalorder %s56, %s72
    %p74 = scmp.eq.s32.totalorder %s20, 0
    %p75 = por %p73, %p74
    %s77 = sadd.s32 %s76, 1
    %p80 = scmp.eq.s32.totalorder %s14, 7
    %p81 = scmp.ne.s32.totalorder %s76, %s78
    %p82 = scmp.eq.s32.totalorder %s14, 0
    %p83 = por %p81, %p82
    %p84 = scmp.ne.s32.totalorder %s76, %s78
    %p85 = scmp.eq.s32.totalorder %s19, 7
    %p86 = por %p84, %p85
    %p87 = scmp.ne.s32.totalorder %s78, %s79
    %p88 = scmp.eq.s32.totalorder %s19, 0
    %p89 = por %p87, %p88
    %p90 = scmp.ne.s32.totalorder %s78, %s79
    %p91 = scmp.eq.s32.totalorder %s20, 7
    %p92 = por %p90, %p91
    %p94 = scmp.ne.s32.totalorder %s79, %s93
    %p95 = scmp.eq.s32.totalorder %s20, 0
    %p96 = por %p94, %p95
    %s98 = sadd.s32 %s97, 1
    %p101 = scmp.eq.s32.totalorder %s14, 7
    %p102 = scmp.ne.s32.totalorder %s97, %s99
    %p103 = scmp.eq.s32.totalorder %s14, 0
    %p104 = por %p102, %p103
    %p105 = scmp.ne.s32.totalorder %s97, %s99
    %p106 = scmp.eq.s32.totalorder %s19, 7
    %p107 = por %p105, %p106
    %p108 = scmp.ne.s32.totalorder %s99, %s100
    %p109 = scmp.eq.s32.totalorder %s19, 0
    %p110 = por %p108, %p109
    %p111 = scmp.ne.s32.totalorder %s99, %s100
    %p112 = scmp.eq.s32.totalorder %s20, 7
    %p113 = por %p111, %p112
    %p115 = scmp.ne.s32.totalorder %s100, %s114
    %p116 = scmp.eq.s32.totalorder %s20, 0
    %p117 = por %p115, %p116
    %s119 = sadd.s32 %s118, 1
    %p122 = scmp.eq.s32.totalorder %s14, 7
    %p123 = scmp.ne.s32.totalorder %s118, %s120
    %p124 = scmp.eq.s32.totalorder %s14, 0
    %p125 = por %p123, %p124
    %p126 = scmp.ne.s32.totalorder %s118, %s120
    %p127 = scmp.eq.s32.totalorder %s19, 7
    %p128 = por %p126, %p127
    %p129 = scmp.ne.s32.totalorder %s120, %s121
    %p130 = scmp.eq.s32.totalorder %s19, 0
    %p131 = por %p129, %p130
    %p132 = scmp.ne.s32.totalorder %s120, %s121
    %p133 = scmp.eq.s32.totalorder %s20, 7
    %p134 = por %p132, %p133
    %p136 = scmp.ne.s32.totalorder %s121, %s135
    %p137 = scmp.eq.s32.totalorder %s20, 0
    %p138 = por %p136, %p137
    %s140 = sadd.s32 %s139, 1
    %p143 = scmp.eq.s32.totalorder %s14, 7
    %p144 = scmp.ne.s32.totalorder %s139, %s141
    %p145 = scmp.eq.s32.totalorder %s14, 0
    %p146 = por %p144, %p145
    %p147 = scmp.ne.s32.totalorder %s139, %s141
    %p148 = scmp.eq.s32.totalorder %s19, 7
    %p149 = por %p147, %p148
    %p150 = scmp.ne.s32.totalorder %s141, %s142
    %p151 = scmp.eq.s32.totalorder %s19, 0
    %p152 = por %p150, %p151
    %p153 = scmp.ne.s32.totalorder %s141, %s142
    %p154 = scmp.eq.s32.totalorder %s20, 7
    %p155 = por %p153, %p154
    %p157 = scmp.ne.s32.totalorder %s142, %s156
    %p158 = scmp.eq.s32.totalorder %s20, 0
    %p159 = por %p157, %p158
    %s160 = ssub.s32 %s14, %s21
    %p161 = scmp.eq.s32.totalorder %s160, 0
    %s163 = sadd.s32 %s162, 1
    %s164 = scalar_select %p161, %s162, %s163
    %p167 = pneg %p161
    %p168 = scmp.eq.s32.totalorder %s14, 7
    %p169 = por %p167, %p168
    %p170 = scmp.ne.s32.totalorder %s162, %s165
    %p171 = scmp.eq.s32.totalorder %s14, 0
    %p172 = por %p170, %p171
    %p173 = scmp.ne.s32.totalorder %s162, %s165
    %p174 = scmp.eq.s32.totalorder %s19, 7
    %p175 = por %p173, %p174
    %p176 = scmp.ne.s32.totalorder %s165, %s166
    %p177 = scmp.eq.s32.totalorder %s19, 0
    %p178 = por %p176, %p177
    %p179 = scmp.ne.s32.totalorder %s165, %s166
    %p180 = scmp.eq.s32.totalorder %s20, 7
    %p181 = por %p179, %p180
    %p183 = scmp.ne.s32.totalorder %s166, %s182
    %p184 = scmp.eq.s32.totalorder %s20, 0
    %p185 = por %p183, %p184
    %s186 = ssub.s32 7, %s14
    %s187 = ssub.s32 7, %s21
    %s188 = ssub.s32 %s186, %s187
    %p189 = scmp.eq.s32.totalorder %s188, 0
    %s191 = sadd.s32 %s190, 1
    %s192 = scalar_select %p189, %s190, %s191
    %p195 = pneg %p189
    %p196 = scmp.eq.s32.totalorder %s14, 7
    %p197 = por %p195, %p196
    %p198 = scmp.ne.s32.totalorder %s190, %s193
    %p199 = scmp.eq.s32.totalorder %s14, 0
    %p200 = por %p198, %p199
    %p201 = scmp.ne.s32.totalorder %s190, %s193
    %p202 = scmp.eq.s32.totalorder %s19, 7
    %p203 = por %p201, %p202
    %p204 = scmp.ne.s32.totalorder %s193, %s194
    %p205 = scmp.eq.s32.totalorder %s19, 0
    %p206 = por %p204, %p205
    %p207 = scmp.ne.s32.totalorder %s193, %s194
    %p208 = scmp.eq.s32.totalorder %s20, 7
    %p209 = por %p207, %p208
    %p211 = scmp.ne.s32.totalorder %s194, %s210
    %p212 = scmp.eq.s32.totalorder %s20, 0
    %p213 = por %p211, %p212
    %p214 = scmp.le.s32.totalorder 1, %s14
    %p215 = scmp.lt.s32.totalorder %s14, 9
    %p216 = pnand %p214, %p215
    %p217 = pneg %p216
    // Predicated region
    $region9: #{capsulenet_forward.14} parent=5 // pred_check
      _
    $region10: #{capsulenet_forward.14} parent=5 // pred_check_branch
      %219 = sbr.rel (%p216) target = $region12
    $region11: #{capsulenet_forward.14} parent=5 // pred_region
      %s220 = ssub.s32 %s14, 1
      // Predicated region
      $region13: #{capsulenet_forward.14} parent=11 // pred_check
        %p221 = pneg %p89
      $region14: #{capsulenet_forward.14} parent=11 // pred_check_branch
        %223 = sbr.rel (%p221) target = $region16
      $region15: #{capsulenet_forward.14} parent=11 // pred_region
        _
      $region16: #{capsulenet_forward.14} parent=11 // pred_fallthru
        _
      // Predicated region
      $region17: #{capsulenet_forward.14} parent=11 // pred_check
        %p224 = pneg %p110
      $region18: #{capsulenet_forward.14} parent=11 // pred_check_branch
        %226 = sbr.rel (%p224) target = $region20
      $region19: #{capsulenet_forward.14} parent=11 // pred_region
        _
      $region20: #{capsulenet_forward.14} parent=11 // pred_fallthru
        _
      // Predicated region
      $region21: #{capsulenet_forward.14} parent=11 // pred_check
        %p227 = pneg %p131
      $region22: #{capsulenet_forward.14} parent=11 // pred_check_branch
        %229 = sbr.rel (%p227) target = $region24
      $region23: #{capsulenet_forward.14} parent=11 // pred_region
        _
      $region24: #{capsulenet_forward.14} parent=11 // pred_fallthru
        _
      // Predicated region
      $region25: #{capsulenet_forward.14} parent=11 // pred_check
        %p230 = pneg %p152
      $region26: #{capsulenet_forward.14} parent=11 // pred_check_branch
        %232 = sbr.rel (%p230) target = $region28
      $region27: #{capsulenet_forward.14} parent=11 // pred_region
        _
      $region28: #{capsulenet_forward.14} parent=11 // pred_fallthru
        _
    $region12: #{capsulenet_forward.14} parent=5 // pred_fallthru
      _
    %p233 = scmp.lt.s32.totalorder %s14, 8
    // Predicated region
    $region29: #{capsulenet_forward.14} parent=5 // pred_check
      %p234 = pneg %p233
    $region30: #{capsulenet_forward.14} parent=5 // pred_check_branch
      %236 = sbr.rel (%p234) target = $region32
    $region31: #{capsulenet_forward.14} parent=5 // pred_region
      // Predicated region
      $region33: #{capsulenet_forward.14} parent=31 // pred_check
        %p237 = pneg %p34
      $region34: #{capsulenet_forward.14} parent=31 // pred_check_branch
        %239 = sbr.rel (%p237) target = $region36
      $region35: #{capsulenet_forward.14} parent=31 // pred_region
        %p240 = scmp.lt.s32.totalorder %s14, 7
        %s241 = scalar_select %p240, %s14, 7
        %s242 = smul.addr %s241, 6
        %s243 = smul.addr %s242, 2
        %s244 = scalar_lea.vmem %s0, %s243
      $region36: #{capsulenet_forward.14} parent=31 // pred_fallthru
        _
      // Predicated region
      $region37: #{capsulenet_forward.14} parent=31 // pred_check
        %p245 = pneg %p62
      $region38: #{capsulenet_forward.14} parent=31 // pred_check_branch
        %247 = sbr.rel (%p245) target = $region40
      $region39: #{capsulenet_forward.14} parent=31 // pred_region
        %s248 = ssub.s32 7, %s14
        %p249 = scmp.lt.s32.totalorder %s248, 7
        %s250 = scalar_select %p249, %s248, 7
        %s251 = smul.addr %s250, 6
        %s252 = sadd.s32 3, %s251
        %s253 = smul.addr %s252, 2
        %s254 = scalar_lea.vmem %s1, %s253
        %s255 = ssub.s32 7, %s14
      $region40: #{capsulenet_forward.14} parent=31 // pred_fallthru
        _
    $region32: #{capsulenet_forward.14} parent=5 // pred_fallthru
      _
    %p256 = scmp.le.s32.totalorder 1, %s14
    %p257 = scmp.lt.s32.totalorder %s14, 9
    %p258 = pnand %p256, %p257
    %p259 = pneg %p258
    // Predicated region
    $region41: #{capsulenet_forward.14} parent=5 // pred_check
      _
    $region42: #{capsulenet_forward.14} parent=5 // pred_check_branch
      %261 = sbr.rel (%p258) target = $region44
    $region43: #{capsulenet_forward.14} parent=5 // pred_region
      %s262 = ssub.s32 %s14, 1
      %p263 = scmp.lt.s32.totalorder %s19, 7
      %s264 = scalar_select %p263, %s19, 7
      %s265 = smul.addr %s264, 6
      %s266 = smul.addr %s265, 2
      %s267 = scalar_lea.vmem %s0, %s266
      %p268 = pneg %p40
      %p269 = pneg %p37
      %s270 = ssub.s32 7, %s19
      %p271 = scmp.lt.s32.totalorder %s270, 7
      %s272 = scalar_select %p271, %s270, 7
      %s273 = smul.addr %s272, 6
      %s274 = sadd.s32 3, %s273
      %s275 = smul.addr %s274, 2
      %s276 = scalar_lea.vmem %s1, %s275
      %p277 = pneg %p68
      %p278 = pneg %p65
      %p279 = pneg %p89
      %p280 = pneg %p86
      %p281 = pneg %p110
      %p282 = pneg %p107
      %p283 = pneg %p131
      %p284 = pneg %p128
      %p285 = pneg %p152
      %p286 = pneg %p149
      %p287 = pneg %p178
      %p288 = pneg %p175
      %p289 = scmp.lt.s32.totalorder %s19, 7
      %s290 = scalar_select %p289, %s19, 7
      %s291 = smul.addr %s290, 2
      %s292 = scalar_lea.vmem %s6, %s291
      %p293 = pneg %p206
      %p294 = pneg %p203
      %s295 = ssub.s32 7, %s19
      %p296 = scmp.lt.s32.totalorder %s295, 7
      %s297 = scalar_select %p296, %s295, 7
      %s298 = smul.addr %s297, 2
      %s299 = scalar_lea.vmem %s7, %s298
      %p300 = scmp.lt.s32.totalorder %s19, 7
      %s301 = scalar_select %p300, %s19, 7
      %s302 = smul.addr %s301, 6
      %s303 = smul.addr %s302, 2
      %s304 = scalar_lea.vmem %s0, %s303
      %s305 = ssub.s32 7, %s19
      %p306 = scmp.lt.s32.totalorder %s305, 7
      %s307 = scalar_select %p306, %s305, 7
      %s308 = smul.addr %s307, 6
      %s309 = sadd.s32 3, %s308
      %s310 = smul.addr %s309, 2
      %s311 = scalar_lea.vmem %s1, %s310
      %s312 = ssub.s32 7, %s19
      %p313 = scmp.lt.s32.totalorder %s19, 7
      %s314 = scalar_select %p313, %s19, 7
      %s315 = smul.addr %s314, 2
      %s316 = scalar_lea.vmem %s6, %s315
      %s317 = ssub.s32 7, %s19
      %p318 = scmp.lt.s32.totalorder %s317, 7
      %s319 = scalar_select %p318, %s317, 7
      %s320 = smul.addr %s319, 2
      %s321 = scalar_lea.vmem %s7, %s320
      %s322 = ssub.s32 7, %s19
      %p324 = scmp.eq.s32.totalorder %s19, 0
      // Predicated region
      $region45: #{capsulenet_forward.14} parent=43 // pred_check
        %p325 = pneg %p324
      $region46: #{capsulenet_forward.14} parent=43 // pred_check_branch
        %327 = sbr.rel (%p325) target = $region48
      $region47: #{capsulenet_forward.14} parent=43 // pred_region
        %328 = vst [vmem:[#allocation2] sm:$0x3] 0.0
        %329 = vst [vmem:[#allocation3] sm:$0x3] 0.0
      $region48: #{capsulenet_forward.14} parent=43 // pred_fallthru
        _
      %v330 = vld [vmem:[%s304] sm:$0x3f]
      %v331 = vld [vmem:[#allocation2] sm:$0x3]
      %v332 = vpack.c.bf16 %v331, %v331
      %v333 = vld [vmem:[%s2] sm:$0xff]
      %v334 = vld [vmem:[%s2 + $0x8] sm:$0xf]
      %v335 = vld [vmem:[%s2 + $0xc] sm:$0xff]
      %v336 = vld [vmem:[%s2 + $0x14] sm:$0xf]
      %v337 = vld [vmem:[%s2 + $0x18] sm:$0xff]
      %v338 = vld [vmem:[%s2 + $0x20] sm:$0xf]
      %v339 = vld [vmem:[%s2 + $0x24] sm:$0xff]
      %v340 = vld [vmem:[%s2 + $0x2c] sm:$0xf]
      %v341 = vld [vmem:[%s2 + $0x30] sm:$0xff]
      %v342 = vld [vmem:[%s2 + $0x38] sm:$0xf]
      %v343 = vld [vmem:[%s2 + $0x3c] sm:$0xff]
      %v344 = vld [vmem:[%s2 + $0x44] sm:$0xf]
      %v345 = vld [vmem:[%s2 + $0x48] sm:$0xff]
      %v346 = vld [vmem:[%s2 + $0x50] sm:$0xf]
      %v347 = vld [vmem:[%s2 + $0x54] sm:$0xff]
      %v348 = vld [vmem:[%s2 + $0x5c] sm:$0xf]
      %v349 = vld [vmem:[%s2 + $0x60] sm:$0xff]
      %v350 = vld [vmem:[%s2 + $0x68] sm:$0xf]
      %v351 = vld [vmem:[%s2 + $0x6c] sm:$0xff]
      %v352 = vld [vmem:[%s2 + $0x74] sm:$0xf]
      %v353 = vld [vmem:[%s2 + $0x78] sm:$0xff]
      %v354 = vld [vmem:[%s2 + $0x80] sm:$0xf]
      %v355 = vld [vmem:[%s2 + $0x84] sm:$0xff]
      %v356 = vld [vmem:[%s2 + $0x8c] sm:$0xf]
      %v357 = vld [vmem:[%s2 + $0x90] sm:$0xff]
      %v358 = vld [vmem:[%s2 + $0x98] sm:$0xf]
      %v359 = vld [vmem:[%s2 + $0x9c] sm:$0xff]
      %v360 = vld [vmem:[%s2 + $0xa4] sm:$0xf]
      %v361 = vld [vmem:[%s2 + $0xa8] sm:$0xff]
      %v362 = vld [vmem:[%s2 + $0xb0] sm:$0xf]
      %v363 = vld [vmem:[%s2 + $0xb4] sm:$0xff]
      %v364 = vld [vmem:[%s2 + $0xbc] sm:$0xf]
      %v397 = vunpack.c.l.b16 %v333
      %v398 = vunpack.c.h.b16 %v333
      %v399 = vunpack.c.l.b16 %v334
      %v400 = vunpack.c.l.b16 %v335
      %v401 = vunpack.c.h.b16 %v335
      %v402 = vunpack.c.l.b16 %v336
      %v403 = vunpack.c.l.b16 %v337
      %v404 = vunpack.c.h.b16 %v337
      %v405 = vunpack.c.l.b16 %v338
      %v406 = vunpack.c.l.b16 %v339
      %v407 = vunpack.c.h.b16 %v339
      %v408 = vunpack.c.l.b16 %v340
      %v409 = vunpack.c.l.b16 %v341
      %v410 = vunpack.c.h.b16 %v341
      %v411 = vunpack.c.l.b16 %v342
      %v412 = vunpack.c.l.b16 %v343
      %v413 = vunpack.c.h.b16 %v343
      %v414 = vunpack.c.l.b16 %v344
      %v415 = vunpack.c.l.b16 %v345
      %v416 = vunpack.c.h.b16 %v345
      %v417 = vunpack.c.l.b16 %v346
      %v418 = vunpack.c.l.b16 %v347
      %v419 = vunpack.c.h.b16 %v347
      %v420 = vunpack.c.l.b16 %v348
      %v421 = vunpack.c.l.b16 %v349
      %v422 = vunpack.c.h.b16 %v349
      %v423 = vunpack.c.l.b16 %v350
      %v424 = vunpack.c.l.b16 %v351
      %v425 = vunpack.c.h.b16 %v351
      %v426 = vunpack.c.l.b16 %v352
      %v427 = vunpack.c.l.b16 %v353
      %v428 = vunpack.c.h.b16 %v353
      %v429 = vunpack.c.l.b16 %v354
      %v430 = vunpack.c.l.b16 %v355
      %v431 = vunpack.c.h.b16 %v355
      %v432 = vunpack.c.l.b16 %v356
      %v433 = vunpack.c.l.b16 %v357
      %v434 = vunpack.c.h.b16 %v357
      %v435 = vunpack.c.l.b16 %v358
      %v436 = vunpack.c.l.b16 %v359
      %v437 = vunpack.c.h.b16 %v359
      %v438 = vunpack.c.l.b16 %v360
      %v439 = vunpack.c.l.b16 %v361
      %v440 = vunpack.c.h.b16 %v361
      %v441 = vunpack.c.l.b16 %v362
      %v442 = vunpack.c.l.b16 %v363
      %v443 = vunpack.c.h.b16 %v363
      %v444 = vunpack.c.l.b16 %v364
      %v445 = vpack.c.b16 %v400, %v397
      %v446 = vpack.c.b16 %v401, %v398
      %v447 = vpack.c.b16 %v402, %v399
      %v448 = vpack.c.b16 %v406, %v403
      %v449 = vpack.c.b16 %v407, %v404
      %v450 = vpack.c.b16 %v408, %v405
      %v451 = vpack.c.b16 %v412, %v409
      %v452 = vpack.c.b16 %v413, %v410
      %v453 = vpack.c.b16 %v414, %v411
      %v454 = vpack.c.b16 %v418, %v415
      %v455 = vpack.c.b16 %v419, %v416
      %v456 = vpack.c.b16 %v420, %v417
      %v457 = vpack.c.b16 %v424, %v421
      %v458 = vpack.c.b16 %v425, %v422
      %v459 = vpack.c.b16 %v426, %v423
      %v460 = vpack.c.b16 %v430, %v427
      %v461 = vpack.c.b16 %v431, %v428
      %v462 = vpack.c.b16 %v432, %v429
      %v463 = vpack.c.b16 %v436, %v433
      %v464 = vpack.c.b16 %v437, %v434
      %v465 = vpack.c.b16 %v438, %v435
      %v466 = vpack.c.b16 %v442, %v439
      %v467 = vpack.c.b16 %v443, %v440
      %v468 = vpack.c.b16 %v444, %v441
      %493 = vmatprep.subr.bf16.mxu0 %v446
      %494 = vmatpush1.bf16.msra.mxu0 %v445
      %495 = vmatprep.subr.bf16.mxu0 %v449
      %496 = vmatpush1.bf16.msra.mxu0 %v448
      %497 = vmatprep.subr.bf16.mxu0 %v452
      %498 = vmatpush1.bf16.msra.mxu0 %v451
      %499 = vmatprep.subr.bf16.mxu0 %v455
      %500 = vmatpush1.bf16.msra.mxu0 %v454
      %501 = vmatprep.subr.bf16.mxu0 %v458
      %502 = vmatpush1.bf16.msra.mxu0 %v457
      %503 = vmatprep.subr.bf16.mxu0 %v461
      %504 = vmatpush1.bf16.msra.mxu0 %v460
      %505 = vmatprep.subr.bf16.mxu0 %v464
      %506 = vmatpush1.bf16.msra.mxu0 %v463
      %507 = vmatprep.subr.bf16.mxu0 %v467
      %508 = vmatpush1.bf16.msra.mxu0 %v466
      %509 = vmatprep.subr.bf16.mxu0 0
      %510 = vmatpush1.bf16.msra.mxu0 0
      %511 = vmatprep.subr.bf16.mxu0 0
      %512 = vmatpush1.bf16.msra.mxu0 0
      %513 = vmatprep.subr.bf16.mxu0 0
      %514 = vmatpush1.bf16.msra.mxu0 0
      %515 = vmatprep.subr.bf16.mxu0 0
      %516 = vmatpush1.bf16.msra.mxu0 0
      %517 = vmatprep.subr.bf16.mxu0 0
      %518 = vmatpush1.bf16.msra.mxu0 0
      %519 = vmatprep.subr.bf16.mxu0 0
      %520 = vmatpush1.bf16.msra.mxu0 0
      %521 = vmatprep.subr.bf16.mxu0 0
      %522 = vmatpush1.bf16.msra.mxu0 0
      %523 = vmatprep.subr.bf16.mxu0 0
      %524 = vmatpush1.bf16.msra.mxu0 0
      %525 = vmatprep.mubr.bf16.mxu0 0
      %526 = vmatmul.mubr.bf16.gmra.mrb[0].mxu0 %v332
      %v527 = vpop.f32.mrb[0].mxu0
      %v528 = vadd.f32 0.0, %v527
      %v529 = vpop.f32.mrb[0].mxu0
      %v530 = vadd.f32 0.0, %v529
      %v531 = vpop.f32.mrb[0].mxu0
      %v532 = vpop.f32.mrb[0].mxu0
      %533 = vdwg.mxu0
      %534 = vmatprep.subr.bf16.mxu0 0
      %535 = vmatpush1.bf16.msra.mxu0 %v447
      %536 = vmatprep.subr.bf16.mxu0 0
      %537 = vmatpush1.bf16.msra.mxu0 %v450
      %538 = vmatprep.subr.bf16.mxu0 0
      %539 = vmatpush1.bf16.msra.mxu0 %v453
      %540 = vmatprep.subr.bf16.mxu0 0
      %541 = vmatpush1.bf16.msra.mxu0 %v456
      %542 = vmatprep.subr.bf16.mxu0 0
      %543 = vmatpush1.bf16.msra.mxu0 %v459
      %544 = vmatprep.subr.bf16.mxu0 0
      %545 = vmatpush1.bf16.msra.mxu0 %v462
      %546 = vmatprep.subr.bf16.mxu0 0
      %547 = vmatpush1.bf16.msra.mxu0 %v465
      %548 = vmatprep.subr.bf16.mxu0 0
      %549 = vmatpush1.bf16.msra.mxu0 %v468
      %550 = vmatprep.subr.bf16.mxu0 0
      %551 = vmatpush1.bf16.msra.mxu0 0
      %552 = vmatprep.subr.bf16.mxu0 0
      %553 = vmatpush1.bf16.msra.mxu0 0
      %554 = vmatprep.subr.bf16.mxu0 0
      %555 = vmatpush1.bf16.msra.mxu0 0
      %556 = vmatprep.subr.bf16.mxu0 0
      %557 = vmatpush1.bf16.msra.mxu0 0
      %558 = vmatprep.subr.bf16.mxu0 0
      %559 = vmatpush1.bf16.msra.mxu0 0
      %560 = vmatprep.subr.bf16.mxu0 0
      %561 = vmatpush1.bf16.msra.mxu0 0
      %562 = vmatprep.subr.bf16.mxu0 0
      %563 = vmatpush1.bf16.msra.mxu0 0
      %564 = vmatprep.subr.bf16.mxu0 0
      %565 = vmatpush1.bf16.msra.mxu0 0
      %566 = vmatprep.mubr.bf16.mxu0 0
      %567 = vmatmul.mubr.bf16.gmra.mrb[0].mxu0 %v332
      %v568 = vpop.f32.mrb[0].mxu0
      %v569 = vadd.f32 0.0, %v568
      %v570 = vpop.f32.mrb[0].mxu0
      %v571 = vpop.f32.mrb[0].mxu0
      %v572 = vpop.f32.mrb[0].mxu0
      %573 = vdwg.mxu0
      %v574 = vadd.f32 %v330, %v528
      %v575 = vxor.u32 %v574, 2147483648
      %v576 = vmul.f32 %v575, 1.442695
      %v577 = vpow.pop %v576
      %v578 = vadd.f32 %v577, 1.0
      %v579 = vrcp.pop %v578
      %v580 = vmul.f32 1.0, %v579
      %v582 = vrot.slane %v330, 2
      %v584 = vadd.f32 %v582, %v530
      %v585 = vxor.u32 %v584, 2147483648
      %v586 = vmul.f32 %v585, 1.442695
      %v587 = vpow.pop %v586
      %v588 = vadd.f32 %v587, 1.0
      %v589 = vrcp.pop %v588
      %v590 = vmul.f32 1.0, %v589
      %v591 = vld [vmem:[%s4] sm:$0x1]
      %v593 = vlaneseq
      %v594 = vshrl.u32 %v593, 7
      %v595 = vsub.s32 0, %v594
      %v596 = vrot.slane %v591, %v595
      %v598 = vadd.f32 %v569, %v596
      %v599 = vmul.f32 %v580, %v598
      %v600 = vrot.slane %v330, 4
      %v602 = vadd.f32 %v600, %v599
      %v603 = vtanh.pop %v602
      %v604 = vsub.f32 1.0, %v590
      %v605 = vmul.f32 %v604, %v603
      %v606 = vmul.f32 %v590, %v331
      %v607 = vadd.f32 %v605, %v606
      %608 = vst [vmem:[#allocation2] sm:$0x3] %v607
      %609 = vst [vmem:[%s316] sm:$0x3] %v607
      %v610 = vld [vmem:[%s311] sm:$0x3f]
      %v611 = vld [vmem:[#allocation3] sm:$0x3]
      %v612 = vpack.c.bf16 %v611, %v611
      %v613 = vld [vmem:[%s3] sm:$0xff]
      %v614 = vld [vmem:[%s3 + $0x8] sm:$0xf]
      %v615 = vld [vmem:[%s3 + $0xc] sm:$0xff]
      %v616 = vld [vmem:[%s3 + $0x14] sm:$0xf]
      %v617 = vld [vmem:[%s3 + $0x18] sm:$0xff]
      %v618 = vld [vmem:[%s3 + $0x20] sm:$0xf]
      %v619 = vld [vmem:[%s3 + $0x24] sm:$0xff]
      %v620 = vld [vmem:[%s3 + $0x2c] sm:$0xf]
      %v621 = vld [vmem:[%s3 + $0x30] sm:$0xff]
      %v622 = vld [vmem:[%s3 + $0x38] sm:$0xf]
      %v623 = vld [vmem:[%s3 + $0x3c] sm:$0xff]
      %v624 = vld [vmem:[%s3 + $0x44] sm:$0xf]
      %v625 = vld [vmem:[%s3 + $0x48] sm:$0xff]
      %v626 = vld [vmem:[%s3 + $0x50] sm:$0xf]
      %v627 = vld [vmem:[%s3 + $0x54] sm:$0xff]
      %v628 = vld [vmem:[%s3 + $0x5c] sm:$0xf]
      %v629 = vld [vmem:[%s3 + $0x60] sm:$0xff]
      %v630 = vld [vmem:[%s3 + $0x68] sm:$0xf]
      %v631 = vld [vmem:[%s3 + $0x6c] sm:$0xff]
      %v632 = vld [vmem:[%s3 + $0x74] sm:$0xf]
      %v633 = vld [vmem:[%s3 + $0x78] sm:$0xff]
      %v634 = vld [vmem:[%s3 + $0x80] sm:$0xf]
      %v635 = vld [vmem:[%s3 + $0x84] sm:$0xff]
      %v636 = vld [vmem:[%s3 + $0x8c] sm:$0xf]
      %v637 = vld [vmem:[%s3 + $0x90] sm:$0xff]
      %v638 = vld [vmem:[%s3 + $0x98] sm:$0xf]
      %v639 = vld [vmem:[%s3 + $0x9c] sm:$0xff]
      %v640 = vld [vmem:[%s3 + $0xa4] sm:$0xf]
      %v641 = vld [vmem:[%s3 + $0xa8] sm:$0xff]
      %v642 = vld [vmem:[%s3 + $0xb0] sm:$0xf]
      %v643 = vld [vmem:[%s3 + $0xb4] sm:$0xff]
      %v644 = vld [vmem:[%s3 + $0xbc] sm:$0xf]
      %v677 = vunpack.c.l.b16 %v613
      %v678 = vunpack.c.h.b16 %v613
      %v679 = vunpack.c.l.b16 %v614
      %v680 = vunpack.c.l.b16 %v615
      %v681 = vunpack.c.h.b16 %v615
      %v682 = vunpack.c.l.b16 %v616
      %v683 = vunpack.c.l.b16 %v617
      %v684 = vunpack.c.h.b16 %v617
      %v685 = vunpack.c.l.b16 %v618
      %v686 = vunpack.c.l.b16 %v619
      %v687 = vunpack.c.h.b16 %v619
      %v688 = vunpack.c.l.b16 %v620
      %v689 = vunpack.c.l.b16 %v621
      %v690 = vunpack.c.h.b16 %v621
      %v691 = vunpack.c.l.b16 %v622
      %v692 = vunpack.c.l.b16 %v623
      %v693 = vunpack.c.h.b16 %v623
      %v694 = vunpack.c.l.b16 %v624
      %v695 = vunpack.c.l.b16 %v625
      %v696 = vunpack.c.h.b16 %v625
      %v697 = vunpack.c.l.b16 %v626
      %v698 = vunpack.c.l.b16 %v627
      %v699 = vunpack.c.h.b16 %v627
      %v700 = vunpack.c.l.b16 %v628
      %v701 = vunpack.c.l.b16 %v629
      %v702 = vunpack.c.h.b16 %v629
      %v703 = vunpack.c.l.b16 %v630
      %v704 = vunpack.c.l.b16 %v631
      %v705 = vunpack.c.h.b16 %v631
      %v706 = vunpack.c.l.b16 %v632
      %v707 = vunpack.c.l.b16 %v633
      %v708 = vunpack.c.h.b16 %v633
      %v709 = vunpack.c.l.b16 %v634
      %v710 = vunpack.c.l.b16 %v635
      %v711 = vunpack.c.h.b16 %v635
      %v712 = vunpack.c.l.b16 %v636
      %v713 = vunpack.c.l.b16 %v637
      %v714 = vunpack.c.h.b16 %v637
      %v715 = vunpack.c.l.b16 %v638
      %v716 = vunpack.c.l.b16 %v639
      %v717 = vunpack.c.h.b16 %v639
      %v718 = vunpack.c.l.b16 %v640
      %v719 = vunpack.c.l.b16 %v641
      %v720 = vunpack.c.h.b16 %v641
      %v721 = vunpack.c.l.b16 %v642
      %v722 = vunpack.c.l.b16 %v643
      %v723 = vunpack.c.h.b16 %v643
      %v724 = vunpack.c.l.b16 %v644
      %v725 = vpack.c.b16 %v680, %v677
      %v726 = vpack.c.b16 %v681, %v678
      %v727 = vpack.c.b16 %v682, %v679
      %v728 = vpack.c.b16 %v686, %v683
      %v729 = vpack.c.b16 %v687, %v684
      %v730 = vpack.c.b16 %v688, %v685
      %v731 = vpack.c.b16 %v692, %v689
      %v732 = vpack.c.b16 %v693, %v690
      %v733 = vpack.c.b16 %v694, %v691
      %v734 = vpack.c.b16 %v698, %v695
      %v735 = vpack.c.b16 %v699, %v696
      %v736 = vpack.c.b16 %v700, %v697
      %v737 = vpack.c.b16 %v704, %v701
      %v738 = vpack.c.b16 %v705, %v702
      %v739 = vpack.c.b16 %v706, %v703
      %v740 = vpack.c.b16 %v710, %v707
      %v741 = vpack.c.b16 %v711, %v708
      %v742 = vpack.c.b16 %v712, %v709
      %v743 = vpack.c.b16 %v716, %v713
      %v744 = vpack.c.b16 %v717, %v714
      %v745 = vpack.c.b16 %v718, %v715
      %v746 = vpack.c.b16 %v722, %v719
      %v747 = vpack.c.b16 %v723, %v720
      %v748 = vpack.c.b16 %v724, %v721
      %773 = vmatprep.subr.bf16.mxu0 %v726
      %774 = vmatpush1.bf16.msra.mxu0 %v725
      %775 = vmatprep.subr.bf16.mxu0 %v729
      %776 = vmatpush1.bf16.msra.mxu0 %v728
      %777 = vmatprep.subr.bf16.mxu0 %v732
      %778 = vmatpush1.bf16.msra.mxu0 %v731
      %779 = vmatprep.subr.bf16.mxu0 %v735
      %780 = vmatpush1.bf16.msra.mxu0 %v734
      %781 = vmatprep.subr.bf16.mxu0 %v738
      %782 = vmatpush1.bf16.msra.mxu0 %v737
      %783 = vmatprep.subr.bf16.mxu0 %v741
      %784 = vmatpush1.bf16.msra.mxu0 %v740
      %785 = vmatprep.subr.bf16.mxu0 %v744
      %786 = vmatpush1.bf16.msra.mxu0 %v743
      %787 = vmatprep.subr.bf16.mxu0 %v747
      %788 = vmatpush1.bf16.msra.mxu0 %v746
      %789 = vmatprep.subr.bf16.mxu0 0
      %790 = vmatpush1.bf16.msra.mxu0 0
      %791 = vmatprep.subr.bf16.mxu0 0
      %792 = vmatpush1.bf16.msra.mxu0 0
      %793 = vmatprep.subr.bf16.mxu0 0
      %794 = vmatpush1.bf16.msra.mxu0 0
      %795 = vmatprep.subr.bf16.mxu0 0
      %796 = vmatpush1.bf16.msra.mxu0 0
      %797 = vmatprep.subr.bf16.mxu0 0
      %798 = vmatpush1.bf16.msra.mxu0 0
      %799 = vmatprep.subr.bf16.mxu0 0
      %800 = vmatpush1.bf16.msra.mxu0 0
      %801 = vmatprep.subr.bf16.mxu0 0
      %802 = vmatpush1.bf16.msra.mxu0 0
      %803 = vmatprep.subr.bf16.mxu0 0
      %804 = vmatpush1.bf16.msra.mxu0 0
      %805 = vmatprep.mubr.bf16.mxu0 0
      %806 = vmatmul.mubr.bf16.gmra.mrb[0].mxu0 %v612
      %v807 = vpop.f32.mrb[0].mxu0
      %v808 = vadd.f32 0.0, %v807
      %v809 = vpop.f32.mrb[0].mxu0
      %v810 = vadd.f32 0.0, %v809
      %v811 = vpop.f32.mrb[0].mxu0
      %v812 = vpop.f32.mrb[0].mxu0
      %813 = vdwg.mxu0
      %814 = vmatprep.subr.bf16.mxu0 0
      %815 = vmatpush1.bf16.msra.mxu0 %v727
      %816 = vmatprep.subr.bf16.mxu0 0
      %817 = vmatpush1.bf16.msra.mxu0 %v730
      %818 = vmatprep.subr.bf16.mxu0 0
      %819 = vmatpush1.bf16.msra.mxu0 %v733
      %820 = vmatprep.subr.bf16.mxu0 0
      %821 = vmatpush1.bf16.msra.mxu0 %v736
      %822 = vmatprep.subr.bf16.mxu0 0
      %823 = vmatpush1.bf16.msra.mxu0 %v739
      %824 = vmatprep.subr.bf16.mxu0 0
      %825 = vmatpush1.bf16.msra.mxu0 %v742
      %826 = vmatprep.subr.bf16.mxu0 0
      %827 = vmatpush1.bf16.msra.mxu0 %v745
      %828 = vmatprep.subr.bf16.mxu0 0
      %829 = vmatpush1.bf16.msra.mxu0 %v748
      %830 = vmatprep.subr.bf16.mxu0 0
      %831 = vmatpush1.bf16.msra.mxu0 0
      %832 = vmatprep.subr.bf16.mxu0 0
      %833 = vmatpush1.bf16.msra.mxu0 0
      %834 = vmatprep.subr.bf16.mxu0 0
      %835 = vmatpush1.bf16.msra.mxu0 0
      %836 = vmatprep.subr.bf16.mxu0 0
      %837 = vmatpush1.bf16.msra.mxu0 0
      %838 = vmatprep.subr.bf16.mxu0 0
      %839 = vmatpush1.bf16.msra.mxu0 0
      %840 = vmatprep.subr.bf16.mxu0 0
      %841 = vmatpush1.bf16.msra.mxu0 0
      %842 = vmatprep.subr.bf16.mxu0 0
      %843 = vmatpush1.bf16.msra.mxu0 0
      %844 = vmatprep.subr.bf16.mxu0 0
      %845 = vmatpush1.bf16.msra.mxu0 0
      %846 = vmatprep.mubr.bf16.mxu0 0
      %847 = vmatmul.mubr.bf16.gmra.mrb[0].mxu0 %v612
      %v848 = vpop.f32.mrb[0].mxu0
      %v849 = vadd.f32 0.0, %v848
      %v850 = vpop.f32.mrb[0].mxu0
      %v851 = vpop.f32.mrb[0].mxu0
      %v852 = vpop.f32.mrb[0].mxu0
      %853 = vdwg.mxu0
      %v854 = vadd.f32 %v610, %v808
      %v855 = vxor.u32 %v854, 2147483648
      %v856 = vmul.f32 %v855, 1.442695
      %v857 = vpow.pop %v856
      %v858 = vadd.f32 %v857, 1.0
      %v859 = vrcp.pop %v858
      %v860 = vmul.f32 1.0, %v859
      %v862 = vrot.slane %v610, 2
      %v864 = vadd.f32 %v862, %v810
      %v865 = vxor.u32 %v864, 2147483648
      %v866 = vmul.f32 %v865, 1.442695
      %v867 = vpow.pop %v866
      %v868 = vadd.f32 %v867, 1.0
      %v869 = vrcp.pop %v868
      %v870 = vmul.f32 1.0, %v869
      %v871 = vld [vmem:[%s5] sm:$0x1]
      %v873 = vlaneseq
      %v874 = vshrl.u32 %v873, 7
      %v875 = vsub.s32 0, %v874
      %v876 = vrot.slane %v871, %v875
      %v878 = vadd.f32 %v849, %v876
      %v879 = vmul.f32 %v860, %v878
      %v880 = vrot.slane %v610, 4
      %v882 = vadd.f32 %v880, %v879
      %v883 = vtanh.pop %v882
      %v884 = vsub.f32 1.0, %v870
      %v885 = vmul.f32 %v884, %v883
      %v886 = vmul.f32 %v870, %v611
      %v887 = vadd.f32 %v885, %v886
      %888 = vst [vmem:[#allocation3] sm:$0x3] %v887
      %889 = vst [vmem:[%s321] sm:$0x3] %v887
      %p890 = scmp.lt.s32.totalorder %s19, 7
      %s891 = scalar_select %p890, %s19, 7
      %s892 = smul.addr %s891, 2
      %s893 = scalar_lea.vmem %s6, %s892
      %s894 = ssub.s32 7, %s19
      %p895 = scmp.lt.s32.totalorder %s894, 7
      %s896 = scalar_select %p895, %s894, 7
      %s897 = smul.addr %s896, 2
      %s898 = scalar_lea.vmem %s7, %s897
      // Predicated region
      $region49: #{capsulenet_forward.14} parent=43 // pred_check
        %p899 = pneg %p175
      $region50: #{capsulenet_forward.14} parent=43 // pred_check_branch
        %901 = sbr.rel (%p899) target = $region52
      $region51: #{capsulenet_forward.14} parent=43 // pred_region
        _
      $region52: #{capsulenet_forward.14} parent=43 // pred_fallthru
        _
      // Predicated region
      $region53: #{capsulenet_forward.14} parent=43 // pred_check
        %p902 = pneg %p203
      $region54: #{capsulenet_forward.14} parent=43 // pred_check_branch
        %904 = sbr.rel (%p902) target = $region56
      $region55: #{capsulenet_forward.14} parent=43 // pred_region
        %s905 = ssub.s32 7, %s19
      $region56: #{capsulenet_forward.14} parent=43 // pred_fallthru
        _
    $region44: #{capsulenet_forward.14} parent=5 // pred_fallthru
      _
    %p906 = scmp.le.s32.totalorder 2, %s14
    // Predicated region
    $region57: #{capsulenet_forward.14} parent=5 // pred_check
      %p907 = pneg %p906
    $region58: #{capsulenet_forward.14} parent=5 // pred_check_branch
      %909 = sbr.rel (%p907) target = $region60
    $region59: #{capsulenet_forward.14} parent=5 // pred_region
      %s910 = ssub.s32 %s14, 2
      // Predicated region
      $region61: #{capsulenet_forward.14} parent=59 // pred_check
        %p911 = pneg %p181
      $region62: #{capsulenet_forward.14} parent=59 // pred_check_branch
        %913 = sbr.rel (%p911) target = $region64
      $region63: #{capsulenet_forward.14} parent=59 // pred_region
        %p914 = scmp.lt.s32.totalorder %s20, 7
        %s915 = scalar_select %p914, %s20, 7
        %s916 = smul.addr %s915, 2
        %s917 = scalar_lea.vmem %s6, %s916
      $region64: #{capsulenet_forward.14} parent=59 // pred_fallthru
        _
      // Predicated region
      $region65: #{capsulenet_forward.14} parent=59 // pred_check
        %p918 = pneg %p209
      $region66: #{capsulenet_forward.14} parent=59 // pred_check_branch
        %920 = sbr.rel (%p918) target = $region68
      $region67: #{capsulenet_forward.14} parent=59 // pred_region
        %s921 = ssub.s32 7, %s20
        %p922 = scmp.lt.s32.totalorder %s921, 7
        %s923 = scalar_select %p922, %s921, 7
        %s924 = smul.addr %s923, 2
        %s925 = scalar_lea.vmem %s7, %s924
      $region68: #{capsulenet_forward.14} parent=59 // pred_fallthru
        _
    $region60: #{capsulenet_forward.14} parent=5 // pred_fallthru
      _
  $region6: #{capsulenet_forward.14} parent=0 // loop_footer
    %s18 = sadd.s32 1, %s14
  $region7: #{capsulenet_forward.14} parent=0 // loop_footer_branch
    %13 = sbr.rel target = $region3
  $region8: #{capsulenet_forward.14} parent=0 // loop_exit
    _

// kernel: capsulenet_forward.15
$region0: #{capsulenet_forward.15}
  #allocation0 [shape = 'u32[]', space=smem, size = 0x4, offset = 0x4, fixed_abs, tag = 'smem constant byte address 0x4 - core index']
  #allocation1 [shape = 'u32[144,128]{1,0:T(1,128)}', space=vmem, size = 0x12000, scoped, tag = 'internal scratch']
  %s0 = inlined_call_operand.vmem [shape: f32[16,256], index: 0, kind: input, shape index: {}]
  %s1 = inlined_call_operand.vmem [shape: bf16[256,768], index: 1, kind: input, shape index: {}]
  %s2 = inlined_call_operand.vmem [shape: f32[1,768], index: 2, kind: input, shape index: {}]
  %s3 = inlined_call_operand.vmem [shape: f32[16,768], index: 3, kind: output, shape index: {}]
  %s4 = sld [smem:[#allocation0]]
  $region22: #{capsulenet_forward.15} parent=0
    _
  %s6 = ssub.s32 1, %s4
  %s7 = scalar_select 0, %s6, %s4
  // Predicated region
  $region2: #{capsulenet_forward.15} parent=0 // pred_check
    _
  $region3: #{capsulenet_forward.15} parent=0 // pred_check_branch
    %9 = sbr.rel (0) target = $region5
  $region4: #{capsulenet_forward.15} parent=0 // pred_region
    _
  $region5: #{capsulenet_forward.15} parent=0 // pred_fallthru
    _
  // Predicated region
  $region6: #{capsulenet_forward.15} parent=0 // pred_check
    _
  $region7: #{capsulenet_forward.15} parent=0 // pred_check_branch
    %11 = sbr.rel (0) target = $region9
  $region8: #{capsulenet_forward.15} parent=0 // pred_region
    _
  $region9: #{capsulenet_forward.15} parent=0 // pred_fallthru
    _
  // Predicated region
  $region10: #{capsulenet_forward.15} parent=0 // pred_check
    _
  $region11: #{capsulenet_forward.15} parent=0 // pred_check_branch
    %13 = sbr.rel (0) target = $region13
  $region12: #{capsulenet_forward.15} parent=0 // pred_region
    _
  $region13: #{capsulenet_forward.15} parent=0 // pred_fallthru
    _
  %v14 = vld [vmem:[%s0] sm:$0xff]
  %v15 = vld [vmem:[%s0 + $0x8] sm:$0xff]
  %v16 = vld [vmem:[%s0 + $0x10] sm:$0xff]
  %v17 = vld [vmem:[%s0 + $0x18] sm:$0xff]
  %v18 = vpack.c.bf16 %v16, %v14
  %v19 = vpack.c.bf16 %v17, %v15
  %v20 = vld [vmem:[%s1] sm:$0xff]
  %v21 = vld [vmem:[%s1 + $0x8] sm:$0xff]
  %v22 = vld [vmem:[%s1 + $0x10] sm:$0xff]
  %v23 = vld [vmem:[%s1 + $0x18] sm:$0xff]
  %v24 = vld [vmem:[%s1 + $0x20] sm:$0xff]
  %v25 = vld [vmem:[%s1 + $0x28] sm:$0xff]
  %v26 = vld [vmem:[%s1 + $0x30] sm:$0xff]
  %v27 = vld [vmem:[%s1 + $0x38] sm:$0xff]
  %v28 = vld [vmem:[%s1 + $0x40] sm:$0xff]
  %v29 = vld [vmem:[%s1 + $0x48] sm:$0xff]
  %v30 = vld [vmem:[%s1 + $0x50] sm:$0xff]
  %v31 = vld [vmem:[%s1 + $0x58] sm:$0xff]
  %v32 = vld [vmem:[%s1 + $0x60] sm:$0xff]
  %v33 = vld [vmem:[%s1 + $0x68] sm:$0xff]
  %v34 = vld [vmem:[%s1 + $0x70] sm:$0xff]
  %v35 = vld [vmem:[%s1 + $0x78] sm:$0xff]
  %v36 = vld [vmem:[%s1 + $0x80] sm:$0xff]
  %v37 = vld [vmem:[%s1 + $0x88] sm:$0xff]
  %v38 = vld [vmem:[%s1 + $0x90] sm:$0xff]
  %v39 = vld [vmem:[%s1 + $0x98] sm:$0xff]
  %v40 = vld [vmem:[%s1 + $0xa0] sm:$0xff]
  %v41 = vld [vmem:[%s1 + $0xa8] sm:$0xff]
  %v42 = vld [vmem:[%s1 + $0xb0] sm:$0xff]
  %v43 = vld [vmem:[%s1 + $0xb8] sm:$0xff]
  %v44 = vld [vmem:[%s1 + $0xc0] sm:$0xff]
  %v45 = vld [vmem:[%s1 + $0xc8] sm:$0xff]
  %v46 = vld [vmem:[%s1 + $0xd0] sm:$0xff]
  %v47 = vld [vmem:[%s1 + $0xd8] sm:$0xff]
  %v48 = vld [vmem:[%s1 + $0xe0] sm:$0xff]
  %v49 = vld [vmem:[%s1 + $0xe8] sm:$0xff]
  %v50 = vld [vmem:[%s1 + $0xf0] sm:$0xff]
  %v51 = vld [vmem:[%s1 + $0xf8] sm:$0xff]
  %v52 = vld [vmem:[%s1 + $0x100] sm:$0xff]
  %v53 = vld [vmem:[%s1 + $0x108] sm:$0xff]
  %v54 = vld [vmem:[%s1 + $0x110] sm:$0xff]
  %v55 = vld [vmem:[%s1 + $0x118] sm:$0xff]
  %v56 = vld [vmem:[%s1 + $0x120] sm:$0xff]
  %v57 = vld [vmem:[%s1 + $0x128] sm:$0xff]
  %v58 = vld [vmem:[%s1 + $0x130] sm:$0xff]
  %v59 = vld [vmem:[%s1 + $0x138] sm:$0xff]
  %v60 = vld [vmem:[%s1 + $0x140] sm:$0xff]
  %v61 = vld [vmem:[%s1 + $0x148] sm:$0xff]
  %v62 = vld [vmem:[%s1 + $0x150] sm:$0xff]
  %v63 = vld [vmem:[%s1 + $0x158] sm:$0xff]
  %v64 = vld [vmem:[%s1 + $0x160] sm:$0xff]
  %v65 = vld [vmem:[%s1 + $0x168] sm:$0xff]
  %v66 = vld [vmem:[%s1 + $0x170] sm:$0xff]
  %v67 = vld [vmem:[%s1 + $0x178] sm:$0xff]
  %v68 = vld [vmem:[%s1 + $0x180] sm:$0xff]
  %v69 = vld [vmem:[%s1 + $0x188] sm:$0xff]
  %v70 = vld [vmem:[%s1 + $0x190] sm:$0xff]
  %v71 = vld [vmem:[%s1 + $0x198] sm:$0xff]
  %v72 = vld [vmem:[%s1 + $0x1a0] sm:$0xff]
  %v73 = vld [vmem:[%s1 + $0x1a8] sm:$0xff]
  %v74 = vld [vmem:[%s1 + $0x1b0] sm:$0xff]
  %v75 = vld [vmem:[%s1 + $0x1b8] sm:$0xff]
  %v76 = vld [vmem:[%s1 + $0x1c0] sm:$0xff]
  %v77 = vld [vmem:[%s1 + $0x1c8] sm:$0xff]
  %v78 = vld [vmem:[%s1 + $0x1d0] sm:$0xff]
  %v79 = vld [vmem:[%s1 + $0x1d8] sm:$0xff]
  %v80 = vld [vmem:[%s1 + $0x1e0] sm:$0xff]
  %v81 = vld [vmem:[%s1 + $0x1e8] sm:$0xff]
  %v82 = vld [vmem:[%s1 + $0x1f0] sm:$0xff]
  %v83 = vld [vmem:[%s1 + $0x1f8] sm:$0xff]
  %v84 = vld [vmem:[%s1 + $0x200] sm:$0xff]
  %v85 = vld [vmem:[%s1 + $0x208] sm:$0xff]
  %v86 = vld [vmem:[%s1 + $0x210] sm:$0xff]
  %v87 = vld [vmem:[%s1 + $0x218] sm:$0xff]
  %v88 = vld [vmem:[%s1 + $0x220] sm:$0xff]
  %v89 = vld [vmem:[%s1 + $0x228] sm:$0xff]
  %v90 = vld [vmem:[%s1 + $0x230] sm:$0xff]
  %v91 = vld [vmem:[%s1 + $0x238] sm:$0xff]
  %v92 = vld [vmem:[%s1 + $0x240] sm:$0xff]
  %v93 = vld [vmem:[%s1 + $0x248] sm:$0xff]
  %v94 = vld [vmem:[%s1 + $0x250] sm:$0xff]
  %v95 = vld [vmem:[%s1 + $0x258] sm:$0xff]
  %v96 = vld [vmem:[%s1 + $0x260] sm:$0xff]
  %v97 = vld [vmem:[%s1 + $0x268] sm:$0xff]
  %v98 = vld [vmem:[%s1 + $0x270] sm:$0xff]
  %v99 = vld [vmem:[%s1 + $0x278] sm:$0xff]
  %v100 = vld [vmem:[%s1 + $0x280] sm:$0xff]
  %v101 = vld [vmem:[%s1 + $0x288] sm:$0xff]
  %v102 = vld [vmem:[%s1 + $0x290] sm:$0xff]
  %v103 = vld [vmem:[%s1 + $0x298] sm:$0xff]
  %v104 = vld [vmem:[%s1 + $0x2a0] sm:$0xff]
  %v105 = vld [vmem:[%s1 + $0x2a8] sm:$0xff]
  %v106 = vld [vmem:[%s1 + $0x2b0] sm:$0xff]
  %v107 = vld [vmem:[%s1 + $0x2b8] sm:$0xff]
  %v108 = vld [vmem:[%s1 + $0x2c0] sm:$0xff]
  %v109 = vld [vmem:[%s1 + $0x2c8] sm:$0xff]
  %v110 = vld [vmem:[%s1 + $0x2d0] sm:$0xff]
  %v111 = vld [vmem:[%s1 + $0x2d8] sm:$0xff]
  %v112 = vld [vmem:[%s1 + $0x2e0] sm:$0xff]
  %v113 = vld [vmem:[%s1 + $0x2e8] sm:$0xff]
  %v114 = vld [vmem:[%s1 + $0x2f0] sm:$0xff]
  %v115 = vld [vmem:[%s1 + $0x2f8] sm:$0xff]
  %v116 = vld [vmem:[%s2] sm:$0x3f]
  %v118 = vlaneseq
  %v119 = vshrl.u32 %v118, 7
  %v120 = vsub.s32 0, %v119
  %v121 = vrot.slane %v116, %v120
  %v122 = vlaneseq
  %v123 = vshrl.u32 %v122, 7
  %v124 = vsub.s32 1, %v123
  %v125 = vrot.slane %v116, %v124
  %v126 = vlaneseq
  %v127 = vshrl.u32 %v126, 7
  %v128 = vsub.s32 2, %v127
  %v129 = vrot.slane %v116, %v128
  %v130 = vlaneseq
  %v131 = vshrl.u32 %v130, 7
  %v132 = vsub.s32 3, %v131
  %v133 = vrot.slane %v116, %v132
  %v134 = vlaneseq
  %v135 = vshrl.u32 %v134, 7
  %v136 = vsub.s32 4, %v135
  %v137 = vrot.slane %v116, %v136
  %v138 = vlaneseq
  %v139 = vshrl.u32 %v138, 7
  %v140 = vsub.s32 5, %v139
  %v141 = vrot.slane %v116, %v140
  %v244 = vunpack.c.l.b16 %v20
  %v245 = vunpack.c.h.b16 %v20
  %v246 = vunpack.c.l.b16 %v21
  %v247 = vunpack.c.h.b16 %v21
  %v248 = vunpack.c.l.b16 %v22
  %v249 = vunpack.c.h.b16 %v22
  %v250 = vunpack.c.l.b16 %v23
  %v251 = vunpack.c.h.b16 %v23
  %v252 = vunpack.c.l.b16 %v24
  %v253 = vunpack.c.h.b16 %v24
  %v254 = vunpack.c.l.b16 %v25
  %v255 = vunpack.c.h.b16 %v25
  %v256 = vunpack.c.l.b16 %v26
  %v257 = vunpack.c.h.b16 %v26
  %v258 = vunpack.c.l.b16 %v27
  %v259 = vunpack.c.h.b16 %v27
  %v260 = vunpack.c.l.b16 %v28
  %v261 = vunpack.c.h.b16 %v28
  %v262 = vunpack.c.l.b16 %v29
  %v263 = vunpack.c.h.b16 %v29
  %v264 = vunpack.c.l.b16 %v30
  %v265 = vunpack.c.h.b16 %v30
  %v266 = vunpack.c.l.b16 %v31
  %v267 = vunpack.c.h.b16 %v31
  %v268 = vunpack.c.l.b16 %v32
  %v269 = vunpack.c.h.b16 %v32
  %v270 = vunpack.c.l.b16 %v33
  %v271 = vunpack.c.h.b16 %v33
  %v272 = vunpack.c.l.b16 %v34
  %v273 = vunpack.c.h.b16 %v34
  %v274 = vunpack.c.l.b16 %v35
  %v275 = vunpack.c.h.b16 %v35
  %v276 = vunpack.c.l.b16 %v36
  %v277 = vunpack.c.h.b16 %v36
  %v278 = vunpack.c.l.b16 %v37
  %v279 = vunpack.c.h.b16 %v37
  %v280 = vunpack.c.l.b16 %v38
  %v281 = vunpack.c.h.b16 %v38
  %v282 = vunpack.c.l.b16 %v39
  %v283 = vunpack.c.h.b16 %v39
  %v284 = vunpack.c.l.b16 %v40
  %v285 = vunpack.c.h.b16 %v40
  %v286 = vunpack.c.l.b16 %v41
  %v287 = vunpack.c.h.b16 %v41
  %v288 = vunpack.c.l.b16 %v42
  %v289 = vunpack.c.h.b16 %v42
  %v290 = vunpack.c.l.b16 %v43
  %v291 = vunpack.c.h.b16 %v43
  %v292 = vunpack.c.l.b16 %v44
  %v293 = vunpack.c.h.b16 %v44
  %v294 = vunpack.c.l.b16 %v45
  %v295 = vunpack.c.h.b16 %v45
  %v296 = vunpack.c.l.b16 %v46
  %v297 = vunpack.c.h.b16 %v46
  %v298 = vunpack.c.l.b16 %v47
  %v299 = vunpack.c.h.b16 %v47
  %v300 = vunpack.c.l.b16 %v48
  %v301 = vunpack.c.h.b16 %v48
  %v302 = vunpack.c.l.b16 %v49
  %v303 = vunpack.c.h.b16 %v49
  %v304 = vunpack.c.l.b16 %v50
  %v305 = vunpack.c.h.b16 %v50
  %v306 = vunpack.c.l.b16 %v51
  %v307 = vunpack.c.h.b16 %v51
  %v308 = vunpack.c.l.b16 %v52
  %v309 = vunpack.c.h.b16 %v52
  %v310 = vunpack.c.l.b16 %v53
  %v311 = vunpack.c.h.b16 %v53
  %v312 = vunpack.c.l.b16 %v54
  %v313 = vunpack.c.h.b16 %v54
  %v314 = vunpack.c.l.b16 %v55
  %v315 = vunpack.c.h.b16 %v55
  %v316 = vunpack.c.l.b16 %v56
  %v317 = vunpack.c.h.b16 %v56
  %v318 = vunpack.c.l.b16 %v57
  %v319 = vunpack.c.h.b16 %v57
  %v320 = vunpack.c.l.b16 %v58
  %v321 = vunpack.c.h.b16 %v58
  %v322 = vunpack.c.l.b16 %v59
  %v323 = vunpack.c.h.b16 %v59
  %v324 = vunpack.c.l.b16 %v60
  %v325 = vunpack.c.h.b16 %v60
  %v326 = vunpack.c.l.b16 %v61
  %v327 = vunpack.c.h.b16 %v61
  %v328 = vunpack.c.l.b16 %v62
  %v329 = vunpack.c.h.b16 %v62
  %v330 = vunpack.c.l.b16 %v63
  %v331 = vunpack.c.h.b16 %v63
  %v332 = vunpack.c.l.b16 %v64
  %v333 = vunpack.c.h.b16 %v64
  %v334 = vunpack.c.l.b16 %v65
  %v335 = vunpack.c.h.b16 %v65
  %v336 = vunpack.c.l.b16 %v66
  %v337 = vunpack.c.h.b16 %v66
  %v338 = vunpack.c.l.b16 %v67
  %v339 = vunpack.c.h.b16 %v67
  %v340 = vunpack.c.l.b16 %v68
  %v341 = vunpack.c.h.b16 %v68
  %v342 = vunpack.c.l.b16 %v69
  %v343 = vunpack.c.h.b16 %v69
  %v344 = vunpack.c.l.b16 %v70
  %v345 = vunpack.c.h.b16 %v70
  %v346 = vunpack.c.l.b16 %v71
  %v347 = vunpack.c.h.b16 %v71
  %v348 = vunpack.c.l.b16 %v72
  %v349 = vunpack.c.h.b16 %v72
  %v350 = vunpack.c.l.b16 %v73
  %v351 = vunpack.c.h.b16 %v73
  %v352 = vunpack.c.l.b16 %v74
  %v353 = vunpack.c.h.b16 %v74
  %v354 = vunpack.c.l.b16 %v75
  %v355 = vunpack.c.h.b16 %v75
  %v356 = vunpack.c.l.b16 %v76
  %v357 = vunpack.c.h.b16 %v76
  %v358 = vunpack.c.l.b16 %v77
  %v359 = vunpack.c.h.b16 %v77
  %v360 = vunpack.c.l.b16 %v78
  %v361 = vunpack.c.h.b16 %v78
  %v362 = vunpack.c.l.b16 %v79
  %v363 = vunpack.c.h.b16 %v79
  %v364 = vunpack.c.l.b16 %v80
  %v365 = vunpack.c.h.b16 %v80
  %v366 = vunpack.c.l.b16 %v81
  %v367 = vunpack.c.h.b16 %v81
  %v368 = vunpack.c.l.b16 %v82
  %v369 = vunpack.c.h.b16 %v82
  %v370 = vunpack.c.l.b16 %v83
  %v371 = vunpack.c.h.b16 %v83
  %v372 = vunpack.c.l.b16 %v84
  %v373 = vunpack.c.h.b16 %v84
  %v374 = vunpack.c.l.b16 %v85
  %v375 = vunpack.c.h.b16 %v85
  %v376 = vunpack.c.l.b16 %v86
  %v377 = vunpack.c.h.b16 %v86
  %v378 = vunpack.c.l.b16 %v87
  %v379 = vunpack.c.h.b16 %v87
  %v380 = vunpack.c.l.b16 %v88
  %v381 = vunpack.c.h.b16 %v88
  %v382 = vunpack.c.l.b16 %v89
  %v383 = vunpack.c.h.b16 %v89
  %v384 = vunpack.c.l.b16 %v90
  %v385 = vunpack.c.h.b16 %v90
  %v386 = vunpack.c.l.b16 %v91
  %v387 = vunpack.c.h.b16 %v91
  %v388 = vunpack.c.l.b16 %v92
  %v389 = vunpack.c.h.b16 %v92
  %v390 = vunpack.c.l.b16 %v93
  %v391 = vunpack.c.h.b16 %v93
  %v392 = vunpack.c.l.b16 %v94
  %v393 = vunpack.c.h.b16 %v94
  %v394 = vunpack.c.l.b16 %v95
  %v395 = vunpack.c.h.b16 %v95
  %v396 = vunpack.c.l.b16 %v96
  %v397 = vunpack.c.h.b16 %v96
  %v398 = vunpack.c.l.b16 %v97
  %v399 = vunpack.c.h.b16 %v97
  %v400 = vunpack.c.l.b16 %v98
  %v401 = vunpack.c.h.b16 %v98
  %v402 = vunpack.c.l.b16 %v99
  %v403 = vunpack.c.h.b16 %v99
  %v404 = vunpack.c.l.b16 %v100
  %v405 = vunpack.c.h.b16 %v100
  %v406 = vunpack.c.l.b16 %v101
  %v407 = vunpack.c.h.b16 %v101
  %v408 = vunpack.c.l.b16 %v102
  %v409 = vunpack.c.h.b16 %v102
  %v410 = vunpack.c.l.b16 %v103
  %v411 = vunpack.c.h.b16 %v103
  %v412 = vunpack.c.l.b16 %v104
  %v413 = vunpack.c.h.b16 %v104
  %v414 = vunpack.c.l.b16 %v105
  %v415 = vunpack.c.h.b16 %v105
  %v416 = vunpack.c.l.b16 %v106
  %v417 = vunpack.c.h.b16 %v106
  %v418 = vunpack.c.l.b16 %v107
  %v419 = vunpack.c.h.b16 %v107
  %v420 = vunpack.c.l.b16 %v108
  %v421 = vunpack.c.h.b16 %v108
  %v422 = vunpack.c.l.b16 %v109
  %v423 = vunpack.c.h.b16 %v109
  %v424 = vunpack.c.l.b16 %v110
  %v425 = vunpack.c.h.b16 %v110
  %v426 = vunpack.c.l.b16 %v111
  %v427 = vunpack.c.h.b16 %v111
  %v428 = vunpack.c.l.b16 %v112
  %v429 = vunpack.c.h.b16 %v112
  %v430 = vunpack.c.l.b16 %v113
  %v431 = vunpack.c.h.b16 %v113
  %v432 = vunpack.c.l.b16 %v114
  %v433 = vunpack.c.h.b16 %v114
  %v434 = vunpack.c.l.b16 %v115
  %v435 = vunpack.c.h.b16 %v115
  %v436 = vpack.c.b16 %v250, %v244
  %v437 = vpack.c.b16 %v251, %v245
  %v438 = vpack.c.b16 %v252, %v246
  %v439 = vpack.c.b16 %v253, %v247
  %v440 = vpack.c.b16 %v254, %v248
  %v441 = vpack.c.b16 %v255, %v249
  %v442 = vpack.c.b16 %v262, %v256
  %v443 = vpack.c.b16 %v263, %v257
  %v444 = vpack.c.b16 %v264, %v258
  %v445 = vpack.c.b16 %v265, %v259
  %v446 = vpack.c.b16 %v266, %v260
  %v447 = vpack.c.b16 %v267, %v261
  %v448 = vpack.c.b16 %v274, %v268
  %v449 = vpack.c.b16 %v275, %v269
  %v450 = vpack.c.b16 %v276, %v270
  %v451 = vpack.c.b16 %v277, %v271
  %v452 = vpack.c.b16 %v278, %v272
  %v453 = vpack.c.b16 %v279, %v273
  %v454 = vpack.c.b16 %v286, %v280
  %v455 = vpack.c.b16 %v287, %v281
  %v456 = vpack.c.b16 %v288, %v282
  %v457 = vpack.c.b16 %v289, %v283
  %v458 = vpack.c.b16 %v290, %v284
  %v459 = vpack.c.b16 %v291, %v285
  %v460 = vpack.c.b16 %v298, %v292
  %v461 = vpack.c.b16 %v299, %v293
  %v462 = vpack.c.b16 %v300, %v294
  %v463 = vpack.c.b16 %v301, %v295
  %v464 = vpack.c.b16 %v302, %v296
  %v465 = vpack.c.b16 %v303, %v297
  %v466 = vpack.c.b16 %v310, %v304
  %v467 = vpack.c.b16 %v311, %v305
  %v468 = vpack.c.b16 %v312, %v306
  %v469 = vpack.c.b16 %v313, %v307
  %v470 = vpack.c.b16 %v314, %v308
  %v471 = vpack.c.b16 %v315, %v309
  %v472 = vpack.c.b16 %v322, %v316
  %v473 = vpack.c.b16 %v323, %v317
  %v474 = vpack.c.b16 %v324, %v318
  %v475 = vpack.c.b16 %v325, %v319
  %v476 = vpack.c.b16 %v326, %v320
  %v477 = vpack.c.b16 %v327, %v321
  %v478 = vpack.c.b16 %v334, %v328
  %v479 = vpack.c.b16 %v335, %v329
  %v480 = vpack.c.b16 %v336, %v330
  %v481 = vpack.c.b16 %v337, %v331
  %v482 = vpack.c.b16 %v338, %v332
  %v483 = vpack.c.b16 %v339, %v333
  %v484 = vpack.c.b16 %v346, %v340
  %v485 = vpack.c.b16 %v347, %v341
  %v486 = vpack.c.b16 %v348, %v342
  %v487 = vpack.c.b16 %v349, %v343
  %v488 = vpack.c.b16 %v350, %v344
  %v489 = vpack.c.b16 %v351, %v345
  %v490 = vpack.c.b16 %v358, %v352
  %v491 = vpack.c.b16 %v359, %v353
  %v492 = vpack.c.b16 %v360, %v354
  %v493 = vpack.c.b16 %v361, %v355
  %v494 = vpack.c.b16 %v362, %v356
  %v495 = vpack.c.b16 %v363, %v357
  %v496 = vpack.c.b16 %v370, %v364
  %v497 = vpack.c.b16 %v371, %v365
  %v498 = vpack.c.b16 %v372, %v366
  %v499 = vpack.c.b16 %v373, %v367
  %v500 = vpack.c.b16 %v374, %v368
  %v501 = vpack.c.b16 %v375, %v369
  %v502 = vpack.c.b16 %v382, %v376
  %v503 = vpack.c.b16 %v383, %v377
  %v504 = vpack.c.b16 %v384, %v378
  %v505 = vpack.c.b16 %v385, %v379
  %v506 = vpack.c.b16 %v386, %v380
  %v507 = vpack.c.b16 %v387, %v381
  %v508 = vpack.c.b16 %v394, %v388
  %v509 = vpack.c.b16 %v395, %v389
  %v510 = vpack.c.b16 %v396, %v390
  %v511 = vpack.c.b16 %v397, %v391
  %v512 = vpack.c.b16 %v398, %v392
  %v513 = vpack.c.b16 %v399, %v393
  %v514 = vpack.c.b16 %v406, %v400
  %v515 = vpack.c.b16 %v407, %v401
  %v516 = vpack.c.b16 %v408, %v402
  %v517 = vpack.c.b16 %v409, %v403
  %v518 = vpack.c.b16 %v410, %v404
  %v519 = vpack.c.b16 %v411, %v405
  %v520 = vpack.c.b16 %v418, %v412
  %v521 = vpack.c.b16 %v419, %v413
  %v522 = vpack.c.b16 %v420, %v414
  %v523 = vpack.c.b16 %v421, %v415
  %v524 = vpack.c.b16 %v422, %v416
  %v525 = vpack.c.b16 %v423, %v417
  %v526 = vpack.c.b16 %v430, %v424
  %v527 = vpack.c.b16 %v431, %v425
  %v528 = vpack.c.b16 %v432, %v426
  %v529 = vpack.c.b16 %v433, %v427
  %v530 = vpack.c.b16 %v434, %v428
  %v531 = vpack.c.b16 %v435, %v429
  %628 = vmatprep.subr.bf16.mxu0 %v437
  %629 = vmatpush1.bf16.msra.mxu0 %v436
  %630 = vmatprep.subr.bf16.mxu0 %v443
  %631 = vmatpush1.bf16.msra.mxu0 %v442
  %632 = vmatprep.subr.bf16.mxu0 %v449
  %633 = vmatpush1.bf16.msra.mxu0 %v448
  %634 = vmatprep.subr.bf16.mxu0 %v455
  %635 = vmatpush1.bf16.msra.mxu0 %v454
  %636 = vmatprep.subr.bf16.mxu0 %v461
  %637 = vmatpush1.bf16.msra.mxu0 %v460
  %638 = vmatprep.subr.bf16.mxu0 %v467
  %639 = vmatpush1.bf16.msra.mxu0 %v466
  %640 = vmatprep.subr.bf16.mxu0 %v473
  %641 = vmatpush1.bf16.msra.mxu0 %v472
  %642 = vmatprep.subr.bf16.mxu0 %v479
  %643 = vmatpush1.bf16.msra.mxu0 %v478
  %644 = vmatprep.subr.bf16.mxu0 %v485
  %645 = vmatpush1.bf16.msra.mxu0 %v484
  %646 = vmatprep.subr.bf16.mxu0 %v491
  %647 = vmatpush1.bf16.msra.mxu0 %v490
  %648 = vmatprep.subr.bf16.mxu0 %v497
  %649 = vmatpush1.bf16.msra.mxu0 %v496
  %650 = vmatprep.subr.bf16.mxu0 %v503
  %651 = vmatpush1.bf16.msra.mxu0 %v502
  %652 = vmatprep.subr.bf16.mxu0 %v509
  %653 = vmatpush1.bf16.msra.mxu0 %v508
  %654 = vmatprep.subr.bf16.mxu0 %v515
  %655 = vmatpush1.bf16.msra.mxu0 %v514
  %656 = vmatprep.subr.bf16.mxu0 %v521
  %657 = vmatpush1.bf16.msra.mxu0 %v520
  %658 = vmatprep.subr.bf16.mxu0 %v527
  %659 = vmatpush1.bf16.msra.mxu0 %v526
  %660 = vmatprep.mubr.bf16.mxu0 %v19
  %661 = vmatmul.mubr.bf16.gmra.mrb[0].mxu0 %v18
  %v662 = vpop.f32.mrb[0].mxu0
  %v663 = vadd.f32 %v121, %v662
  %v664 = vpop.f32.mrb[0].mxu0
  %v665 = vadd.f32 %v125, %v664
  %v666 = vpop.f32.mrb[0].mxu0
  %v667 = vadd.f32 %v121, %v666
  %v668 = vpop.f32.mrb[0].mxu0
  %v669 = vadd.f32 %v125, %v668
  %670 = vdwg.mxu0
  %671 = vmatprep.subr.bf16.mxu0 %v439
  %672 = vmatpush1.bf16.msra.mxu0 %v438
  %673 = vmatprep.subr.bf16.mxu0 %v445
  %674 = vmatpush1.bf16.msra.mxu0 %v444
  %675 = vmatprep.subr.bf16.mxu0 %v451
  %676 = vmatpush1.bf16.msra.mxu0 %v450
  %677 = vmatprep.subr.bf16.mxu0 %v457
  %678 = vmatpush1.bf16.msra.mxu0 %v456
  %679 = vmatprep.subr.bf16.mxu0 %v463
  %680 = vmatpush1.bf16.msra.mxu0 %v462
  %681 = vmatprep.subr.bf16.mxu0 %v469
  %682 = vmatpush1.bf16.msra.mxu0 %v468
  %683 = vmatprep.subr.bf16.mxu0 %v475
  %684 = vmatpush1.bf16.msra.mxu0 %v474
  %685 = vmatprep.subr.bf16.mxu0 %v481
  %686 = vmatpush1.bf16.msra.mxu0 %v480
  %687 = vmatprep.subr.bf16.mxu0 %v487
  %688 = vmatpush1.bf16.msra.mxu0 %v486
  %689 = vmatprep.subr.bf16.mxu0 %v493
  %690 = vmatpush1.bf16.msra.mxu0 %v492
  %691 = vmatprep.subr.bf16.mxu0 %v499
  %692 = vmatpush1.bf16.msra.mxu0 %v498
  %693 = vmatprep.subr.bf16.mxu0 %v505
  %694 = vmatpush1.bf16.msra.mxu0 %v504
  %695 = vmatprep.subr.bf16.mxu0 %v511
  %696 = vmatpush1.bf16.msra.mxu0 %v510
  %697 = vmatprep.subr.bf16.mxu0 %v517
  %698 = vmatpush1.bf16.msra.mxu0 %v516
  %699 = vmatprep.subr.bf16.mxu0 %v523
  %700 = vmatpush1.bf16.msra.mxu0 %v522
  %701 = vmatprep.subr.bf16.mxu0 %v529
  %702 = vmatpush1.bf16.msra.mxu0 %v528
  %703 = vmatprep.mubr.bf16.mxu0 %v19
  %704 = vmatmul.mubr.bf16.gmra.mrb[0].mxu0 %v18
  %v705 = vpop.f32.mrb[0].mxu0
  %v706 = vadd.f32 %v129, %v705
  %v707 = vpop.f32.mrb[0].mxu0
  %v708 = vadd.f32 %v133, %v707
  %v709 = vpop.f32.mrb[0].mxu0
  %v710 = vadd.f32 %v129, %v709
  %v711 = vpop.f32.mrb[0].mxu0
  %v712 = vadd.f32 %v133, %v711
  %713 = vdwg.mxu0
  %714 = vmatprep.subr.bf16.mxu0 %v441
  %715 = vmatpush1.bf16.msra.mxu0 %v440
  %716 = vmatprep.subr.bf16.mxu0 %v447
  %717 = vmatpush1.bf16.msra.mxu0 %v446
  %718 = vmatprep.subr.bf16.mxu0 %v453
  %719 = vmatpush1.bf16.msra.mxu0 %v452
  %720 = vmatprep.subr.bf16.mxu0 %v459
  %721 = vmatpush1.bf16.msra.mxu0 %v458
  %722 = vmatprep.subr.bf16.mxu0 %v465
  %723 = vmatpush1.bf16.msra.mxu0 %v464
  %724 = vmatprep.subr.bf16.mxu0 %v471
  %725 = vmatpush1.bf16.msra.mxu0 %v470
  %726 = vmatprep.subr.bf16.mxu0 %v477
  %727 = vmatpush1.bf16.msra.mxu0 %v476
  %728 = vmatprep.subr.bf16.mxu0 %v483
  %729 = vmatpush1.bf16.msra.mxu0 %v482
  %730 = vmatprep.subr.bf16.mxu0 %v489
  %731 = vmatpush1.bf16.msra.mxu0 %v488
  %732 = vmatprep.subr.bf16.mxu0 %v495
  %733 = vmatpush1.bf16.msra.mxu0 %v494
  %734 = vmatprep.subr.bf16.mxu0 %v501
  %735 = vmatpush1.bf16.msra.mxu0 %v500
  %736 = vmatprep.subr.bf16.mxu0 %v507
  %737 = vmatpush1.bf16.msra.mxu0 %v506
  %738 = vmatprep.subr.bf16.mxu0 %v513
  %739 = vmatpush1.bf16.msra.mxu0 %v512
  %740 = vmatprep.subr.bf16.mxu0 %v519
  %741 = vmatpush1.bf16.msra.mxu0 %v518
  %742 = vmatprep.subr.bf16.mxu0 %v525
  %743 = vmatpush1.bf16.msra.mxu0 %v524
  %744 = vmatprep.subr.bf16.mxu0 %v531
  %745 = vmatpush1.bf16.msra.mxu0 %v530
  %746 = vmatprep.mubr.bf16.mxu0 %v19
  %747 = vmatmul.mubr.bf16.gmra.mrb[0].mxu0 %v18
  %v748 = vpop.f32.mrb[0].mxu0
  %v749 = vadd.f32 %v137, %v748
  %v750 = vpop.f32.mrb[0].mxu0
  %v751 = vadd.f32 %v141, %v750
  %v752 = vpop.f32.mrb[0].mxu0
  %v753 = vadd.f32 %v137, %v752
  %v754 = vpop.f32.mrb[0].mxu0
  %v755 = vadd.f32 %v141, %v754
  %756 = vdwg.mxu0
  %757 = vst [vmem:[%s3] sm:$0xff] %v663
  %758 = vst [vmem:[%s3 + $0x8] sm:$0xff] %v665
  %759 = vst [vmem:[%s3 + $0x10] sm:$0xff] %v706
  %760 = vst [vmem:[%s3 + $0x18] sm:$0xff] %v708
  %761 = vst [vmem:[%s3 + $0x20] sm:$0xff] %v749
  %762 = vst [vmem:[%s3 + $0x28] sm:$0xff] %v751
  %763 = vst [vmem:[%s3 + $0x30] sm:$0xff] %v667
  %764 = vst [vmem:[%s3 + $0x38] sm:$0xff] %v669
  %765 = vst [vmem:[%s3 + $0x40] sm:$0xff] %v710
  %766 = vst [vmem:[%s3 + $0x48] sm:$0xff] %v712
  %767 = vst [vmem:[%s3 + $0x50] sm:$0xff] %v753
  %768 = vst [vmem:[%s3 + $0x58] sm:$0xff] %v755
  // Predicated region
  $region14: #{capsulenet_forward.15} parent=0 // pred_check
    _
  $region15: #{capsulenet_forward.15} parent=0 // pred_check_branch
    %770 = sbr.rel (0) target = $region17
  $region16: #{capsulenet_forward.15} parent=0 // pred_region
    _
  $region17: #{capsulenet_forward.15} parent=0 // pred_fallthru
    _
  // Predicated region
  $region18: #{capsulenet_forward.15} parent=0 // pred_check
    _
  $region19: #{capsulenet_forward.15} parent=0 // pred_check_branch
    %772 = sbr.rel (0) target = $region21
  $region20: #{capsulenet_forward.15} parent=0 // pred_region
    _
  $region21: #{capsulenet_forward.15} parent=0 // pred_fallthru
    _

// kernel: capsulenet_forward.21
$region0: #{capsulenet_forward.21}
  #allocation0 [shape = 'u32[]', space=smem, size = 0x4, offset = 0x4, fixed_abs, tag = 'smem constant byte address 0x4 - core index']
  #allocation1 [shape = 'u32[144,128]{1,0:T(1,128)}', space=vmem, size = 0x12000, scoped, tag = 'internal scratch']
  %s0 = inlined_call_operand.vmem [shape: f32[16,256], index: 0, kind: input, shape index: {}]
  %s1 = inlined_call_operand.vmem [shape: bf16[256,25], index: 1, kind: input, shape index: {}]
  %s2 = inlined_call_operand.vmem [shape: f32[1,25], index: 2, kind: input, shape index: {}]
  %s3 = inlined_call_operand.vmem [shape: f32[16,25], index: 3, kind: output, shape index: {}]
  %s4 = sld [smem:[#allocation0]]
  $region22: #{capsulenet_forward.21} parent=0
    _
  %s6 = ssub.s32 1, %s4
  %s7 = scalar_select 0, %s6, %s4
  // Predicated region
  $region2: #{capsulenet_forward.21} parent=0 // pred_check
    _
  $region3: #{capsulenet_forward.21} parent=0 // pred_check_branch
    %9 = sbr.rel (0) target = $region5
  $region4: #{capsulenet_forward.21} parent=0 // pred_region
    _
  $region5: #{capsulenet_forward.21} parent=0 // pred_fallthru
    _
  // Predicated region
  $region6: #{capsulenet_forward.21} parent=0 // pred_check
    _
  $region7: #{capsulenet_forward.21} parent=0 // pred_check_branch
    %11 = sbr.rel (0) target = $region9
  $region8: #{capsulenet_forward.21} parent=0 // pred_region
    _
  $region9: #{capsulenet_forward.21} parent=0 // pred_fallthru
    _
  // Predicated region
  $region10: #{capsulenet_forward.21} parent=0 // pred_check
    _
  $region11: #{capsulenet_forward.21} parent=0 // pred_check_branch
    %13 = sbr.rel (0) target = $region13
  $region12: #{capsulenet_forward.21} parent=0 // pred_region
    _
  $region13: #{capsulenet_forward.21} parent=0 // pred_fallthru
    _
  %v15 = vld [vmem:[%s0] sm:$0xff]
  %v16 = vld [vmem:[%s0 + $0x8] sm:$0xff]
  %v17 = vld [vmem:[%s0 + $0x10] sm:$0xff]
  %v18 = vld [vmem:[%s0 + $0x18] sm:$0xff]
  %v19 = vpack.c.bf16 %v17, %v15
  %v20 = vpack.c.bf16 %v18, %v16
  %v21 = vld [vmem:[%s1] sm:$0xf]
  %v22 = vld [vmem:[%s1 + $0x4] sm:$0xf]
  %v23 = vld [vmem:[%s1 + $0x8] sm:$0xf]
  %v24 = vld [vmem:[%s1 + $0xc] sm:$0xf]
  %v25 = vld [vmem:[%s1 + $0x10] sm:$0xf]
  %v26 = vld [vmem:[%s1 + $0x14] sm:$0xf]
  %v27 = vld [vmem:[%s1 + $0x18] sm:$0xf]
  %v28 = vld [vmem:[%s1 + $0x1c] sm:$0xf]
  %v29 = vld [vmem:[%s1 + $0x20] sm:$0xf]
  %v30 = vld [vmem:[%s1 + $0x24] sm:$0xf]
  %v31 = vld [vmem:[%s1 + $0x28] sm:$0xf]
  %v32 = vld [vmem:[%s1 + $0x2c] sm:$0xf]
  %v33 = vld [vmem:[%s1 + $0x30] sm:$0xf]
  %v34 = vld [vmem:[%s1 + $0x34] sm:$0xf]
  %v35 = vld [vmem:[%s1 + $0x38] sm:$0xf]
  %v36 = vld [vmem:[%s1 + $0x3c] sm:$0xf]
  %v37 = vld [vmem:[%s1 + $0x40] sm:$0xf]
  %v38 = vld [vmem:[%s1 + $0x44] sm:$0xf]
  %v39 = vld [vmem:[%s1 + $0x48] sm:$0xf]
  %v40 = vld [vmem:[%s1 + $0x4c] sm:$0xf]
  %v41 = vld [vmem:[%s1 + $0x50] sm:$0xf]
  %v42 = vld [vmem:[%s1 + $0x54] sm:$0xf]
  %v43 = vld [vmem:[%s1 + $0x58] sm:$0xf]
  %v44 = vld [vmem:[%s1 + $0x5c] sm:$0xf]
  %v45 = vld [vmem:[%s1 + $0x60] sm:$0xf]
  %v46 = vld [vmem:[%s1 + $0x64] sm:$0xf]
  %v47 = vld [vmem:[%s1 + $0x68] sm:$0xf]
  %v48 = vld [vmem:[%s1 + $0x6c] sm:$0xf]
  %v49 = vld [vmem:[%s1 + $0x70] sm:$0xf]
  %v50 = vld [vmem:[%s1 + $0x74] sm:$0xf]
  %v51 = vld [vmem:[%s1 + $0x78] sm:$0xf]
  %v52 = vld [vmem:[%s1 + $0x7c] sm:$0xf]
  %v53 = vld [vmem:[%s2] sm:$0x1]
  %v55 = vlaneseq
  %v56 = vshrl.u32 %v55, 7
  %v57 = vsub.s32 0, %v56
  %v58 = vrot.slane %v53, %v57
  %v92 = vunpack.c.l.b16 %v21
  %v93 = vunpack.c.l.b16 %v22
  %v94 = vunpack.c.l.b16 %v23
  %v95 = vunpack.c.l.b16 %v24
  %v96 = vunpack.c.l.b16 %v25
  %v97 = vunpack.c.l.b16 %v26
  %v98 = vunpack.c.l.b16 %v27
  %v99 = vunpack.c.l.b16 %v28
  %v100 = vunpack.c.l.b16 %v29
  %v101 = vunpack.c.l.b16 %v30
  %v102 = vunpack.c.l.b16 %v31
  %v103 = vunpack.c.l.b16 %v32
  %v104 = vunpack.c.l.b16 %v33
  %v105 = vunpack.c.l.b16 %v34
  %v106 = vunpack.c.l.b16 %v35
  %v107 = vunpack.c.l.b16 %v36
  %v108 = vunpack.c.l.b16 %v37
  %v109 = vunpack.c.l.b16 %v38
  %v110 = vunpack.c.l.b16 %v39
  %v111 = vunpack.c.l.b16 %v40
  %v112 = vunpack.c.l.b16 %v41
  %v113 = vunpack.c.l.b16 %v42
  %v114 = vunpack.c.l.b16 %v43
  %v115 = vunpack.c.l.b16 %v44
  %v116 = vunpack.c.l.b16 %v45
  %v117 = vunpack.c.l.b16 %v46
  %v118 = vunpack.c.l.b16 %v47
  %v119 = vunpack.c.l.b16 %v48
  %v120 = vunpack.c.l.b16 %v49
  %v121 = vunpack.c.l.b16 %v50
  %v122 = vunpack.c.l.b16 %v51
  %v123 = vunpack.c.l.b16 %v52
  %v124 = vpack.c.b16 %v93, %v92
  %v125 = vpack.c.b16 %v95, %v94
  %v126 = vpack.c.b16 %v97, %v96
  %v127 = vpack.c.b16 %v99, %v98
  %v128 = vpack.c.b16 %v101, %v100
  %v129 = vpack.c.b16 %v103, %v102
  %v130 = vpack.c.b16 %v105, %v104
  %v131 = vpack.c.b16 %v107, %v106
  %v132 = vpack.c.b16 %v109, %v108
  %v133 = vpack.c.b16 %v111, %v110
  %v134 = vpack.c.b16 %v113, %v112
  %v135 = vpack.c.b16 %v115, %v114
  %v136 = vpack.c.b16 %v117, %v116
  %v137 = vpack.c.b16 %v119, %v118
  %v138 = vpack.c.b16 %v121, %v120
  %v139 = vpack.c.b16 %v123, %v122
  %156 = vmatprep.subr.bf16.mxu0 0
  %157 = vmatpush1.bf16.msra.mxu0 %v124
  %158 = vmatprep.subr.bf16.mxu0 0
  %159 = vmatpush1.bf16.msra.mxu0 %v125
  %160 = vmatprep.subr.bf16.mxu0 0
  %161 = vmatpush1.bf16.msra.mxu0 %v126
  %162 = vmatprep.subr.bf16.mxu0 0
  %163 = vmatpush1.bf16.msra.mxu0 %v127
  %164 = vmatprep.subr.bf16.mxu0 0
  %165 = vmatpush1.bf16.msra.mxu0 %v128
  %166 = vmatprep.subr.bf16.mxu0 0
  %167 = vmatpush1.bf16.msra.mxu0 %v129
  %168 = vmatprep.subr.bf16.mxu0 0
  %169 = vmatpush1.bf16.msra.mxu0 %v130
  %170 = vmatprep.subr.bf16.mxu0 0
  %171 = vmatpush1.bf16.msra.mxu0 %v131
  %172 = vmatprep.subr.bf16.mxu0 0
  %173 = vmatpush1.bf16.msra.mxu0 %v132
  %174 = vmatprep.subr.bf16.mxu0 0
  %175 = vmatpush1.bf16.msra.mxu0 %v133
  %176 = vmatprep.subr.bf16.mxu0 0
  %177 = vmatpush1.bf16.msra.mxu0 %v134
  %178 = vmatprep.subr.bf16.mxu0 0
  %179 = vmatpush1.bf16.msra.mxu0 %v135
  %180 = vmatprep.subr.bf16.mxu0 0
  %181 = vmatpush1.bf16.msra.mxu0 %v136
  %182 = vmatprep.subr.bf16.mxu0 0
  %183 = vmatpush1.bf16.msra.mxu0 %v137
  %184 = vmatprep.subr.bf16.mxu0 0
  %185 = vmatpush1.bf16.msra.mxu0 %v138
  %186 = vmatprep.subr.bf16.mxu0 0
  %187 = vmatpush1.bf16.msra.mxu0 %v139
  %188 = vmatprep.mubr.bf16.mxu0 %v20
  %189 = vmatmul.mubr.bf16.gmra.mrb[0].mxu0 %v19
  %v190 = vpop.f32.mrb[0].mxu0
  %v191 = vadd.f32 %v58, %v190
  %v192 = vpop.f32.mrb[0].mxu0
  %v193 = vpop.f32.mrb[0].mxu0
  %v194 = vadd.f32 %v58, %v193
  %v195 = vpop.f32.mrb[0].mxu0
  %196 = vdwg.mxu0
  %vm197 = vcmask 203776
  %198 = vst.msk [vmem:[%s3] sm:$0xff] %vm197, %v191
  %199 = vst.msk [vmem:[%s3 + $0x8] sm:$0xff] %vm197, %v194
  // Predicated region
  $region14: #{capsulenet_forward.21} parent=0 // pred_check
    _
  $region15: #{capsulenet_forward.21} parent=0 // pred_check_branch
    %201 = sbr.rel (0) target = $region17
  $region16: #{capsulenet_forward.21} parent=0 // pred_region
    _
  $region17: #{capsulenet_forward.21} parent=0 // pred_fallthru
    _
  // Predicated region
  $region18: #{capsulenet_forward.21} parent=0 // pred_check
    _
  $region19: #{capsulenet_forward.21} parent=0 // pred_check_branch
    %203 = sbr.rel (0) target = $region21
  $region20: #{capsulenet_forward.21} parent=0 // pred_region
    _
  $region21: #{capsulenet_forward.21} parent=0 // pred_fallthru
    _

// kernel: capsulenet_forward.23
$region0: #{capsulenet_forward.23}
  #allocation0 [shape = 'u32[]', space=smem, size = 0x4, offset = 0x4, fixed_abs, tag = 'smem constant byte address 0x4 - core index']
  #allocation1 [shape = 'u32[144,128]{1,0:T(1,128)}', space=vmem, size = 0x12000, scoped, tag = 'internal scratch']
  %s0 = inlined_call_operand.vmem [shape: f32[8,2,256], index: 0, kind: input, shape index: {}]
  %s1 = inlined_call_operand.vmem [shape: f32[1,1,256], index: 1, kind: input, shape index: {}]
  %s2 = inlined_call_operand.vmem [shape: f32[8,1,1], index: 2, kind: input, shape index: {}]
  %s3 = inlined_call_operand.vmem [shape: f32[2,256], index: 3, kind: output, shape index: {}]
  %s4 = sld [smem:[#allocation0]]
  $region22: #{capsulenet_forward.23} parent=0
    _
  %s6 = ssub.s32 1, %s4
  %s7 = scalar_select 0, %s6, %s4
  // Predicated region
  $region2: #{capsulenet_forward.23} parent=0 // pred_check
    _
  $region3: #{capsulenet_forward.23} parent=0 // pred_check_branch
    %9 = sbr.rel (0) target = $region5
  $region4: #{capsulenet_forward.23} parent=0 // pred_region
    _
  $region5: #{capsulenet_forward.23} parent=0 // pred_fallthru
    _
  // Predicated region
  $region6: #{capsulenet_forward.23} parent=0 // pred_check
    _
  $region7: #{capsulenet_forward.23} parent=0 // pred_check_branch
    %11 = sbr.rel (0) target = $region9
  $region8: #{capsulenet_forward.23} parent=0 // pred_region
    _
  $region9: #{capsulenet_forward.23} parent=0 // pred_fallthru
    _
  // Predicated region
  $region10: #{capsulenet_forward.23} parent=0 // pred_check
    _
  $region11: #{capsulenet_forward.23} parent=0 // pred_check_branch
    %13 = sbr.rel (0) target = $region13
  $region12: #{capsulenet_forward.23} parent=0 // pred_region
    _
  $region13: #{capsulenet_forward.23} parent=0 // pred_fallthru
    _
  %v14 = vld [vmem:[%s0] sm:$0xf]
  %v15 = vld [vmem:[%s0 + $0x4] sm:$0xf]
  %v16 = vld [vmem:[%s0 + $0x8] sm:$0xf]
  %v17 = vld [vmem:[%s0 + $0xc] sm:$0xf]
  %v18 = vld [vmem:[%s0 + $0x10] sm:$0xf]
  %v19 = vld [vmem:[%s0 + $0x14] sm:$0xf]
  %v20 = vld [vmem:[%s0 + $0x18] sm:$0xf]
  %v21 = vld [vmem:[%s0 + $0x1c] sm:$0xf]
  %v22 = vld [vmem:[%s1] sm:$0x3]
  %v23 = vld [vmem:[%s2] sm:$0x1]
  %v24 = vld [vmem:[%s2 + $0x1] sm:$0x1]
  %v25 = vld [vmem:[%s2 + $0x2] sm:$0x1]
  %v26 = vld [vmem:[%s2 + $0x3] sm:$0x1]
  %v27 = vld [vmem:[%s2 + $0x4] sm:$0x1]
  %v28 = vld [vmem:[%s2 + $0x5] sm:$0x1]
  %v29 = vld [vmem:[%s2 + $0x6] sm:$0x1]
  %v30 = vld [vmem:[%s2 + $0x7] sm:$0x1]
  %v32 = vlaneseq
  %v33 = vshrl.u32 %v32, 7
  %v34 = vsub.s32 0, %v33
  %v35 = vrot.slane %v22, %v34
  %v36 = vlaneseq
  %v37 = vshrl.u32 %v36, 7
  %v38 = vsub.s32 1, %v37
  %v39 = vrot.slane %v22, %v38
  %v40 = vcombine.low %v35, %v39
  %v42 = vunpack.c.l.s4 1983009808
  %v43 = vunpack.c.0.s8 %v42
  %v44 = vlaneseq
  %v45 = vshrl.u32 %v44, 7
  %v46 = vsub.s32 %v43, %v45
  %v47 = vrot.slane %v40, %v46
  %v49 = vmul.f32 %v14, %v47
  %v50 = vmul.f32 %v15, %v47
  %v51 = vmul.f32 %v16, %v47
  %v52 = vmul.f32 %v17, %v47
  %v53 = vmul.f32 %v18, %v47
  %v54 = vmul.f32 %v19, %v47
  %v55 = vmul.f32 %v20, %v47
  %v56 = vmul.f32 %v21, %v47
  %v66 = vunpack.c.l.s4 1983009808
  %v67 = vunpack.c.0.s8 %v66
  %v68 = vlaneseq
  %v69 = vshrl.u32 %v68, 7
  %v70 = vsub.s32 %v67, %v69
  %v71 = vrot.slane %v49, %v70
  %v72 = vcombine.high %v71, %v71
  %v74 = vunpack.c.l.s4 1983009808
  %v75 = vunpack.c.0.s8 %v74
  %v76 = vlaneseq
  %v77 = vshrl.u32 %v76, 7
  %v78 = vsub.s32 %v75, %v77
  %v79 = vrot.slane %v50, %v78
  %v80 = vcombine.high %v79, %v79
  %v82 = vunpack.c.l.s4 1983009808
  %v83 = vunpack.c.0.s8 %v82
  %v84 = vlaneseq
  %v85 = vshrl.u32 %v84, 7
  %v86 = vsub.s32 %v83, %v85
  %v87 = vrot.slane %v51, %v86
  %v88 = vcombine.high %v87, %v87
  %v90 = vunpack.c.l.s4 1983009808
  %v91 = vunpack.c.0.s8 %v90
  %v92 = vlaneseq
  %v93 = vshrl.u32 %v92, 7
  %v94 = vsub.s32 %v91, %v93
  %v95 = vrot.slane %v52, %v94
  %v96 = vcombine.high %v95, %v95
  %v98 = vunpack.c.l.s4 1983009808
  %v99 = vunpack.c.0.s8 %v98
  %v100 = vlaneseq
  %v101 = vshrl.u32 %v100, 7
  %v102 = vsub.s32 %v99, %v101
  %v103 = vrot.slane %v53, %v102
  %v104 = vcombine.high %v103, %v103
  %v106 = vunpack.c.l.s4 1983009808
  %v107 = vunpack.c.0.s8 %v106
  %v108 = vlaneseq
  %v109 = vshrl.u32 %v108, 7
  %v110 = vsub.s32 %v107, %v109
  %v111 = vrot.slane %v54, %v110
  %v112 = vcombine.high %v111, %v111
  %v114 = vunpack.c.l.s4 1983009808
  %v115 = vunpack.c.0.s8 %v114
  %v116 = vlaneseq
  %v117 = vshrl.u32 %v116, 7
  %v118 = vsub.s32 %v115, %v117
  %v119 = vrot.slane %v55, %v118
  %v120 = vcombine.high %v119, %v119
  %v122 = vunpack.c.l.s4 1983009808
  %v123 = vunpack.c.0.s8 %v122
  %v124 = vlaneseq
  %v125 = vshrl.u32 %v124, 7
  %v126 = vsub.s32 %v123, %v125
  %v127 = vrot.slane %v56, %v126
  %v128 = vcombine.high %v127, %v127
  %vm145 = vcmask 1041408
  %v146 = vsel %vm145, %v71, 0.0
  %v147 = vsel %vm145, %v72, 0.0
  %v148 = vadd.f32 %v146, %v147
  %149 = vadd.xlane.f32.xlu0 %v148
  %v150 = vpop.xlane.xlu0 %149
  %v151 = vsel %vm145, %v79, 0.0
  %v152 = vsel %vm145, %v80, 0.0
  %v153 = vadd.f32 %v151, %v152
  %154 = vadd.xlane.f32.xlu0 %v153
  %v155 = vpop.xlane.xlu0 %154
  %v156 = vsel %vm145, %v87, 0.0
  %v157 = vsel %vm145, %v88, 0.0
  %v158 = vadd.f32 %v156, %v157
  %159 = vadd.xlane.f32.xlu0 %v158
  %v160 = vpop.xlane.xlu0 %159
  %v161 = vsel %vm145, %v95, 0.0
  %v162 = vsel %vm145, %v96, 0.0
  %v163 = vadd.f32 %v161, %v162
  %164 = vadd.xlane.f32.xlu0 %v163
  %v165 = vpop.xlane.xlu0 %164
  %v166 = vsel %vm145, %v103, 0.0
  %v167 = vsel %vm145, %v104, 0.0
  %v168 = vadd.f32 %v166, %v167
  %169 = vadd.xlane.f32.xlu0 %v168
  %v170 = vpop.xlane.xlu0 %169
  %v171 = vsel %vm145, %v111, 0.0
  %v172 = vsel %vm145, %v112, 0.0
  %v173 = vadd.f32 %v171, %v172
  %174 = vadd.xlane.f32.xlu0 %v173
  %v175 = vpop.xlane.xlu0 %174
  %v176 = vsel %vm145, %v119, 0.0
  %v177 = vsel %vm145, %v120, 0.0
  %v178 = vadd.f32 %v176, %v177
  %179 = vadd.xlane.f32.xlu0 %v178
  %v180 = vpop.xlane.xlu0 %179
  %v181 = vsel %vm145, %v127, 0.0
  %v182 = vsel %vm145, %v128, 0.0
  %v183 = vadd.f32 %v181, %v182
  %184 = vadd.xlane.f32.xlu0 %v183
  %v185 = vpop.xlane.xlu0 %184
  %v194 = vlaneseq
  %v195 = vshrl.u32 %v194, 7
  %v196 = vsub.s32 0, %v195
  %v197 = vrot.slane %v23, %v196
  %v198 = vlaneseq
  %v199 = vshrl.u32 %v198, 7
  %v200 = vsub.s32 0, %v199
  %v201 = vrot.slane %v24, %v200
  %v202 = vlaneseq
  %v203 = vshrl.u32 %v202, 7
  %v204 = vsub.s32 0, %v203
  %v205 = vrot.slane %v25, %v204
  %v206 = vlaneseq
  %v207 = vshrl.u32 %v206, 7
  %v208 = vsub.s32 0, %v207
  %v209 = vrot.slane %v26, %v208
  %v210 = vlaneseq
  %v211 = vshrl.u32 %v210, 7
  %v212 = vsub.s32 0, %v211
  %v213 = vrot.slane %v27, %v212
  %v214 = vlaneseq
  %v215 = vshrl.u32 %v214, 7
  %v216 = vsub.s32 0, %v215
  %v217 = vrot.slane %v28, %v216
  %v218 = vlaneseq
  %v219 = vshrl.u32 %v218, 7
  %v220 = vsub.s32 0, %v219
  %v221 = vrot.slane %v29, %v220
  %v222 = vlaneseq
  %v223 = vshrl.u32 %v222, 7
  %v224 = vsub.s32 0, %v223
  %v225 = vrot.slane %v30, %v224
  %v234 = vadd.f32 %v150, %v197
  %v235 = vadd.f32 %v155, %v201
  %v236 = vadd.f32 %v160, %v205
  %v237 = vadd.f32 %v165, %v209
  %v238 = vadd.f32 %v170, %v213
  %v239 = vadd.f32 %v175, %v217
  %v240 = vadd.f32 %v180, %v221
  %v241 = vadd.f32 %v185, %v225
  %v242 = vtanh.pop %v234
  %v243 = vtanh.pop %v235
  %v244 = vtanh.pop %v236
  %v245 = vtanh.pop %v237
  %v246 = vtanh.pop %v238
  %v247 = vtanh.pop %v239
  %v248 = vtanh.pop %v240
  %v249 = vtanh.pop %v241
  %v250 = vmul.f32 %v242, 1.442695
  %v251 = vpow.pop %v250
  %v252 = vmul.f32 %v243, 1.442695
  %v253 = vpow.pop %v252
  %v254 = vmul.f32 %v244, 1.442695
  %v255 = vpow.pop %v254
  %v256 = vmul.f32 %v245, 1.442695
  %v257 = vpow.pop %v256
  %v258 = vmul.f32 %v246, 1.442695
  %v259 = vpow.pop %v258
  %v260 = vmul.f32 %v247, 1.442695
  %v261 = vpow.pop %v260
  %v262 = vmul.f32 %v248, 1.442695
  %v263 = vpow.pop %v262
  %v264 = vmul.f32 %v249, 1.442695
  %v265 = vpow.pop %v264
  %vm266 = vcmask 1024
  %v267 = vsel %vm266, %v251, 0.0
  %v268 = vsel %vm266, %v253, 0.0
  %v269 = vadd.f32 %v267, %v268
  %v270 = vsel %vm266, %v255, 0.0
  %v271 = vadd.f32 %v269, %v270
  %v272 = vsel %vm266, %v257, 0.0
  %v273 = vadd.f32 %v271, %v272
  %v274 = vsel %vm266, %v259, 0.0
  %v275 = vadd.f32 %v273, %v274
  %v276 = vsel %vm266, %v261, 0.0
  %v277 = vadd.f32 %v275, %v276
  %v278 = vsel %vm266, %v263, 0.0
  %v279 = vadd.f32 %v277, %v278
  %v280 = vsel %vm266, %v265, 0.0
  %v281 = vadd.f32 %v279, %v280
  %v282 = vrcp.pop %v281
  %v283 = vmul.f32 %v251, %v282
  %v284 = vmul.f32 %v253, %v282
  %v285 = vmul.f32 %v255, %v282
  %v286 = vmul.f32 %v257, %v282
  %v287 = vmul.f32 %v259, %v282
  %v288 = vmul.f32 %v261, %v282
  %v289 = vmul.f32 %v263, %v282
  %v290 = vmul.f32 %v265, %v282
  %v291 = vadd.f32 %v283, 1e-10
  %v292 = vadd.f32 %v284, 1e-10
  %v293 = vadd.f32 %v285, 1e-10
  %v294 = vadd.f32 %v286, 1e-10
  %v295 = vadd.f32 %v287, 1e-10
  %v296 = vadd.f32 %v288, 1e-10
  %v297 = vadd.f32 %v289, 1e-10
  %v298 = vadd.f32 %v290, 1e-10
  %300 = vset.pattern.permute.xlu0 0
  %301 = vperm.xlu0 %300, %v291
  %v302 = vpop.permute.xlu0 %301
  %305 = vset.pattern.permute.xlu0 0
  %306 = vperm.xlu0 %305, %v292
  %v307 = vpop.permute.xlu0 %306
  %310 = vset.pattern.permute.xlu0 0
  %311 = vperm.xlu0 %310, %v293
  %v312 = vpop.permute.xlu0 %311
  %315 = vset.pattern.permute.xlu0 0
  %316 = vperm.xlu0 %315, %v294
  %v317 = vpop.permute.xlu0 %316
  %320 = vset.pattern.permute.xlu0 0
  %321 = vperm.xlu0 %320, %v295
  %v322 = vpop.permute.xlu0 %321
  %325 = vset.pattern.permute.xlu0 0
  %326 = vperm.xlu0 %325, %v296
  %v327 = vpop.permute.xlu0 %326
  %330 = vset.pattern.permute.xlu0 0
  %331 = vperm.xlu0 %330, %v297
  %v332 = vpop.permute.xlu0 %331
  %335 = vset.pattern.permute.xlu0 0
  %336 = vperm.xlu0 %335, %v298
  %v337 = vpop.permute.xlu0 %336
  %v348 = vunpack.c.l.s4 1983009808
  %v349 = vunpack.c.0.s8 %v348
  %v350 = vlaneseq
  %v351 = vshrl.u32 %v350, 7
  %v352 = vsub.s32 %v349, %v351
  %v353 = vrot.slane %v14, %v352
  %v354 = vcombine.high %v353, %v353
  %v356 = vunpack.c.l.s4 1983009808
  %v357 = vunpack.c.0.s8 %v356
  %v358 = vlaneseq
  %v359 = vshrl.u32 %v358, 7
  %v360 = vsub.s32 %v357, %v359
  %v361 = vrot.slane %v15, %v360
  %v362 = vcombine.high %v361, %v361
  %v364 = vunpack.c.l.s4 1983009808
  %v365 = vunpack.c.0.s8 %v364
  %v366 = vlaneseq
  %v367 = vshrl.u32 %v366, 7
  %v368 = vsub.s32 %v365, %v367
  %v369 = vrot.slane %v16, %v368
  %v370 = vcombine.high %v369, %v369
  %v372 = vunpack.c.l.s4 1983009808
  %v373 = vunpack.c.0.s8 %v372
  %v374 = vlaneseq
  %v375 = vshrl.u32 %v374, 7
  %v376 = vsub.s32 %v373, %v375
  %v377 = vrot.slane %v17, %v376
  %v378 = vcombine.high %v377, %v377
  %v380 = vunpack.c.l.s4 1983009808
  %v381 = vunpack.c.0.s8 %v380
  %v382 = vlaneseq
  %v383 = vshrl.u32 %v382, 7
  %v384 = vsub.s32 %v381, %v383
  %v385 = vrot.slane %v18, %v384
  %v386 = vcombine.high %v385, %v385
  %v388 = vunpack.c.l.s4 1983009808
  %v389 = vunpack.c.0.s8 %v388
  %v390 = vlaneseq
  %v391 = vshrl.u32 %v390, 7
  %v392 = vsub.s32 %v389, %v391
  %v393 = vrot.slane %v19, %v392
  %v394 = vcombine.high %v393, %v393
  %v396 = vunpack.c.l.s4 1983009808
  %v397 = vunpack.c.0.s8 %v396
  %v398 = vlaneseq
  %v399 = vshrl.u32 %v398, 7
  %v400 = vsub.s32 %v397, %v399
  %v401 = vrot.slane %v20, %v400
  %v402 = vcombine.high %v401, %v401
  %v404 = vunpack.c.l.s4 1983009808
  %v405 = vunpack.c.0.s8 %v404
  %v406 = vlaneseq
  %v407 = vshrl.u32 %v406, 7
  %v408 = vsub.s32 %v405, %v407
  %v409 = vrot.slane %v21, %v408
  %v410 = vcombine.high %v409, %v409
  %v427 = vmul.f32 %v302, %v353
  %v428 = vmul.f32 %v302, %v354
  %v429 = vmul.f32 %v307, %v361
  %v430 = vmul.f32 %v307, %v362
  %v431 = vmul.f32 %v312, %v369
  %v432 = vmul.f32 %v312, %v370
  %v433 = vmul.f32 %v317, %v377
  %v434 = vmul.f32 %v317, %v378
  %v435 = vmul.f32 %v322, %v385
  %v436 = vmul.f32 %v322, %v386
  %v437 = vmul.f32 %v327, %v393
  %v438 = vmul.f32 %v327, %v394
  %v439 = vmul.f32 %v332, %v401
  %v440 = vmul.f32 %v332, %v402
  %v441 = vmul.f32 %v337, %v409
  %v442 = vmul.f32 %v337, %v410
  %v443 = vsel %vm145, %v427, 0.0
  %v444 = vsel %vm145, %v429, 0.0
  %v445 = vadd.f32 %v443, %v444
  %v446 = vsel %vm145, %v431, 0.0
  %v447 = vadd.f32 %v445, %v446
  %v448 = vsel %vm145, %v433, 0.0
  %v449 = vadd.f32 %v447, %v448
  %v450 = vsel %vm145, %v435, 0.0
  %v451 = vadd.f32 %v449, %v450
  %v452 = vsel %vm145, %v437, 0.0
  %v453 = vadd.f32 %v451, %v452
  %v454 = vsel %vm145, %v439, 0.0
  %v455 = vadd.f32 %v453, %v454
  %v456 = vsel %vm145, %v441, 0.0
  %v457 = vadd.f32 %v455, %v456
  %v458 = vsel %vm145, %v428, 0.0
  %v459 = vsel %vm145, %v430, 0.0
  %v460 = vadd.f32 %v458, %v459
  %v461 = vsel %vm145, %v432, 0.0
  %v462 = vadd.f32 %v460, %v461
  %v463 = vsel %vm145, %v434, 0.0
  %v464 = vadd.f32 %v462, %v463
  %v465 = vsel %vm145, %v436, 0.0
  %v466 = vadd.f32 %v464, %v465
  %v467 = vsel %vm145, %v438, 0.0
  %v468 = vadd.f32 %v466, %v467
  %v469 = vsel %vm145, %v440, 0.0
  %v470 = vadd.f32 %v468, %v469
  %v471 = vsel %vm145, %v442, 0.0
  %v472 = vadd.f32 %v470, %v471
  %v475 = vcombine.low %v457, %v472
  %v477 = vunpack.c.l.s4 1983009808
  %v478 = vunpack.c.0.s8 %v477
  %v479 = vlaneseq
  %v480 = vshrl.u32 %v479, 7
  %v481 = vsub.s32 %v478, %v480
  %v482 = vrot.slane %v475, %v481
  %484 = vst [vmem:[%s3] sm:$0xf] %v482
  // Predicated region
  $region14: #{capsulenet_forward.23} parent=0 // pred_check
    _
  $region15: #{capsulenet_forward.23} parent=0 // pred_check_branch
    %486 = sbr.rel (0) target = $region17
  $region16: #{capsulenet_forward.23} parent=0 // pred_region
    _
  $region17: #{capsulenet_forward.23} parent=0 // pred_fallthru
    _
  // Predicated region
  $region18: #{capsulenet_forward.23} parent=0 // pred_check
    _
  $region19: #{capsulenet_forward.23} parent=0 // pred_check_branch
    %488 = sbr.rel (0) target = $region21
  $region20: #{capsulenet_forward.23} parent=0 // pred_region
    _
  $region21: #{capsulenet_forward.23} parent=0 // pred_fallthru
    _

// kernel: capsulenet_forward.22
$region0: #{capsulenet_forward.22}
  #allocation0 [shape = 'u32[]', space=smem, size = 0x4, offset = 0x4, fixed_abs, tag = 'smem constant byte address 0x4 - core index']
  #allocation1 [shape = 'u32[144,128]{1,0:T(1,128)}', space=vmem, size = 0x12000, scoped, tag = 'internal scratch']
  %s0 = inlined_call_operand.vmem [shape: f32[2,5,8,5], index: 0, kind: input, shape index: {}]
  %s1 = inlined_call_operand.vmem [shape: f32[2,5,1,5], index: 1, kind: output, shape index: {}]
  %s2 = sld [smem:[#allocation0]]
  $region14: #{capsulenet_forward.22} parent=0
    _
  %s4 = ssub.s32 1, %s2
  %s5 = scalar_select 0, %s4, %s2
  // Predicated region
  $region2: #{capsulenet_forward.22} parent=0 // pred_check
    _
  $region3: #{capsulenet_forward.22} parent=0 // pred_check_branch
    %7 = sbr.rel (0) target = $region5
  $region4: #{capsulenet_forward.22} parent=0 // pred_region
    _
  $region5: #{capsulenet_forward.22} parent=0 // pred_fallthru
    _
  %v8 = vld [vmem:[%s0] sm:$0xff]
  %v9 = vld [vmem:[%s0 + $0x8] sm:$0xff]
  %v10 = vld [vmem:[%s0 + $0x10] sm:$0xff]
  %v11 = vld [vmem:[%s0 + $0x18] sm:$0xff]
  %v12 = vld [vmem:[%s0 + $0x20] sm:$0xff]
  %v13 = vld [vmem:[%s0 + $0x28] sm:$0xff]
  %v14 = vld [vmem:[%s0 + $0x30] sm:$0xff]
  %v15 = vld [vmem:[%s0 + $0x38] sm:$0xff]
  %v16 = vld [vmem:[%s0 + $0x40] sm:$0xff]
  %v17 = vld [vmem:[%s0 + $0x48] sm:$0xff]
  %v18 = vmul.f32 %v8, 0.2
  %v19 = vmul.f32 %v9, 0.2
  %v20 = vmul.f32 %v10, 0.2
  %v21 = vmul.f32 %v11, 0.2
  %v22 = vmul.f32 %v12, 0.2
  %v23 = vmul.f32 %v13, 0.2
  %v24 = vmul.f32 %v14, 0.2
  %v25 = vmul.f32 %v15, 0.2
  %v26 = vmul.f32 %v16, 0.2
  %v27 = vmul.f32 %v17, 0.2
  %vm28 = vcmask 39936
  %v29 = vsel %vm28, %v18, 0.0
  %v30 = vrot.slane %v29, 4
  %v31 = vadd.f32 %v29, %v30
  %v32 = vrot.slane %v31, 2
  %v33 = vadd.f32 %v31, %v32
  %v34 = vrot.slane %v33, 1
  %v35 = vadd.f32 %v33, %v34
  %v36 = vsel %vm28, %v19, 0.0
  %v37 = vrot.slane %v36, 4
  %v38 = vadd.f32 %v36, %v37
  %v39 = vrot.slane %v38, 2
  %v40 = vadd.f32 %v38, %v39
  %v41 = vrot.slane %v40, 1
  %v42 = vadd.f32 %v40, %v41
  %v43 = vsel %vm28, %v20, 0.0
  %v44 = vrot.slane %v43, 4
  %v45 = vadd.f32 %v43, %v44
  %v46 = vrot.slane %v45, 2
  %v47 = vadd.f32 %v45, %v46
  %v48 = vrot.slane %v47, 1
  %v49 = vadd.f32 %v47, %v48
  %v50 = vsel %vm28, %v21, 0.0
  %v51 = vrot.slane %v50, 4
  %v52 = vadd.f32 %v50, %v51
  %v53 = vrot.slane %v52, 2
  %v54 = vadd.f32 %v52, %v53
  %v55 = vrot.slane %v54, 1
  %v56 = vadd.f32 %v54, %v55
  %v57 = vsel %vm28, %v22, 0.0
  %v58 = vrot.slane %v57, 4
  %v59 = vadd.f32 %v57, %v58
  %v60 = vrot.slane %v59, 2
  %v61 = vadd.f32 %v59, %v60
  %v62 = vrot.slane %v61, 1
  %v63 = vadd.f32 %v61, %v62
  %v64 = vsel %vm28, %v23, 0.0
  %v65 = vrot.slane %v64, 4
  %v66 = vadd.f32 %v64, %v65
  %v67 = vrot.slane %v66, 2
  %v68 = vadd.f32 %v66, %v67
  %v69 = vrot.slane %v68, 1
  %v70 = vadd.f32 %v68, %v69
  %v71 = vsel %vm28, %v24, 0.0
  %v72 = vrot.slane %v71, 4
  %v73 = vadd.f32 %v71, %v72
  %v74 = vrot.slane %v73, 2
  %v75 = vadd.f32 %v73, %v74
  %v76 = vrot.slane %v75, 1
  %v77 = vadd.f32 %v75, %v76
  %v78 = vsel %vm28, %v25, 0.0
  %v79 = vrot.slane %v78, 4
  %v80 = vadd.f32 %v78, %v79
  %v81 = vrot.slane %v80, 2
  %v82 = vadd.f32 %v80, %v81
  %v83 = vrot.slane %v82, 1
  %v84 = vadd.f32 %v82, %v83
  %v85 = vsel %vm28, %v26, 0.0
  %v86 = vrot.slane %v85, 4
  %v87 = vadd.f32 %v85, %v86
  %v88 = vrot.slane %v87, 2
  %v89 = vadd.f32 %v87, %v88
  %v90 = vrot.slane %v89, 1
  %v91 = vadd.f32 %v89, %v90
  %v92 = vsel %vm28, %v27, 0.0
  %v93 = vrot.slane %v92, 4
  %v94 = vadd.f32 %v92, %v93
  %v95 = vrot.slane %v94, 2
  %v96 = vadd.f32 %v94, %v95
  %v97 = vrot.slane %v96, 1
  %v98 = vadd.f32 %v96, %v97
  %v99 = vmul.f32 %v35, %v35
  %v100 = vmul.f32 %v42, %v42
  %v101 = vmul.f32 %v49, %v49
  %v102 = vmul.f32 %v56, %v56
  %v103 = vmul.f32 %v63, %v63
  %v104 = vmul.f32 %v70, %v70
  %v105 = vmul.f32 %v77, %v77
  %v106 = vmul.f32 %v84, %v84
  %v107 = vmul.f32 %v91, %v91
  %v108 = vmul.f32 %v98, %v98
  %v109 = vsel %vm28, %v99, 0.0
  %110 = vadd.xlane.f32.xlu0 %v109
  %v111 = vpop.xlane.xlu0 %110
  %v112 = vsel %vm28, %v100, 0.0
  %113 = vadd.xlane.f32.xlu0 %v112
  %v114 = vpop.xlane.xlu0 %113
  %v115 = vsel %vm28, %v101, 0.0
  %116 = vadd.xlane.f32.xlu0 %v115
  %v117 = vpop.xlane.xlu0 %116
  %v118 = vsel %vm28, %v102, 0.0
  %119 = vadd.xlane.f32.xlu0 %v118
  %v120 = vpop.xlane.xlu0 %119
  %v121 = vsel %vm28, %v103, 0.0
  %122 = vadd.xlane.f32.xlu0 %v121
  %v123 = vpop.xlane.xlu0 %122
  %v124 = vsel %vm28, %v104, 0.0
  %125 = vadd.xlane.f32.xlu0 %v124
  %v126 = vpop.xlane.xlu0 %125
  %v127 = vsel %vm28, %v105, 0.0
  %128 = vadd.xlane.f32.xlu0 %v127
  %v129 = vpop.xlane.xlu0 %128
  %v130 = vsel %vm28, %v106, 0.0
  %131 = vadd.xlane.f32.xlu0 %v130
  %v132 = vpop.xlane.xlu0 %131
  %v133 = vsel %vm28, %v107, 0.0
  %134 = vadd.xlane.f32.xlu0 %v133
  %v135 = vpop.xlane.xlu0 %134
  %v136 = vsel %vm28, %v108, 0.0
  %137 = vadd.xlane.f32.xlu0 %v136
  %v138 = vpop.xlane.xlu0 %137
  %v139 = vadd.f32 %v111, 1e-07
  %v140 = vadd.f32 %v114, 1e-07
  %v141 = vadd.f32 %v117, 1e-07
  %v142 = vadd.f32 %v120, 1e-07
  %v143 = vadd.f32 %v123, 1e-07
  %v144 = vadd.f32 %v126, 1e-07
  %v145 = vadd.f32 %v129, 1e-07
  %v146 = vadd.f32 %v132, 1e-07
  %v147 = vadd.f32 %v135, 1e-07
  %v148 = vadd.f32 %v138, 1e-07
  %v149 = vrsqrt.pop %v139
  %v150 = vmul.f32 %v139, %v149
  %vm151 = vcmp.eq.f32.partialorder %v139, inf
  %v152 = vsel %vm151, %v139, %v150
  %vm153 = vcmp.eq.f32.partialorder %v139, 0.0
  %v154 = vand.u32 %v139, 2147483648
  %v155 = vsel %vm153, %v154, %v152
  %v156 = vrsqrt.pop %v140
  %v157 = vmul.f32 %v140, %v156
  %vm158 = vcmp.eq.f32.partialorder %v140, inf
  %v159 = vsel %vm158, %v140, %v157
  %vm160 = vcmp.eq.f32.partialorder %v140, 0.0
  %v161 = vand.u32 %v140, 2147483648
  %v162 = vsel %vm160, %v161, %v159
  %v163 = vrsqrt.pop %v141
  %v164 = vmul.f32 %v141, %v163
  %vm165 = vcmp.eq.f32.partialorder %v141, inf
  %v166 = vsel %vm165, %v141, %v164
  %vm167 = vcmp.eq.f32.partialorder %v141, 0.0
  %v168 = vand.u32 %v141, 2147483648
  %v169 = vsel %vm167, %v168, %v166
  %v170 = vrsqrt.pop %v142
  %v171 = vmul.f32 %v142, %v170
  %vm172 = vcmp.eq.f32.partialorder %v142, inf
  %v173 = vsel %vm172, %v142, %v171
  %vm174 = vcmp.eq.f32.partialorder %v142, 0.0
  %v175 = vand.u32 %v142, 2147483648
  %v176 = vsel %vm174, %v175, %v173
  %v177 = vrsqrt.pop %v143
  %v178 = vmul.f32 %v143, %v177
  %vm179 = vcmp.eq.f32.partialorder %v143, inf
  %v180 = vsel %vm179, %v143, %v178
  %vm181 = vcmp.eq.f32.partialorder %v143, 0.0
  %v182 = vand.u32 %v143, 2147483648
  %v183 = vsel %vm181, %v182, %v180
  %v184 = vrsqrt.pop %v144
  %v185 = vmul.f32 %v144, %v184
  %vm186 = vcmp.eq.f32.partialorder %v144, inf
  %v187 = vsel %vm186, %v144, %v185
  %vm188 = vcmp.eq.f32.partialorder %v144, 0.0
  %v189 = vand.u32 %v144, 2147483648
  %v190 = vsel %vm188, %v189, %v187
  %v191 = vrsqrt.pop %v145
  %v192 = vmul.f32 %v145, %v191
  %vm193 = vcmp.eq.f32.partialorder %v145, inf
  %v194 = vsel %vm193, %v145, %v192
  %vm195 = vcmp.eq.f32.partialorder %v145, 0.0
  %v196 = vand.u32 %v145, 2147483648
  %v197 = vsel %vm195, %v196, %v194
  %v198 = vrsqrt.pop %v146
  %v199 = vmul.f32 %v146, %v198
  %vm200 = vcmp.eq.f32.partialorder %v146, inf
  %v201 = vsel %vm200, %v146, %v199
  %vm202 = vcmp.eq.f32.partialorder %v146, 0.0
  %v203 = vand.u32 %v146, 2147483648
  %v204 = vsel %vm202, %v203, %v201
  %v205 = vrsqrt.pop %v147
  %v206 = vmul.f32 %v147, %v205
  %vm207 = vcmp.eq.f32.partialorder %v147, inf
  %v208 = vsel %vm207, %v147, %v206
  %vm209 = vcmp.eq.f32.partialorder %v147, 0.0
  %v210 = vand.u32 %v147, 2147483648
  %v211 = vsel %vm209, %v210, %v208
  %v212 = vrsqrt.pop %v148
  %v213 = vmul.f32 %v148, %v212
  %vm214 = vcmp.eq.f32.partialorder %v148, inf
  %v215 = vsel %vm214, %v148, %v213
  %vm216 = vcmp.eq.f32.partialorder %v148, 0.0
  %v217 = vand.u32 %v148, 2147483648
  %v218 = vsel %vm216, %v217, %v215
  %v219 = vrcp.pop %v155
  %v220 = vmul.f32 %v35, %v219
  %v221 = vrcp.pop %v162
  %v222 = vmul.f32 %v42, %v221
  %v223 = vrcp.pop %v169
  %v224 = vmul.f32 %v49, %v223
  %v225 = vrcp.pop %v176
  %v226 = vmul.f32 %v56, %v225
  %v227 = vrcp.pop %v183
  %v228 = vmul.f32 %v63, %v227
  %v229 = vrcp.pop %v190
  %v230 = vmul.f32 %v70, %v229
  %v231 = vrcp.pop %v197
  %v232 = vmul.f32 %v77, %v231
  %v233 = vrcp.pop %v204
  %v234 = vmul.f32 %v84, %v233
  %v235 = vrcp.pop %v211
  %v236 = vmul.f32 %v91, %v235
  %v237 = vrcp.pop %v218
  %v238 = vmul.f32 %v98, %v237
  %v239 = vmul.f32 %v220, %v8
  %v240 = vmul.f32 %v222, %v9
  %v241 = vmul.f32 %v224, %v10
  %v242 = vmul.f32 %v226, %v11
  %v243 = vmul.f32 %v228, %v12
  %v244 = vmul.f32 %v230, %v13
  %v245 = vmul.f32 %v232, %v14
  %v246 = vmul.f32 %v234, %v15
  %v247 = vmul.f32 %v236, %v16
  %v248 = vmul.f32 %v238, %v17
  %v249 = vsel %vm28, %v239, 0.0
  %250 = vadd.xlane.f32.xlu0 %v249
  %v251 = vpop.xlane.xlu0 %250
  %v252 = vsel %vm28, %v240, 0.0
  %253 = vadd.xlane.f32.xlu0 %v252
  %v254 = vpop.xlane.xlu0 %253
  %v255 = vsel %vm28, %v241, 0.0
  %256 = vadd.xlane.f32.xlu0 %v255
  %v257 = vpop.xlane.xlu0 %256
  %v258 = vsel %vm28, %v242, 0.0
  %259 = vadd.xlane.f32.xlu0 %v258
  %v260 = vpop.xlane.xlu0 %259
  %v261 = vsel %vm28, %v243, 0.0
  %262 = vadd.xlane.f32.xlu0 %v261
  %v263 = vpop.xlane.xlu0 %262
  %v264 = vsel %vm28, %v244, 0.0
  %265 = vadd.xlane.f32.xlu0 %v264
  %v266 = vpop.xlane.xlu0 %265
  %v267 = vsel %vm28, %v245, 0.0
  %268 = vadd.xlane.f32.xlu0 %v267
  %v269 = vpop.xlane.xlu0 %268
  %v270 = vsel %vm28, %v246, 0.0
  %271 = vadd.xlane.f32.xlu0 %v270
  %v272 = vpop.xlane.xlu0 %271
  %v273 = vsel %vm28, %v247, 0.0
  %274 = vadd.xlane.f32.xlu0 %v273
  %v275 = vpop.xlane.xlu0 %274
  %v276 = vsel %vm28, %v248, 0.0
  %277 = vadd.xlane.f32.xlu0 %v276
  %v278 = vpop.xlane.xlu0 %277
  %v279 = vmax.f32 %v251, %v257
  %v280 = vmax.f32 %v254, %v260
  %v281 = vmax.f32 %v279, %v263
  %v282 = vmax.f32 %v281, %v280
  %v283 = vmax.f32 %v266, %v272
  %v284 = vmax.f32 %v269, %v275
  %v285 = vmax.f32 %v283, %v278
  %v286 = vmax.f32 %v285, %v284
  %v287 = vsub.f32 %v251, %v282
  %v288 = vsub.f32 %v254, %v282
  %v289 = vsub.f32 %v257, %v282
  %v290 = vsub.f32 %v260, %v282
  %v291 = vsub.f32 %v263, %v282
  %v292 = vsub.f32 %v266, %v286
  %v293 = vsub.f32 %v269, %v286
  %v294 = vsub.f32 %v272, %v286
  %v295 = vsub.f32 %v275, %v286
  %v296 = vsub.f32 %v278, %v286
  %v297 = vmul.f32 %v287, 1.442695
  %v298 = vpow.pop %v297
  %v299 = vmul.f32 %v288, 1.442695
  %v300 = vpow.pop %v299
  %v301 = vmul.f32 %v289, 1.442695
  %v302 = vpow.pop %v301
  %v303 = vmul.f32 %v290, 1.442695
  %v304 = vpow.pop %v303
  %v305 = vmul.f32 %v291, 1.442695
  %v306 = vpow.pop %v305
  %v307 = vmul.f32 %v292, 1.442695
  %v308 = vpow.pop %v307
  %v309 = vmul.f32 %v293, 1.442695
  %v310 = vpow.pop %v309
  %v311 = vmul.f32 %v294, 1.442695
  %v312 = vpow.pop %v311
  %v313 = vmul.f32 %v295, 1.442695
  %v314 = vpow.pop %v313
  %v315 = vmul.f32 %v296, 1.442695
  %v316 = vpow.pop %v315
  %v317 = vadd.f32 %v298, %v300
  %v318 = vadd.f32 %v317, %v302
  %v319 = vadd.f32 %v318, %v304
  %v320 = vadd.f32 %v319, %v306
  %v321 = vadd.f32 %v308, %v310
  %v322 = vadd.f32 %v321, %v312
  %v323 = vadd.f32 %v322, %v314
  %v324 = vadd.f32 %v323, %v316
  %v325 = vrcp.pop %v320
  %v326 = vmul.f32 %v298, %v325
  %v327 = vmul.f32 %v300, %v325
  %v328 = vmul.f32 %v302, %v325
  %v329 = vmul.f32 %v304, %v325
  %v330 = vmul.f32 %v306, %v325
  %v331 = vrcp.pop %v324
  %v332 = vmul.f32 %v308, %v331
  %v333 = vmul.f32 %v310, %v331
  %v334 = vmul.f32 %v312, %v331
  %v335 = vmul.f32 %v314, %v331
  %v336 = vmul.f32 %v316, %v331
  %v337 = vmul.f32 %v326, %v8
  %v338 = vmul.f32 %v327, %v9
  %v339 = vmul.f32 %v328, %v10
  %v340 = vmul.f32 %v329, %v11
  %v341 = vmul.f32 %v330, %v12
  %v342 = vmul.f32 %v332, %v13
  %v343 = vmul.f32 %v333, %v14
  %v344 = vmul.f32 %v334, %v15
  %v345 = vmul.f32 %v335, %v16
  %v346 = vmul.f32 %v336, %v17
  %v347 = vsel %vm28, %v337, 0.0
  %v348 = vrot.slane %v347, 4
  %v349 = vadd.f32 %v347, %v348
  %v350 = vrot.slane %v349, 2
  %v351 = vadd.f32 %v349, %v350
  %v352 = vrot.slane %v351, 1
  %v353 = vadd.f32 %v351, %v352
  %v354 = vsel %vm28, %v338, 0.0
  %v355 = vrot.slane %v354, 4
  %v356 = vadd.f32 %v354, %v355
  %v357 = vrot.slane %v356, 2
  %v358 = vadd.f32 %v356, %v357
  %v359 = vrot.slane %v358, 1
  %v360 = vadd.f32 %v358, %v359
  %v361 = vsel %vm28, %v339, 0.0
  %v362 = vrot.slane %v361, 4
  %v363 = vadd.f32 %v361, %v362
  %v364 = vrot.slane %v363, 2
  %v365 = vadd.f32 %v363, %v364
  %v366 = vrot.slane %v365, 1
  %v367 = vadd.f32 %v365, %v366
  %v368 = vsel %vm28, %v340, 0.0
  %v369 = vrot.slane %v368, 4
  %v370 = vadd.f32 %v368, %v369
  %v371 = vrot.slane %v370, 2
  %v372 = vadd.f32 %v370, %v371
  %v373 = vrot.slane %v372, 1
  %v374 = vadd.f32 %v372, %v373
  %v375 = vsel %vm28, %v341, 0.0
  %v376 = vrot.slane %v375, 4
  %v377 = vadd.f32 %v375, %v376
  %v378 = vrot.slane %v377, 2
  %v379 = vadd.f32 %v377, %v378
  %v380 = vrot.slane %v379, 1
  %v381 = vadd.f32 %v379, %v380
  %v382 = vsel %vm28, %v342, 0.0
  %v383 = vrot.slane %v382, 4
  %v384 = vadd.f32 %v382, %v383
  %v385 = vrot.slane %v384, 2
  %v386 = vadd.f32 %v384, %v385
  %v387 = vrot.slane %v386, 1
  %v388 = vadd.f32 %v386, %v387
  %v389 = vsel %vm28, %v343, 0.0
  %v390 = vrot.slane %v389, 4
  %v391 = vadd.f32 %v389, %v390
  %v392 = vrot.slane %v391, 2
  %v393 = vadd.f32 %v391, %v392
  %v394 = vrot.slane %v393, 1
  %v395 = vadd.f32 %v393, %v394
  %v396 = vsel %vm28, %v344, 0.0
  %v397 = vrot.slane %v396, 4
  %v398 = vadd.f32 %v396, %v397
  %v399 = vrot.slane %v398, 2
  %v400 = vadd.f32 %v398, %v399
  %v401 = vrot.slane %v400, 1
  %v402 = vadd.f32 %v400, %v401
  %v403 = vsel %vm28, %v345, 0.0
  %v404 = vrot.slane %v403, 4
  %v405 = vadd.f32 %v403, %v404
  %v406 = vrot.slane %v405, 2
  %v407 = vadd.f32 %v405, %v406
  %v408 = vrot.slane %v407, 1
  %v409 = vadd.f32 %v407, %v408
  %v410 = vsel %vm28, %v346, 0.0
  %v411 = vrot.slane %v410, 4
  %v412 = vadd.f32 %v410, %v411
  %v413 = vrot.slane %v412, 2
  %v414 = vadd.f32 %v412, %v413
  %v415 = vrot.slane %v414, 1
  %v416 = vadd.f32 %v414, %v415
  %v417 = vmul.f32 %v353, %v353
  %v418 = vmul.f32 %v360, %v360
  %v419 = vmul.f32 %v367, %v367
  %v420 = vmul.f32 %v374, %v374
  %v421 = vmul.f32 %v381, %v381
  %v422 = vmul.f32 %v388, %v388
  %v423 = vmul.f32 %v395, %v395
  %v424 = vmul.f32 %v402, %v402
  %v425 = vmul.f32 %v409, %v409
  %v426 = vmul.f32 %v416, %v416
  %v427 = vsel %vm28, %v417, 0.0
  %428 = vadd.xlane.f32.xlu0 %v427
  %v429 = vpop.xlane.xlu0 %428
  %v430 = vsel %vm28, %v418, 0.0
  %431 = vadd.xlane.f32.xlu0 %v430
  %v432 = vpop.xlane.xlu0 %431
  %v433 = vsel %vm28, %v419, 0.0
  %434 = vadd.xlane.f32.xlu0 %v433
  %v435 = vpop.xlane.xlu0 %434
  %v436 = vsel %vm28, %v420, 0.0
  %437 = vadd.xlane.f32.xlu0 %v436
  %v438 = vpop.xlane.xlu0 %437
  %v439 = vsel %vm28, %v421, 0.0
  %440 = vadd.xlane.f32.xlu0 %v439
  %v441 = vpop.xlane.xlu0 %440
  %v442 = vsel %vm28, %v422, 0.0
  %443 = vadd.xlane.f32.xlu0 %v442
  %v444 = vpop.xlane.xlu0 %443
  %v445 = vsel %vm28, %v423, 0.0
  %446 = vadd.xlane.f32.xlu0 %v445
  %v447 = vpop.xlane.xlu0 %446
  %v448 = vsel %vm28, %v424, 0.0
  %449 = vadd.xlane.f32.xlu0 %v448
  %v450 = vpop.xlane.xlu0 %449
  %v451 = vsel %vm28, %v425, 0.0
  %452 = vadd.xlane.f32.xlu0 %v451
  %v453 = vpop.xlane.xlu0 %452
  %v454 = vsel %vm28, %v426, 0.0
  %455 = vadd.xlane.f32.xlu0 %v454
  %v456 = vpop.xlane.xlu0 %455
  %v457 = vadd.f32 %v429, 1e-07
  %v458 = vadd.f32 %v432, 1e-07
  %v459 = vadd.f32 %v435, 1e-07
  %v460 = vadd.f32 %v438, 1e-07
  %v461 = vadd.f32 %v441, 1e-07
  %v462 = vadd.f32 %v444, 1e-07
  %v463 = vadd.f32 %v447, 1e-07
  %v464 = vadd.f32 %v450, 1e-07
  %v465 = vadd.f32 %v453, 1e-07
  %v466 = vadd.f32 %v456, 1e-07
  %v467 = vrsqrt.pop %v457
  %v468 = vmul.f32 %v457, %v467
  %vm469 = vcmp.eq.f32.partialorder %v457, inf
  %v470 = vsel %vm469, %v457, %v468
  %vm471 = vcmp.eq.f32.partialorder %v457, 0.0
  %v472 = vand.u32 %v457, 2147483648
  %v473 = vsel %vm471, %v472, %v470
  %v474 = vrsqrt.pop %v458
  %v475 = vmul.f32 %v458, %v474
  %vm476 = vcmp.eq.f32.partialorder %v458, inf
  %v477 = vsel %vm476, %v458, %v475
  %vm478 = vcmp.eq.f32.partialorder %v458, 0.0
  %v479 = vand.u32 %v458, 2147483648
  %v480 = vsel %vm478, %v479, %v477
  %v481 = vrsqrt.pop %v459
  %v482 = vmul.f32 %v459, %v481
  %vm483 = vcmp.eq.f32.partialorder %v459, inf
  %v484 = vsel %vm483, %v459, %v482
  %vm485 = vcmp.eq.f32.partialorder %v459, 0.0
  %v486 = vand.u32 %v459, 2147483648
  %v487 = vsel %vm485, %v486, %v484
  %v488 = vrsqrt.pop %v460
  %v489 = vmul.f32 %v460, %v488
  %vm490 = vcmp.eq.f32.partialorder %v460, inf
  %v491 = vsel %vm490, %v460, %v489
  %vm492 = vcmp.eq.f32.partialorder %v460, 0.0
  %v493 = vand.u32 %v460, 2147483648
  %v494 = vsel %vm492, %v493, %v491
  %v495 = vrsqrt.pop %v461
  %v496 = vmul.f32 %v461, %v495
  %vm497 = vcmp.eq.f32.partialorder %v461, inf
  %v498 = vsel %vm497, %v461, %v496
  %vm499 = vcmp.eq.f32.partialorder %v461, 0.0
  %v500 = vand.u32 %v461, 2147483648
  %v501 = vsel %vm499, %v500, %v498
  %v502 = vrsqrt.pop %v462
  %v503 = vmul.f32 %v462, %v502
  %vm504 = vcmp.eq.f32.partialorder %v462, inf
  %v505 = vsel %vm504, %v462, %v503
  %vm506 = vcmp.eq.f32.partialorder %v462, 0.0
  %v507 = vand.u32 %v462, 2147483648
  %v508 = vsel %vm506, %v507, %v505
  %v509 = vrsqrt.pop %v463
  %v510 = vmul.f32 %v463, %v509
  %vm511 = vcmp.eq.f32.partialorder %v463, inf
  %v512 = vsel %vm511, %v463, %v510
  %vm513 = vcmp.eq.f32.partialorder %v463, 0.0
  %v514 = vand.u32 %v463, 2147483648
  %v515 = vsel %vm513, %v514, %v512
  %v516 = vrsqrt.pop %v464
  %v517 = vmul.f32 %v464, %v516
  %vm518 = vcmp.eq.f32.partialorder %v464, inf
  %v519 = vsel %vm518, %v464, %v517
  %vm520 = vcmp.eq.f32.partialorder %v464, 0.0
  %v521 = vand.u32 %v464, 2147483648
  %v522 = vsel %vm520, %v521, %v519
  %v523 = vrsqrt.pop %v465
  %v524 = vmul.f32 %v465, %v523
  %vm525 = vcmp.eq.f32.partialorder %v465, inf
  %v526 = vsel %vm525, %v465, %v524
  %vm527 = vcmp.eq.f32.partialorder %v465, 0.0
  %v528 = vand.u32 %v465, 2147483648
  %v529 = vsel %vm527, %v528, %v526
  %v530 = vrsqrt.pop %v466
  %v531 = vmul.f32 %v466, %v530
  %vm532 = vcmp.eq.f32.partialorder %v466, inf
  %v533 = vsel %vm532, %v466, %v531
  %vm534 = vcmp.eq.f32.partialorder %v466, 0.0
  %v535 = vand.u32 %v466, 2147483648
  %v536 = vsel %vm534, %v535, %v533
  %v537 = vrcp.pop %v473
  %v538 = vmul.f32 %v353, %v537
  %v539 = vrcp.pop %v480
  %v540 = vmul.f32 %v360, %v539
  %v541 = vrcp.pop %v487
  %v542 = vmul.f32 %v367, %v541
  %v543 = vrcp.pop %v494
  %v544 = vmul.f32 %v374, %v543
  %v545 = vrcp.pop %v501
  %v546 = vmul.f32 %v381, %v545
  %v547 = vrcp.pop %v508
  %v548 = vmul.f32 %v388, %v547
  %v549 = vrcp.pop %v515
  %v550 = vmul.f32 %v395, %v549
  %v551 = vrcp.pop %v522
  %v552 = vmul.f32 %v402, %v551
  %v553 = vrcp.pop %v529
  %v554 = vmul.f32 %v409, %v553
  %v555 = vrcp.pop %v536
  %v556 = vmul.f32 %v416, %v555
  %v557 = vmul.f32 %v538, %v8
  %v558 = vmul.f32 %v540, %v9
  %v559 = vmul.f32 %v542, %v10
  %v560 = vmul.f32 %v544, %v11
  %v561 = vmul.f32 %v546, %v12
  %v562 = vmul.f32 %v548, %v13
  %v563 = vmul.f32 %v550, %v14
  %v564 = vmul.f32 %v552, %v15
  %v565 = vmul.f32 %v554, %v16
  %v566 = vmul.f32 %v556, %v17
  %v567 = vsel %vm28, %v557, 0.0
  %568 = vadd.xlane.f32.xlu0 %v567
  %v569 = vpop.xlane.xlu0 %568
  %v570 = vsel %vm28, %v558, 0.0
  %571 = vadd.xlane.f32.xlu0 %v570
  %v572 = vpop.xlane.xlu0 %571
  %v573 = vsel %vm28, %v559, 0.0
  %574 = vadd.xlane.f32.xlu0 %v573
  %v575 = vpop.xlane.xlu0 %574
  %v576 = vsel %vm28, %v560, 0.0
  %577 = vadd.xlane.f32.xlu0 %v576
  %v578 = vpop.xlane.xlu0 %577
  %v579 = vsel %vm28, %v561, 0.0
  %580 = vadd.xlane.f32.xlu0 %v579
  %v581 = vpop.xlane.xlu0 %580
  %v582 = vsel %vm28, %v562, 0.0
  %583 = vadd.xlane.f32.xlu0 %v582
  %v584 = vpop.xlane.xlu0 %583
  %v585 = vsel %vm28, %v563, 0.0
  %586 = vadd.xlane.f32.xlu0 %v585
  %v587 = vpop.xlane.xlu0 %586
  %v588 = vsel %vm28, %v564, 0.0
  %589 = vadd.xlane.f32.xlu0 %v588
  %v590 = vpop.xlane.xlu0 %589
  %v591 = vsel %vm28, %v565, 0.0
  %592 = vadd.xlane.f32.xlu0 %v591
  %v593 = vpop.xlane.xlu0 %592
  %v594 = vsel %vm28, %v566, 0.0
  %595 = vadd.xlane.f32.xlu0 %v594
  %v596 = vpop.xlane.xlu0 %595
  %v597 = vmax.f32 %v569, %v575
  %v598 = vmax.f32 %v572, %v578
  %v599 = vmax.f32 %v597, %v581
  %v600 = vmax.f32 %v599, %v598
  %v601 = vmax.f32 %v584, %v590
  %v602 = vmax.f32 %v587, %v593
  %v603 = vmax.f32 %v601, %v596
  %v604 = vmax.f32 %v603, %v602
  %v605 = vsub.f32 %v569, %v600
  %v606 = vsub.f32 %v572, %v600
  %v607 = vsub.f32 %v575, %v600
  %v608 = vsub.f32 %v578, %v600
  %v609 = vsub.f32 %v581, %v600
  %v610 = vsub.f32 %v584, %v604
  %v611 = vsub.f32 %v587, %v604
  %v612 = vsub.f32 %v590, %v604
  %v613 = vsub.f32 %v593, %v604
  %v614 = vsub.f32 %v596, %v604
  %v615 = vmul.f32 %v605, 1.442695
  %v616 = vpow.pop %v615
  %v617 = vmul.f32 %v606, 1.442695
  %v618 = vpow.pop %v617
  %v619 = vmul.f32 %v607, 1.442695
  %v620 = vpow.pop %v619
  %v621 = vmul.f32 %v608, 1.442695
  %v622 = vpow.pop %v621
  %v623 = vmul.f32 %v609, 1.442695
  %v624 = vpow.pop %v623
  %v625 = vmul.f32 %v610, 1.442695
  %v626 = vpow.pop %v625
  %v627 = vmul.f32 %v611, 1.442695
  %v628 = vpow.pop %v627
  %v629 = vmul.f32 %v612, 1.442695
  %v630 = vpow.pop %v629
  %v631 = vmul.f32 %v613, 1.442695
  %v632 = vpow.pop %v631
  %v633 = vmul.f32 %v614, 1.442695
  %v634 = vpow.pop %v633
  %v635 = vadd.f32 %v616, %v618
  %v636 = vadd.f32 %v635, %v620
  %v637 = vadd.f32 %v636, %v622
  %v638 = vadd.f32 %v637, %v624
  %v639 = vadd.f32 %v626, %v628
  %v640 = vadd.f32 %v639, %v630
  %v641 = vadd.f32 %v640, %v632
  %v642 = vadd.f32 %v641, %v634
  %v643 = vrcp.pop %v638
  %v644 = vmul.f32 %v616, %v643
  %v645 = vmul.f32 %v618, %v643
  %v646 = vmul.f32 %v620, %v643
  %v647 = vmul.f32 %v622, %v643
  %v648 = vmul.f32 %v624, %v643
  %v649 = vrcp.pop %v642
  %v650 = vmul.f32 %v626, %v649
  %v651 = vmul.f32 %v628, %v649
  %v652 = vmul.f32 %v630, %v649
  %v653 = vmul.f32 %v632, %v649
  %v654 = vmul.f32 %v634, %v649
  %v655 = vmul.f32 %v644, %v8
  %v656 = vmul.f32 %v645, %v9
  %v657 = vmul.f32 %v646, %v10
  %v658 = vmul.f32 %v647, %v11
  %v659 = vmul.f32 %v648, %v12
  %v660 = vmul.f32 %v650, %v13
  %v661 = vmul.f32 %v651, %v14
  %v662 = vmul.f32 %v652, %v15
  %v663 = vmul.f32 %v653, %v16
  %v664 = vmul.f32 %v654, %v17
  %v665 = vsel %vm28, %v655, 0.0
  %v666 = vrot.slane %v665, 4
  %v667 = vadd.f32 %v665, %v666
  %v668 = vrot.slane %v667, 2
  %v669 = vadd.f32 %v667, %v668
  %v670 = vrot.slane %v669, 1
  %v671 = vadd.f32 %v669, %v670
  %v672 = vsel %vm28, %v656, 0.0
  %v673 = vrot.slane %v672, 4
  %v674 = vadd.f32 %v672, %v673
  %v675 = vrot.slane %v674, 2
  %v676 = vadd.f32 %v674, %v675
  %v677 = vrot.slane %v676, 1
  %v678 = vadd.f32 %v676, %v677
  %v679 = vsel %vm28, %v657, 0.0
  %v680 = vrot.slane %v679, 4
  %v681 = vadd.f32 %v679, %v680
  %v682 = vrot.slane %v681, 2
  %v683 = vadd.f32 %v681, %v682
  %v684 = vrot.slane %v683, 1
  %v685 = vadd.f32 %v683, %v684
  %v686 = vsel %vm28, %v658, 0.0
  %v687 = vrot.slane %v686, 4
  %v688 = vadd.f32 %v686, %v687
  %v689 = vrot.slane %v688, 2
  %v690 = vadd.f32 %v688, %v689
  %v691 = vrot.slane %v690, 1
  %v692 = vadd.f32 %v690, %v691
  %v693 = vsel %vm28, %v659, 0.0
  %v694 = vrot.slane %v693, 4
  %v695 = vadd.f32 %v693, %v694
  %v696 = vrot.slane %v695, 2
  %v697 = vadd.f32 %v695, %v696
  %v698 = vrot.slane %v697, 1
  %v699 = vadd.f32 %v697, %v698
  %v700 = vsel %vm28, %v660, 0.0
  %v701 = vrot.slane %v700, 4
  %v702 = vadd.f32 %v700, %v701
  %v703 = vrot.slane %v702, 2
  %v704 = vadd.f32 %v702, %v703
  %v705 = vrot.slane %v704, 1
  %v706 = vadd.f32 %v704, %v705
  %v707 = vsel %vm28, %v661, 0.0
  %v708 = vrot.slane %v707, 4
  %v709 = vadd.f32 %v707, %v708
  %v710 = vrot.slane %v709, 2
  %v711 = vadd.f32 %v709, %v710
  %v712 = vrot.slane %v711, 1
  %v713 = vadd.f32 %v711, %v712
  %v714 = vsel %vm28, %v662, 0.0
  %v715 = vrot.slane %v714, 4
  %v716 = vadd.f32 %v714, %v715
  %v717 = vrot.slane %v716, 2
  %v718 = vadd.f32 %v716, %v717
  %v719 = vrot.slane %v718, 1
  %v720 = vadd.f32 %v718, %v719
  %v721 = vsel %vm28, %v663, 0.0
  %v722 = vrot.slane %v721, 4
  %v723 = vadd.f32 %v721, %v722
  %v724 = vrot.slane %v723, 2
  %v725 = vadd.f32 %v723, %v724
  %v726 = vrot.slane %v725, 1
  %v727 = vadd.f32 %v725, %v726
  %v728 = vsel %vm28, %v664, 0.0
  %v729 = vrot.slane %v728, 4
  %v730 = vadd.f32 %v728, %v729
  %v731 = vrot.slane %v730, 2
  %v732 = vadd.f32 %v730, %v731
  %v733 = vrot.slane %v732, 1
  %v734 = vadd.f32 %v732, %v733
  %v735 = vmul.f32 %v671, %v671
  %v736 = vmul.f32 %v678, %v678
  %v737 = vmul.f32 %v685, %v685
  %v738 = vmul.f32 %v692, %v692
  %v739 = vmul.f32 %v699, %v699
  %v740 = vmul.f32 %v706, %v706
  %v741 = vmul.f32 %v713, %v713
  %v742 = vmul.f32 %v720, %v720
  %v743 = vmul.f32 %v727, %v727
  %v744 = vmul.f32 %v734, %v734
  %v745 = vsel %vm28, %v735, 0.0
  %746 = vadd.xlane.f32.xlu0 %v745
  %v747 = vpop.xlane.xlu0 %746
  %v748 = vsel %vm28, %v736, 0.0
  %749 = vadd.xlane.f32.xlu0 %v748
  %v750 = vpop.xlane.xlu0 %749
  %v751 = vsel %vm28, %v737, 0.0
  %752 = vadd.xlane.f32.xlu0 %v751
  %v753 = vpop.xlane.xlu0 %752
  %v754 = vsel %vm28, %v738, 0.0
  %755 = vadd.xlane.f32.xlu0 %v754
  %v756 = vpop.xlane.xlu0 %755
  %v757 = vsel %vm28, %v739, 0.0
  %758 = vadd.xlane.f32.xlu0 %v757
  %v759 = vpop.xlane.xlu0 %758
  %v760 = vsel %vm28, %v740, 0.0
  %761 = vadd.xlane.f32.xlu0 %v760
  %v762 = vpop.xlane.xlu0 %761
  %v763 = vsel %vm28, %v741, 0.0
  %764 = vadd.xlane.f32.xlu0 %v763
  %v765 = vpop.xlane.xlu0 %764
  %v766 = vsel %vm28, %v742, 0.0
  %767 = vadd.xlane.f32.xlu0 %v766
  %v768 = vpop.xlane.xlu0 %767
  %v769 = vsel %vm28, %v743, 0.0
  %770 = vadd.xlane.f32.xlu0 %v769
  %v771 = vpop.xlane.xlu0 %770
  %v772 = vsel %vm28, %v744, 0.0
  %773 = vadd.xlane.f32.xlu0 %v772
  %v774 = vpop.xlane.xlu0 %773
  %v775 = vadd.f32 %v747, 1e-07
  %v776 = vadd.f32 %v750, 1e-07
  %v777 = vadd.f32 %v753, 1e-07
  %v778 = vadd.f32 %v756, 1e-07
  %v779 = vadd.f32 %v759, 1e-07
  %v780 = vadd.f32 %v762, 1e-07
  %v781 = vadd.f32 %v765, 1e-07
  %v782 = vadd.f32 %v768, 1e-07
  %v783 = vadd.f32 %v771, 1e-07
  %v784 = vadd.f32 %v774, 1e-07
  %v785 = vrsqrt.pop %v775
  %v786 = vmul.f32 %v775, %v785
  %vm787 = vcmp.eq.f32.partialorder %v775, inf
  %v788 = vsel %vm787, %v775, %v786
  %vm789 = vcmp.eq.f32.partialorder %v775, 0.0
  %v790 = vand.u32 %v775, 2147483648
  %v791 = vsel %vm789, %v790, %v788
  %v792 = vrsqrt.pop %v776
  %v793 = vmul.f32 %v776, %v792
  %vm794 = vcmp.eq.f32.partialorder %v776, inf
  %v795 = vsel %vm794, %v776, %v793
  %vm796 = vcmp.eq.f32.partialorder %v776, 0.0
  %v797 = vand.u32 %v776, 2147483648
  %v798 = vsel %vm796, %v797, %v795
  %v799 = vrsqrt.pop %v777
  %v800 = vmul.f32 %v777, %v799
  %vm801 = vcmp.eq.f32.partialorder %v777, inf
  %v802 = vsel %vm801, %v777, %v800
  %vm803 = vcmp.eq.f32.partialorder %v777, 0.0
  %v804 = vand.u32 %v777, 2147483648
  %v805 = vsel %vm803, %v804, %v802
  %v806 = vrsqrt.pop %v778
  %v807 = vmul.f32 %v778, %v806
  %vm808 = vcmp.eq.f32.partialorder %v778, inf
  %v809 = vsel %vm808, %v778, %v807
  %vm810 = vcmp.eq.f32.partialorder %v778, 0.0
  %v811 = vand.u32 %v778, 2147483648
  %v812 = vsel %vm810, %v811, %v809
  %v813 = vrsqrt.pop %v779
  %v814 = vmul.f32 %v779, %v813
  %vm815 = vcmp.eq.f32.partialorder %v779, inf
  %v816 = vsel %vm815, %v779, %v814
  %vm817 = vcmp.eq.f32.partialorder %v779, 0.0
  %v818 = vand.u32 %v779, 2147483648
  %v819 = vsel %vm817, %v818, %v816
  %v820 = vrsqrt.pop %v780
  %v821 = vmul.f32 %v780, %v820
  %vm822 = vcmp.eq.f32.partialorder %v780, inf
  %v823 = vsel %vm822, %v780, %v821
  %vm824 = vcmp.eq.f32.partialorder %v780, 0.0
  %v825 = vand.u32 %v780, 2147483648
  %v826 = vsel %vm824, %v825, %v823
  %v827 = vrsqrt.pop %v781
  %v828 = vmul.f32 %v781, %v827
  %vm829 = vcmp.eq.f32.partialorder %v781, inf
  %v830 = vsel %vm829, %v781, %v828
  %vm831 = vcmp.eq.f32.partialorder %v781, 0.0
  %v832 = vand.u32 %v781, 2147483648
  %v833 = vsel %vm831, %v832, %v830
  %v834 = vrsqrt.pop %v782
  %v835 = vmul.f32 %v782, %v834
  %vm836 = vcmp.eq.f32.partialorder %v782, inf
  %v837 = vsel %vm836, %v782, %v835
  %vm838 = vcmp.eq.f32.partialorder %v782, 0.0
  %v839 = vand.u32 %v782, 2147483648
  %v840 = vsel %vm838, %v839, %v837
  %v841 = vrsqrt.pop %v783
  %v842 = vmul.f32 %v783, %v841
  %vm843 = vcmp.eq.f32.partialorder %v783, inf
  %v844 = vsel %vm843, %v783, %v842
  %vm845 = vcmp.eq.f32.partialorder %v783, 0.0
  %v846 = vand.u32 %v783, 2147483648
  %v847 = vsel %vm845, %v846, %v844
  %v848 = vrsqrt.pop %v784
  %v849 = vmul.f32 %v784, %v848
  %vm850 = vcmp.eq.f32.partialorder %v784, inf
  %v851 = vsel %vm850, %v784, %v849
  %vm852 = vcmp.eq.f32.partialorder %v784, 0.0
  %v853 = vand.u32 %v784, 2147483648
  %v854 = vsel %vm852, %v853, %v851
  %v855 = vrcp.pop %v791
  %v856 = vmul.f32 %v671, %v855
  %v857 = vrcp.pop %v798
  %v858 = vmul.f32 %v678, %v857
  %v859 = vrcp.pop %v805
  %v860 = vmul.f32 %v685, %v859
  %v861 = vrcp.pop %v812
  %v862 = vmul.f32 %v692, %v861
  %v863 = vrcp.pop %v819
  %v864 = vmul.f32 %v699, %v863
  %v865 = vrcp.pop %v826
  %v866 = vmul.f32 %v706, %v865
  %v867 = vrcp.pop %v833
  %v868 = vmul.f32 %v713, %v867
  %v869 = vrcp.pop %v840
  %v870 = vmul.f32 %v720, %v869
  %v871 = vrcp.pop %v847
  %v872 = vmul.f32 %v727, %v871
  %v873 = vrcp.pop %v854
  %v874 = vmul.f32 %v734, %v873
  %v875 = vmul.f32 %v856, %v8
  %v876 = vmul.f32 %v858, %v9
  %v877 = vmul.f32 %v860, %v10
  %v878 = vmul.f32 %v862, %v11
  %v879 = vmul.f32 %v864, %v12
  %v880 = vmul.f32 %v866, %v13
  %v881 = vmul.f32 %v868, %v14
  %v882 = vmul.f32 %v870, %v15
  %v883 = vmul.f32 %v872, %v16
  %v884 = vmul.f32 %v874, %v17
  %v885 = vsel %vm28, %v875, 0.0
  %886 = vadd.xlane.f32.xlu0 %v885
  %v887 = vpop.xlane.xlu0 %886
  %v888 = vsel %vm28, %v876, 0.0
  %889 = vadd.xlane.f32.xlu0 %v888
  %v890 = vpop.xlane.xlu0 %889
  %v891 = vsel %vm28, %v877, 0.0
  %892 = vadd.xlane.f32.xlu0 %v891
  %v893 = vpop.xlane.xlu0 %892
  %v894 = vsel %vm28, %v878, 0.0
  %895 = vadd.xlane.f32.xlu0 %v894
  %v896 = vpop.xlane.xlu0 %895
  %v897 = vsel %vm28, %v879, 0.0
  %898 = vadd.xlane.f32.xlu0 %v897
  %v899 = vpop.xlane.xlu0 %898
  %v900 = vsel %vm28, %v880, 0.0
  %901 = vadd.xlane.f32.xlu0 %v900
  %v902 = vpop.xlane.xlu0 %901
  %v903 = vsel %vm28, %v881, 0.0
  %904 = vadd.xlane.f32.xlu0 %v903
  %v905 = vpop.xlane.xlu0 %904
  %v906 = vsel %vm28, %v882, 0.0
  %907 = vadd.xlane.f32.xlu0 %v906
  %v908 = vpop.xlane.xlu0 %907
  %v909 = vsel %vm28, %v883, 0.0
  %910 = vadd.xlane.f32.xlu0 %v909
  %v911 = vpop.xlane.xlu0 %910
  %v912 = vsel %vm28, %v884, 0.0
  %913 = vadd.xlane.f32.xlu0 %v912
  %v914 = vpop.xlane.xlu0 %913
  %v915 = vmax.f32 %v887, %v893
  %v916 = vmax.f32 %v890, %v896
  %v917 = vmax.f32 %v915, %v899
  %v918 = vmax.f32 %v917, %v916
  %v919 = vmax.f32 %v902, %v908
  %v920 = vmax.f32 %v905, %v911
  %v921 = vmax.f32 %v919, %v914
  %v922 = vmax.f32 %v921, %v920
  %v923 = vsub.f32 %v887, %v918
  %v924 = vsub.f32 %v890, %v918
  %v925 = vsub.f32 %v893, %v918
  %v926 = vsub.f32 %v896, %v918
  %v927 = vsub.f32 %v899, %v918
  %v928 = vsub.f32 %v902, %v922
  %v929 = vsub.f32 %v905, %v922
  %v930 = vsub.f32 %v908, %v922
  %v931 = vsub.f32 %v911, %v922
  %v932 = vsub.f32 %v914, %v922
  %v933 = vmul.f32 %v923, 1.442695
  %v934 = vpow.pop %v933
  %v935 = vmul.f32 %v924, 1.442695
  %v936 = vpow.pop %v935
  %v937 = vmul.f32 %v925, 1.442695
  %v938 = vpow.pop %v937
  %v939 = vmul.f32 %v926, 1.442695
  %v940 = vpow.pop %v939
  %v941 = vmul.f32 %v927, 1.442695
  %v942 = vpow.pop %v941
  %v943 = vmul.f32 %v928, 1.442695
  %v944 = vpow.pop %v943
  %v945 = vmul.f32 %v929, 1.442695
  %v946 = vpow.pop %v945
  %v947 = vmul.f32 %v930, 1.442695
  %v948 = vpow.pop %v947
  %v949 = vmul.f32 %v931, 1.442695
  %v950 = vpow.pop %v949
  %v951 = vmul.f32 %v932, 1.442695
  %v952 = vpow.pop %v951
  %v953 = vadd.f32 %v934, %v936
  %v954 = vadd.f32 %v953, %v938
  %v955 = vadd.f32 %v954, %v940
  %v956 = vadd.f32 %v955, %v942
  %v957 = vadd.f32 %v944, %v946
  %v958 = vadd.f32 %v957, %v948
  %v959 = vadd.f32 %v958, %v950
  %v960 = vadd.f32 %v959, %v952
  %v961 = vrcp.pop %v956
  %v962 = vmul.f32 %v934, %v961
  %v963 = vmul.f32 %v936, %v961
  %v964 = vmul.f32 %v938, %v961
  %v965 = vmul.f32 %v940, %v961
  %v966 = vmul.f32 %v942, %v961
  %v967 = vrcp.pop %v960
  %v968 = vmul.f32 %v944, %v967
  %v969 = vmul.f32 %v946, %v967
  %v970 = vmul.f32 %v948, %v967
  %v971 = vmul.f32 %v950, %v967
  %v972 = vmul.f32 %v952, %v967
  %v973 = vmul.f32 %v962, %v8
  %v974 = vmul.f32 %v963, %v9
  %v975 = vmul.f32 %v964, %v10
  %v976 = vmul.f32 %v965, %v11
  %v977 = vmul.f32 %v966, %v12
  %v978 = vmul.f32 %v968, %v13
  %v979 = vmul.f32 %v969, %v14
  %v980 = vmul.f32 %v970, %v15
  %v981 = vmul.f32 %v971, %v16
  %v982 = vmul.f32 %v972, %v17
  %v983 = vsel %vm28, %v973, 0.0
  %v984 = vrot.slane %v983, 4
  %v985 = vadd.f32 %v983, %v984
  %v986 = vrot.slane %v985, 2
  %v987 = vadd.f32 %v985, %v986
  %v988 = vrot.slane %v987, 1
  %v989 = vadd.f32 %v987, %v988
  %v990 = vsel %vm28, %v974, 0.0
  %v991 = vrot.slane %v990, 4
  %v992 = vadd.f32 %v990, %v991
  %v993 = vrot.slane %v992, 2
  %v994 = vadd.f32 %v992, %v993
  %v995 = vrot.slane %v994, 1
  %v996 = vadd.f32 %v994, %v995
  %v997 = vsel %vm28, %v975, 0.0
  %v998 = vrot.slane %v997, 4
  %v999 = vadd.f32 %v997, %v998
  %v1000 = vrot.slane %v999, 2
  %v1001 = vadd.f32 %v999, %v1000
  %v1002 = vrot.slane %v1001, 1
  %v1003 = vadd.f32 %v1001, %v1002
  %v1004 = vsel %vm28, %v976, 0.0
  %v1005 = vrot.slane %v1004, 4
  %v1006 = vadd.f32 %v1004, %v1005
  %v1007 = vrot.slane %v1006, 2
  %v1008 = vadd.f32 %v1006, %v1007
  %v1009 = vrot.slane %v1008, 1
  %v1010 = vadd.f32 %v1008, %v1009
  %v1011 = vsel %vm28, %v977, 0.0
  %v1012 = vrot.slane %v1011, 4
  %v1013 = vadd.f32 %v1011, %v1012
  %v1014 = vrot.slane %v1013, 2
  %v1015 = vadd.f32 %v1013, %v1014
  %v1016 = vrot.slane %v1015, 1
  %v1017 = vadd.f32 %v1015, %v1016
  %v1018 = vsel %vm28, %v978, 0.0
  %v1019 = vrot.slane %v1018, 4
  %v1020 = vadd.f32 %v1018, %v1019
  %v1021 = vrot.slane %v1020, 2
  %v1022 = vadd.f32 %v1020, %v1021
  %v1023 = vrot.slane %v1022, 1
  %v1024 = vadd.f32 %v1022, %v1023
  %v1025 = vsel %vm28, %v979, 0.0
  %v1026 = vrot.slane %v1025, 4
  %v1027 = vadd.f32 %v1025, %v1026
  %v1028 = vrot.slane %v1027, 2
  %v1029 = vadd.f32 %v1027, %v1028
  %v1030 = vrot.slane %v1029, 1
  %v1031 = vadd.f32 %v1029, %v1030
  %v1032 = vsel %vm28, %v980, 0.0
  %v1033 = vrot.slane %v1032, 4
  %v1034 = vadd.f32 %v1032, %v1033
  %v1035 = vrot.slane %v1034, 2
  %v1036 = vadd.f32 %v1034, %v1035
  %v1037 = vrot.slane %v1036, 1
  %v1038 = vadd.f32 %v1036, %v1037
  %v1039 = vsel %vm28, %v981, 0.0
  %v1040 = vrot.slane %v1039, 4
  %v1041 = vadd.f32 %v1039, %v1040
  %v1042 = vrot.slane %v1041, 2
  %v1043 = vadd.f32 %v1041, %v1042
  %v1044 = vrot.slane %v1043, 1
  %v1045 = vadd.f32 %v1043, %v1044
  %v1046 = vsel %vm28, %v982, 0.0
  %v1047 = vrot.slane %v1046, 4
  %v1048 = vadd.f32 %v1046, %v1047
  %v1049 = vrot.slane %v1048, 2
  %v1050 = vadd.f32 %v1048, %v1049
  %v1051 = vrot.slane %v1050, 1
  %v1052 = vadd.f32 %v1050, %v1051
  %v1053 = vmul.f32 %v989, %v989
  %v1054 = vmul.f32 %v996, %v996
  %v1055 = vmul.f32 %v1003, %v1003
  %v1056 = vmul.f32 %v1010, %v1010
  %v1057 = vmul.f32 %v1017, %v1017
  %v1058 = vmul.f32 %v1024, %v1024
  %v1059 = vmul.f32 %v1031, %v1031
  %v1060 = vmul.f32 %v1038, %v1038
  %v1061 = vmul.f32 %v1045, %v1045
  %v1062 = vmul.f32 %v1052, %v1052
  %v1063 = vsel %vm28, %v1053, 0.0
  %1064 = vadd.xlane.f32.xlu0 %v1063
  %v1065 = vpop.xlane.xlu0 %1064
  %v1066 = vsel %vm28, %v1054, 0.0
  %1067 = vadd.xlane.f32.xlu0 %v1066
  %v1068 = vpop.xlane.xlu0 %1067
  %v1069 = vsel %vm28, %v1055, 0.0
  %1070 = vadd.xlane.f32.xlu0 %v1069
  %v1071 = vpop.xlane.xlu0 %1070
  %v1072 = vsel %vm28, %v1056, 0.0
  %1073 = vadd.xlane.f32.xlu0 %v1072
  %v1074 = vpop.xlane.xlu0 %1073
  %v1075 = vsel %vm28, %v1057, 0.0
  %1076 = vadd.xlane.f32.xlu0 %v1075
  %v1077 = vpop.xlane.xlu0 %1076
  %v1078 = vsel %vm28, %v1058, 0.0
  %1079 = vadd.xlane.f32.xlu0 %v1078
  %v1080 = vpop.xlane.xlu0 %1079
  %v1081 = vsel %vm28, %v1059, 0.0
  %1082 = vadd.xlane.f32.xlu0 %v1081
  %v1083 = vpop.xlane.xlu0 %1082
  %v1084 = vsel %vm28, %v1060, 0.0
  %1085 = vadd.xlane.f32.xlu0 %v1084
  %v1086 = vpop.xlane.xlu0 %1085
  %v1087 = vsel %vm28, %v1061, 0.0
  %1088 = vadd.xlane.f32.xlu0 %v1087
  %v1089 = vpop.xlane.xlu0 %1088
  %v1090 = vsel %vm28, %v1062, 0.0
  %1091 = vadd.xlane.f32.xlu0 %v1090
  %v1092 = vpop.xlane.xlu0 %1091
  %v1093 = vadd.f32 %v1065, 1e-07
  %v1094 = vadd.f32 %v1068, 1e-07
  %v1095 = vadd.f32 %v1071, 1e-07
  %v1096 = vadd.f32 %v1074, 1e-07
  %v1097 = vadd.f32 %v1077, 1e-07
  %v1098 = vadd.f32 %v1080, 1e-07
  %v1099 = vadd.f32 %v1083, 1e-07
  %v1100 = vadd.f32 %v1086, 1e-07
  %v1101 = vadd.f32 %v1089, 1e-07
  %v1102 = vadd.f32 %v1092, 1e-07
  %v1103 = vrsqrt.pop %v1093
  %v1104 = vmul.f32 %v1093, %v1103
  %vm1105 = vcmp.eq.f32.partialorder %v1093, inf
  %v1106 = vsel %vm1105, %v1093, %v1104
  %vm1107 = vcmp.eq.f32.partialorder %v1093, 0.0
  %v1108 = vand.u32 %v1093, 2147483648
  %v1109 = vsel %vm1107, %v1108, %v1106
  %v1110 = vrsqrt.pop %v1094
  %v1111 = vmul.f32 %v1094, %v1110
  %vm1112 = vcmp.eq.f32.partialorder %v1094, inf
  %v1113 = vsel %vm1112, %v1094, %v1111
  %vm1114 = vcmp.eq.f32.partialorder %v1094, 0.0
  %v1115 = vand.u32 %v1094, 2147483648
  %v1116 = vsel %vm1114, %v1115, %v1113
  %v1117 = vrsqrt.pop %v1095
  %v1118 = vmul.f32 %v1095, %v1117
  %vm1119 = vcmp.eq.f32.partialorder %v1095, inf
  %v1120 = vsel %vm1119, %v1095, %v1118
  %vm1121 = vcmp.eq.f32.partialorder %v1095, 0.0
  %v1122 = vand.u32 %v1095, 2147483648
  %v1123 = vsel %vm1121, %v1122, %v1120
  %v1124 = vrsqrt.pop %v1096
  %v1125 = vmul.f32 %v1096, %v1124
  %vm1126 = vcmp.eq.f32.partialorder %v1096, inf
  %v1127 = vsel %vm1126, %v1096, %v1125
  %vm1128 = vcmp.eq.f32.partialorder %v1096, 0.0
  %v1129 = vand.u32 %v1096, 2147483648
  %v1130 = vsel %vm1128, %v1129, %v1127
  %v1131 = vrsqrt.pop %v1097
  %v1132 = vmul.f32 %v1097, %v1131
  %vm1133 = vcmp.eq.f32.partialorder %v1097, inf
  %v1134 = vsel %vm1133, %v1097, %v1132
  %vm1135 = vcmp.eq.f32.partialorder %v1097, 0.0
  %v1136 = vand.u32 %v1097, 2147483648
  %v1137 = vsel %vm1135, %v1136, %v1134
  %v1138 = vrsqrt.pop %v1098
  %v1139 = vmul.f32 %v1098, %v1138
  %vm1140 = vcmp.eq.f32.partialorder %v1098, inf
  %v1141 = vsel %vm1140, %v1098, %v1139
  %vm1142 = vcmp.eq.f32.partialorder %v1098, 0.0
  %v1143 = vand.u32 %v1098, 2147483648
  %v1144 = vsel %vm1142, %v1143, %v1141
  %v1145 = vrsqrt.pop %v1099
  %v1146 = vmul.f32 %v1099, %v1145
  %vm1147 = vcmp.eq.f32.partialorder %v1099, inf
  %v1148 = vsel %vm1147, %v1099, %v1146
  %vm1149 = vcmp.eq.f32.partialorder %v1099, 0.0
  %v1150 = vand.u32 %v1099, 2147483648
  %v1151 = vsel %vm1149, %v1150, %v1148
  %v1152 = vrsqrt.pop %v1100
  %v1153 = vmul.f32 %v1100, %v1152
  %vm1154 = vcmp.eq.f32.partialorder %v1100, inf
  %v1155 = vsel %vm1154, %v1100, %v1153
  %vm1156 = vcmp.eq.f32.partialorder %v1100, 0.0
  %v1157 = vand.u32 %v1100, 2147483648
  %v1158 = vsel %vm1156, %v1157, %v1155
  %v1159 = vrsqrt.pop %v1101
  %v1160 = vmul.f32 %v1101, %v1159
  %vm1161 = vcmp.eq.f32.partialorder %v1101, inf
  %v1162 = vsel %vm1161, %v1101, %v1160
  %vm1163 = vcmp.eq.f32.partialorder %v1101, 0.0
  %v1164 = vand.u32 %v1101, 2147483648
  %v1165 = vsel %vm1163, %v1164, %v1162
  %v1166 = vrsqrt.pop %v1102
  %v1167 = vmul.f32 %v1102, %v1166
  %vm1168 = vcmp.eq.f32.partialorder %v1102, inf
  %v1169 = vsel %vm1168, %v1102, %v1167
  %vm1170 = vcmp.eq.f32.partialorder %v1102, 0.0
  %v1171 = vand.u32 %v1102, 2147483648
  %v1172 = vsel %vm1170, %v1171, %v1169
  %v1173 = vrcp.pop %v1109
  %v1174 = vmul.f32 %v989, %v1173
  %v1175 = vrcp.pop %v1116
  %v1176 = vmul.f32 %v996, %v1175
  %v1177 = vrcp.pop %v1123
  %v1178 = vmul.f32 %v1003, %v1177
  %v1179 = vrcp.pop %v1130
  %v1180 = vmul.f32 %v1010, %v1179
  %v1181 = vrcp.pop %v1137
  %v1182 = vmul.f32 %v1017, %v1181
  %v1183 = vrcp.pop %v1144
  %v1184 = vmul.f32 %v1024, %v1183
  %v1185 = vrcp.pop %v1151
  %v1186 = vmul.f32 %v1031, %v1185
  %v1187 = vrcp.pop %v1158
  %v1188 = vmul.f32 %v1038, %v1187
  %v1189 = vrcp.pop %v1165
  %v1190 = vmul.f32 %v1045, %v1189
  %v1191 = vrcp.pop %v1172
  %v1192 = vmul.f32 %v1052, %v1191
  %vm1193 = vcmask 32768
  %1194 = vst.msk [vmem:[%s1] sm:$0x1] %vm1193, %v1174
  %1195 = vst.msk [vmem:[%s1 + $0x1] sm:$0x1] %vm1193, %v1176
  %1196 = vst.msk [vmem:[%s1 + $0x2] sm:$0x1] %vm1193, %v1178
  %1197 = vst.msk [vmem:[%s1 + $0x3] sm:$0x1] %vm1193, %v1180
  %1198 = vst.msk [vmem:[%s1 + $0x4] sm:$0x1] %vm1193, %v1182
  %1199 = vst.msk [vmem:[%s1 + $0x5] sm:$0x1] %vm1193, %v1184
  %1200 = vst.msk [vmem:[%s1 + $0x6] sm:$0x1] %vm1193, %v1186
  %1201 = vst.msk [vmem:[%s1 + $0x7] sm:$0x1] %vm1193, %v1188
  %1202 = vst.msk [vmem:[%s1 + $0x8] sm:$0x1] %vm1193, %v1190
  %1203 = vst.msk [vmem:[%s1 + $0x9] sm:$0x1] %vm1193, %v1192
  // Predicated region
  $region6: #{capsulenet_forward.22} parent=0 // pred_check
    _
  $region7: #{capsulenet_forward.22} parent=0 // pred_check_branch
    %1205 = sbr.rel (0) target = $region9
  $region8: #{capsulenet_forward.22} parent=0 // pred_region
    _
  $region9: #{capsulenet_forward.22} parent=0 // pred_fallthru
    _
  // Predicated region
  $region10: #{capsulenet_forward.22} parent=0 // pred_check
    _
  $region11: #{capsulenet_forward.22} parent=0 // pred_check_branch
    %1207 = sbr.rel (0) target = $region13
  $region12: #{capsulenet_forward.22} parent=0 // pred_region
    _
  $region13: #{capsulenet_forward.22} parent=0 // pred_fallthru
    _

// kernel: capsulenet_forward.25
$region0: #{capsulenet_forward.25}
  #allocation0 [shape = 'u32[]', space=smem, size = 0x4, offset = 0x4, fixed_abs, tag = 'smem constant byte address 0x4 - core index']
  #allocation1 [shape = 'u32[144,128]{1,0:T(1,128)}', space=vmem, size = 0x12000, scoped, tag = 'internal scratch']
  #allocation2 [shape = 'f32[1,1]{1,0:T(1,128)S(1)}', space=vmem, size = 0x200, scoped, tag = 'scoped memory for capsulenet_forward.25']
  %s0 = inlined_call_operand.vmem [shape: f32[2,1024], index: 0, kind: input, shape index: {}]
  %s1 = inlined_call_operand.vmem [shape: f32[2,25], index: 1, kind: input, shape index: {}]
  %s2 = inlined_call_operand.vmem [shape: f32[1,25], index: 2, kind: input, shape index: {}]
  %s3 = inlined_call_operand.<no memory space> [shape: f32[1,1], index: 3, kind: input, shape index: {}]
  %s4 = inlined_call_operand.vmem [shape: bf16[1024,256], index: 4, kind: input, shape index: {}]
  %s5 = inlined_call_operand.vmem [shape: f32[1,256], index: 5, kind: input, shape index: {}]
  %s6 = inlined_call_operand.vmem [shape: f32[1,256], index: 6, kind: input, shape index: {}]
  %s7 = inlined_call_operand.vmem [shape: f32[1,256], index: 7, kind: input, shape index: {}]
  %s8 = inlined_call_operand.vmem [shape: f32[1,256], index: 8, kind: input, shape index: {}]
  %s9 = inlined_call_operand.vmem [shape: bf16[256,128], index: 9, kind: input, shape index: {}]
  %s10 = inlined_call_operand.vmem [shape: f32[1,128], index: 10, kind: input, shape index: {}]
  %s11 = inlined_call_operand.hbm [shape: f32[2,128], index: 11, kind: output, shape index: {}]
  %s12 = sld [smem:[#allocation0]]
  $region54: #{capsulenet_forward.25} parent=0
    _
  %s14 = ssub.s32 1, %s12
  %s15 = scalar_select 0, %s14, %s12
  %v16 = vstv %s3
  %17 = vst [vmem:[#allocation2] sm:$0x1] %v16
  $region1: #{capsulenet_forward.25} parent=0
    #allocation3 [shape = 'u8[1024]{0}', space=vmem, size = 0x400, scoped, tag = 'output window, operand 0, single buffered']
    #allocation4 [shape = 's32[1]{0}', space=sflag, size = 0x4, scoped, tag = 'scoped memory for capsulenet_forward.25']
    %18 = vsyncpa [#allocation4], 0
    // Predicated region
    $region2: #{capsulenet_forward.25} parent=1 // pred_check
      _
    $region3: #{capsulenet_forward.25} parent=1 // pred_check_branch
      %20 = sbr.rel (0) target = $region5
    $region4: #{capsulenet_forward.25} parent=1 // pred_region
      _
    $region5: #{capsulenet_forward.25} parent=1 // pred_fallthru
      _
    // Predicated region
    $region6: #{capsulenet_forward.25} parent=1 // pred_check
      _
    $region7: #{capsulenet_forward.25} parent=1 // pred_check_branch
      %22 = sbr.rel (0) target = $region9
    $region8: #{capsulenet_forward.25} parent=1 // pred_region
      _
    $region9: #{capsulenet_forward.25} parent=1 // pred_fallthru
      _
    // Predicated region
    $region10: #{capsulenet_forward.25} parent=1 // pred_check
      _
    $region11: #{capsulenet_forward.25} parent=1 // pred_check_branch
      %24 = sbr.rel (0) target = $region13
    $region12: #{capsulenet_forward.25} parent=1 // pred_region
      _
    $region13: #{capsulenet_forward.25} parent=1 // pred_fallthru
      _
    // Predicated region
    $region14: #{capsulenet_forward.25} parent=1 // pred_check
      _
    $region15: #{capsulenet_forward.25} parent=1 // pred_check_branch
      %26 = sbr.rel (0) target = $region17
    $region16: #{capsulenet_forward.25} parent=1 // pred_region
      _
    $region17: #{capsulenet_forward.25} parent=1 // pred_fallthru
      _
    // Predicated region
    $region18: #{capsulenet_forward.25} parent=1 // pred_check
      _
    $region19: #{capsulenet_forward.25} parent=1 // pred_check_branch
      %28 = sbr.rel (0) target = $region21
    $region20: #{capsulenet_forward.25} parent=1 // pred_region
      _
    $region21: #{capsulenet_forward.25} parent=1 // pred_fallthru
      _
    // Predicated region
    $region22: #{capsulenet_forward.25} parent=1 // pred_check
      _
    $region23: #{capsulenet_forward.25} parent=1 // pred_check_branch
      %30 = sbr.rel (0) target = $region25
    $region24: #{capsulenet_forward.25} parent=1 // pred_region
      _
    $region25: #{capsulenet_forward.25} parent=1 // pred_fallthru
      _
    // Predicated region
    $region26: #{capsulenet_forward.25} parent=1 // pred_check
      _
    $region27: #{capsulenet_forward.25} parent=1 // pred_check_branch
      %32 = sbr.rel (0) target = $region29
    $region28: #{capsulenet_forward.25} parent=1 // pred_region
      _
    $region29: #{capsulenet_forward.25} parent=1 // pred_fallthru
      _
    // Predicated region
    $region30: #{capsulenet_forward.25} parent=1 // pred_check
      _
    $region31: #{capsulenet_forward.25} parent=1 // pred_check_branch
      %34 = sbr.rel (0) target = $region33
    $region32: #{capsulenet_forward.25} parent=1 // pred_region
      _
    $region33: #{capsulenet_forward.25} parent=1 // pred_fallthru
      _
    // Predicated region
    $region34: #{capsulenet_forward.25} parent=1 // pred_check
      _
    $region35: #{capsulenet_forward.25} parent=1 // pred_check_branch
      %36 = sbr.rel (0) target = $region37
    $region36: #{capsulenet_forward.25} parent=1 // pred_region
      _
    $region37: #{capsulenet_forward.25} parent=1 // pred_fallthru
      _
    // Predicated region
    $region38: #{capsulenet_forward.25} parent=1 // pred_check
      _
    $region39: #{capsulenet_forward.25} parent=1 // pred_check_branch
      %38 = sbr.rel (0) target = $region41
    $region40: #{capsulenet_forward.25} parent=1 // pred_region
      _
    $region41: #{capsulenet_forward.25} parent=1 // pred_fallthru
      _
    // Predicated region
    $region42: #{capsulenet_forward.25} parent=1 // pred_check
      _
    $region43: #{capsulenet_forward.25} parent=1 // pred_check_branch
      %40 = sbr.rel (0) target = $region45
    $region44: #{capsulenet_forward.25} parent=1 // pred_region
      _
    $region45: #{capsulenet_forward.25} parent=1 // pred_fallthru
      _
    %v42 = vld [vmem:[%s1] sm:$0x3]
    %v43 = vld [vmem:[%s2] sm:$0x1]
    %v45 = vlaneseq
    %v46 = vshrl.u32 %v45, 7
    %v47 = vsub.s32 0, %v46
    %v48 = vrot.slane %v43, %v47
    %v50 = vmul.f32 %v42, %v48
    %vm51 = vcmask 197632
    %v52 = vsel %vm51, %v50, 0.0
    %53 = vadd.xlane.f32.xlu0 %v52
    %v54 = vpop.xlane.xlu0 %53
    %v55 = vld [vmem:[#allocation2] sm:$0x1]
    %v57 = vlaneseq
    %v58 = vshrl.u32 %v57, 7
    %v59 = vsub.s32 0, %v58
    %v60 = vrot.slane %v55, %v59
    %v62 = vadd.f32 %v54, %v60
    %v63 = vmax.f32 %v62, 0.0
    %v64 = vld [vmem:[%s0] sm:$0xff]
    %v65 = vld [vmem:[%s0 + $0x8] sm:$0xff]
    %v68 = vcombine.high %v64, %v64
    %v70 = vunpack.c.l.s4 1983009808
    %v71 = vunpack.c.0.s8 %v70
    %v72 = vlaneseq
    %v73 = vshrl.u32 %v72, 7
    %v74 = vsub.s32 %v71, %v73
    %v75 = vrot.slane %v64, %v74
    %v77 = vunpack.c.l.s4 1983009808
    %v78 = vunpack.c.0.s8 %v77
    %v79 = vlaneseq
    %v80 = vshrl.u32 %v79, 7
    %v81 = vsub.s32 %v78, %v80
    %v82 = vrot.slane %v68, %v81
    %v83 = vcombine.high %v75, %v75
    %v84 = vcombine.high %v82, %v82
    %v85 = vcombine.high %v65, %v65
    %v87 = vunpack.c.l.s4 1983009808
    %v88 = vunpack.c.0.s8 %v87
    %v89 = vlaneseq
    %v90 = vshrl.u32 %v89, 7
    %v91 = vsub.s32 %v88, %v90
    %v92 = vrot.slane %v65, %v91
    %v94 = vunpack.c.l.s4 1983009808
    %v95 = vunpack.c.0.s8 %v94
    %v96 = vlaneseq
    %v97 = vshrl.u32 %v96, 7
    %v98 = vsub.s32 %v95, %v97
    %v99 = vrot.slane %v85, %v98
    %v100 = vcombine.high %v92, %v92
    %v101 = vcombine.high %v99, %v99
    %v110 = vpack.c.bf16 %v75, %v75
    %v111 = vpack.c.bf16 %v83, %v83
    %v112 = vpack.c.bf16 %v82, %v82
    %v113 = vpack.c.bf16 %v84, %v84
    %v114 = vpack.c.bf16 %v92, %v92
    %v115 = vpack.c.bf16 %v100, %v100
    %v116 = vpack.c.bf16 %v99, %v99
    %v117 = vpack.c.bf16 %v101, %v101
    %v118 = vld [vmem:[%s4] sm:$0xff]
    %v119 = vld [vmem:[%s4 + $0x8] sm:$0xff]
    %v120 = vld [vmem:[%s4 + $0x10] sm:$0xff]
    %v121 = vld [vmem:[%s4 + $0x18] sm:$0xff]
    %v122 = vld [vmem:[%s4 + $0x20] sm:$0xff]
    %v123 = vld [vmem:[%s4 + $0x28] sm:$0xff]
    %v124 = vld [vmem:[%s4 + $0x30] sm:$0xff]
    %v125 = vld [vmem:[%s4 + $0x38] sm:$0xff]
    %v126 = vld [vmem:[%s4 + $0x40] sm:$0xff]
    %v127 = vld [vmem:[%s4 + $0x48] sm:$0xff]
    %v128 = vld [vmem:[%s4 + $0x50] sm:$0xff]
    %v129 = vld [vmem:[%s4 + $0x58] sm:$0xff]
    %v130 = vld [vmem:[%s4 + $0x60] sm:$0xff]
    %v131 = vld [vmem:[%s4 + $0x68] sm:$0xff]
    %v132 = vld [vmem:[%s4 + $0x70] sm:$0xff]
    %v133 = vld [vmem:[%s4 + $0x78] sm:$0xff]
    %v134 = vld [vmem:[%s4 + $0x80] sm:$0xff]
    %v135 = vld [vmem:[%s4 + $0x88] sm:$0xff]
    %v136 = vld [vmem:[%s4 + $0x90] sm:$0xff]
    %v137 = vld [vmem:[%s4 + $0x98] sm:$0xff]
    %v138 = vld [vmem:[%s4 + $0xa0] sm:$0xff]
    %v139 = vld [vmem:[%s4 + $0xa8] sm:$0xff]
    %v140 = vld [vmem:[%s4 + $0xb0] sm:$0xff]
    %v141 = vld [vmem:[%s4 + $0xb8] sm:$0xff]
    %v142 = vld [vmem:[%s4 + $0xc0] sm:$0xff]
    %v143 = vld [vmem:[%s4 + $0xc8] sm:$0xff]
    %v144 = vld [vmem:[%s4 + $0xd0] sm:$0xff]
    %v145 = vld [vmem:[%s4 + $0xd8] sm:$0xff]
    %v146 = vld [vmem:[%s4 + $0xe0] sm:$0xff]
    %v147 = vld [vmem:[%s4 + $0xe8] sm:$0xff]
    %v148 = vld [vmem:[%s4 + $0xf0] sm:$0xff]
    %v149 = vld [vmem:[%s4 + $0xf8] sm:$0xff]
    %v150 = vld [vmem:[%s4 + $0x100] sm:$0xff]
    %v151 = vld [vmem:[%s4 + $0x108] sm:$0xff]
    %v152 = vld [vmem:[%s4 + $0x110] sm:$0xff]
    %v153 = vld [vmem:[%s4 + $0x118] sm:$0xff]
    %v154 = vld [vmem:[%s4 + $0x120] sm:$0xff]
    %v155 = vld [vmem:[%s4 + $0x128] sm:$0xff]
    %v156 = vld [vmem:[%s4 + $0x130] sm:$0xff]
    %v157 = vld [vmem:[%s4 + $0x138] sm:$0xff]
    %v158 = vld [vmem:[%s4 + $0x140] sm:$0xff]
    %v159 = vld [vmem:[%s4 + $0x148] sm:$0xff]
    %v160 = vld [vmem:[%s4 + $0x150] sm:$0xff]
    %v161 = vld [vmem:[%s4 + $0x158] sm:$0xff]
    %v162 = vld [vmem:[%s4 + $0x160] sm:$0xff]
    %v163 = vld [vmem:[%s4 + $0x168] sm:$0xff]
    %v164 = vld [vmem:[%s4 + $0x170] sm:$0xff]
    %v165 = vld [vmem:[%s4 + $0x178] sm:$0xff]
    %v166 = vld [vmem:[%s4 + $0x180] sm:$0xff]
    %v167 = vld [vmem:[%s4 + $0x188] sm:$0xff]
    %v168 = vld [vmem:[%s4 + $0x190] sm:$0xff]
    %v169 = vld [vmem:[%s4 + $0x198] sm:$0xff]
    %v170 = vld [vmem:[%s4 + $0x1a0] sm:$0xff]
    %v171 = vld [vmem:[%s4 + $0x1a8] sm:$0xff]
    %v172 = vld [vmem:[%s4 + $0x1b0] sm:$0xff]
    %v173 = vld [vmem:[%s4 + $0x1b8] sm:$0xff]
    %v174 = vld [vmem:[%s4 + $0x1c0] sm:$0xff]
    %v175 = vld [vmem:[%s4 + $0x1c8] sm:$0xff]
    %v176 = vld [vmem:[%s4 + $0x1d0] sm:$0xff]
    %v177 = vld [vmem:[%s4 + $0x1d8] sm:$0xff]
    %v178 = vld [vmem:[%s4 + $0x1e0] sm:$0xff]
    %v179 = vld [vmem:[%s4 + $0x1e8] sm:$0xff]
    %v180 = vld [vmem:[%s4 + $0x1f0] sm:$0xff]
    %v181 = vld [vmem:[%s4 + $0x1f8] sm:$0xff]
    %v182 = vld [vmem:[%s4 + $0x200] sm:$0xff]
    %v183 = vld [vmem:[%s4 + $0x208] sm:$0xff]
    %v184 = vld [vmem:[%s4 + $0x210] sm:$0xff]
    %v185 = vld [vmem:[%s4 + $0x218] sm:$0xff]
    %v186 = vld [vmem:[%s4 + $0x220] sm:$0xff]
    %v187 = vld [vmem:[%s4 + $0x228] sm:$0xff]
    %v188 = vld [vmem:[%s4 + $0x230] sm:$0xff]
    %v189 = vld [vmem:[%s4 + $0x238] sm:$0xff]
    %v190 = vld [vmem:[%s4 + $0x240] sm:$0xff]
    %v191 = vld [vmem:[%s4 + $0x248] sm:$0xff]
    %v192 = vld [vmem:[%s4 + $0x250] sm:$0xff]
    %v193 = vld [vmem:[%s4 + $0x258] sm:$0xff]
    %v194 = vld [vmem:[%s4 + $0x260] sm:$0xff]
    %v195 = vld [vmem:[%s4 + $0x268] sm:$0xff]
    %v196 = vld [vmem:[%s4 + $0x270] sm:$0xff]
    %v197 = vld [vmem:[%s4 + $0x278] sm:$0xff]
    %v198 = vld [vmem:[%s4 + $0x280] sm:$0xff]
    %v199 = vld [vmem:[%s4 + $0x288] sm:$0xff]
    %v200 = vld [vmem:[%s4 + $0x290] sm:$0xff]
    %v201 = vld [vmem:[%s4 + $0x298] sm:$0xff]
    %v202 = vld [vmem:[%s4 + $0x2a0] sm:$0xff]
    %v203 = vld [vmem:[%s4 + $0x2a8] sm:$0xff]
    %v204 = vld [vmem:[%s4 + $0x2b0] sm:$0xff]
    %v205 = vld [vmem:[%s4 + $0x2b8] sm:$0xff]
    %v206 = vld [vmem:[%s4 + $0x2c0] sm:$0xff]
    %v207 = vld [vmem:[%s4 + $0x2c8] sm:$0xff]
    %v208 = vld [vmem:[%s4 + $0x2d0] sm:$0xff]
    %v209 = vld [vmem:[%s4 + $0x2d8] sm:$0xff]
    %v210 = vld [vmem:[%s4 + $0x2e0] sm:$0xff]
    %v211 = vld [vmem:[%s4 + $0x2e8] sm:$0xff]
    %v212 = vld [vmem:[%s4 + $0x2f0] sm:$0xff]
    %v213 = vld [vmem:[%s4 + $0x2f8] sm:$0xff]
    %v214 = vld [vmem:[%s4 + $0x300] sm:$0xff]
    %v215 = vld [vmem:[%s4 + $0x308] sm:$0xff]
    %v216 = vld [vmem:[%s4 + $0x310] sm:$0xff]
    %v217 = vld [vmem:[%s4 + $0x318] sm:$0xff]
    %v218 = vld [vmem:[%s4 + $0x320] sm:$0xff]
    %v219 = vld [vmem:[%s4 + $0x328] sm:$0xff]
    %v220 = vld [vmem:[%s4 + $0x330] sm:$0xff]
    %v221 = vld [vmem:[%s4 + $0x338] sm:$0xff]
    %v222 = vld [vmem:[%s4 + $0x340] sm:$0xff]
    %v223 = vld [vmem:[%s4 + $0x348] sm:$0xff]
    %v224 = vld [vmem:[%s4 + $0x350] sm:$0xff]
    %v225 = vld [vmem:[%s4 + $0x358] sm:$0xff]
    %v226 = vld [vmem:[%s4 + $0x360] sm:$0xff]
    %v227 = vld [vmem:[%s4 + $0x368] sm:$0xff]
    %v228 = vld [vmem:[%s4 + $0x370] sm:$0xff]
    %v229 = vld [vmem:[%s4 + $0x378] sm:$0xff]
    %v230 = vld [vmem:[%s4 + $0x380] sm:$0xff]
    %v231 = vld [vmem:[%s4 + $0x388] sm:$0xff]
    %v232 = vld [vmem:[%s4 + $0x390] sm:$0xff]
    %v233 = vld [vmem:[%s4 + $0x398] sm:$0xff]
    %v234 = vld [vmem:[%s4 + $0x3a0] sm:$0xff]
    %v235 = vld [vmem:[%s4 + $0x3a8] sm:$0xff]
    %v236 = vld [vmem:[%s4 + $0x3b0] sm:$0xff]
    %v237 = vld [vmem:[%s4 + $0x3b8] sm:$0xff]
    %v238 = vld [vmem:[%s4 + $0x3c0] sm:$0xff]
    %v239 = vld [vmem:[%s4 + $0x3c8] sm:$0xff]
    %v240 = vld [vmem:[%s4 + $0x3d0] sm:$0xff]
    %v241 = vld [vmem:[%s4 + $0x3d8] sm:$0xff]
    %v242 = vld [vmem:[%s4 + $0x3e0] sm:$0xff]
    %v243 = vld [vmem:[%s4 + $0x3e8] sm:$0xff]
    %v244 = vld [vmem:[%s4 + $0x3f0] sm:$0xff]
    %v245 = vld [vmem:[%s4 + $0x3f8] sm:$0xff]
    %v246 = vld [vmem:[%s5] sm:$0x3]
    %248 = vset.pattern.permute.xlu0 0
    %249 = vperm.xlu0 %248, %v63
    %v250 = vpop.permute.xlu0 %249
    %v253 = vlaneseq
    %v254 = vshrl.u32 %v253, 7
    %v255 = vsub.s32 0, %v254
    %v256 = vrot.slane %v246, %v255
    %v257 = vlaneseq
    %v258 = vshrl.u32 %v257, 7
    %v259 = vsub.s32 1, %v258
    %v260 = vrot.slane %v246, %v259
    %v263 = vmul.f32 %v250, %v256
    %v264 = vmul.f32 %v250, %v260
    %v393 = vunpack.c.l.b16 %v118
    %v394 = vunpack.c.h.b16 %v118
    %v395 = vunpack.c.l.b16 %v119
    %v396 = vunpack.c.h.b16 %v119
    %v397 = vunpack.c.l.b16 %v120
    %v398 = vunpack.c.h.b16 %v120
    %v399 = vunpack.c.l.b16 %v121
    %v400 = vunpack.c.h.b16 %v121
    %v401 = vunpack.c.l.b16 %v122
    %v402 = vunpack.c.h.b16 %v122
    %v403 = vunpack.c.l.b16 %v123
    %v404 = vunpack.c.h.b16 %v123
    %v405 = vunpack.c.l.b16 %v124
    %v406 = vunpack.c.h.b16 %v124
    %v407 = vunpack.c.l.b16 %v125
    %v408 = vunpack.c.h.b16 %v125
    %v409 = vunpack.c.l.b16 %v126
    %v410 = vunpack.c.h.b16 %v126
    %v411 = vunpack.c.l.b16 %v127
    %v412 = vunpack.c.h.b16 %v127
    %v413 = vunpack.c.l.b16 %v128
    %v414 = vunpack.c.h.b16 %v128
    %v415 = vunpack.c.l.b16 %v129
    %v416 = vunpack.c.h.b16 %v129
    %v417 = vunpack.c.l.b16 %v130
    %v418 = vunpack.c.h.b16 %v130
    %v419 = vunpack.c.l.b16 %v131
    %v420 = vunpack.c.h.b16 %v131
    %v421 = vunpack.c.l.b16 %v132
    %v422 = vunpack.c.h.b16 %v132
    %v423 = vunpack.c.l.b16 %v133
    %v424 = vunpack.c.h.b16 %v133
    %v425 = vunpack.c.l.b16 %v134
    %v426 = vunpack.c.h.b16 %v134
    %v427 = vunpack.c.l.b16 %v135
    %v428 = vunpack.c.h.b16 %v135
    %v429 = vunpack.c.l.b16 %v136
    %v430 = vunpack.c.h.b16 %v136
    %v431 = vunpack.c.l.b16 %v137
    %v432 = vunpack.c.h.b16 %v137
    %v433 = vunpack.c.l.b16 %v138
    %v434 = vunpack.c.h.b16 %v138
    %v435 = vunpack.c.l.b16 %v139
    %v436 = vunpack.c.h.b16 %v139
    %v437 = vunpack.c.l.b16 %v140
    %v438 = vunpack.c.h.b16 %v140
    %v439 = vunpack.c.l.b16 %v141
    %v440 = vunpack.c.h.b16 %v141
    %v441 = vunpack.c.l.b16 %v142
    %v442 = vunpack.c.h.b16 %v142
    %v443 = vunpack.c.l.b16 %v143
    %v444 = vunpack.c.h.b16 %v143
    %v445 = vunpack.c.l.b16 %v144
    %v446 = vunpack.c.h.b16 %v144
    %v447 = vunpack.c.l.b16 %v145
    %v448 = vunpack.c.h.b16 %v145
    %v449 = vunpack.c.l.b16 %v146
    %v450 = vunpack.c.h.b16 %v146
    %v451 = vunpack.c.l.b16 %v147
    %v452 = vunpack.c.h.b16 %v147
    %v453 = vunpack.c.l.b16 %v148
    %v454 = vunpack.c.h.b16 %v148
    %v455 = vunpack.c.l.b16 %v149
    %v456 = vunpack.c.h.b16 %v149
    %v457 = vunpack.c.l.b16 %v150
    %v458 = vunpack.c.h.b16 %v150
    %v459 = vunpack.c.l.b16 %v151
    %v460 = vunpack.c.h.b16 %v151
    %v461 = vunpack.c.l.b16 %v152
    %v462 = vunpack.c.h.b16 %v152
    %v463 = vunpack.c.l.b16 %v153
    %v464 = vunpack.c.h.b16 %v153
    %v465 = vunpack.c.l.b16 %v154
    %v466 = vunpack.c.h.b16 %v154
    %v467 = vunpack.c.l.b16 %v155
    %v468 = vunpack.c.h.b16 %v155
    %v469 = vunpack.c.l.b16 %v156
    %v470 = vunpack.c.h.b16 %v156
    %v471 = vunpack.c.l.b16 %v157
    %v472 = vunpack.c.h.b16 %v157
    %v473 = vunpack.c.l.b16 %v158
    %v474 = vunpack.c.h.b16 %v158
    %v475 = vunpack.c.l.b16 %v159
    %v476 = vunpack.c.h.b16 %v159
    %v477 = vunpack.c.l.b16 %v160
    %v478 = vunpack.c.h.b16 %v160
    %v479 = vunpack.c.l.b16 %v161
    %v480 = vunpack.c.h.b16 %v161
    %v481 = vunpack.c.l.b16 %v162
    %v482 = vunpack.c.h.b16 %v162
    %v483 = vunpack.c.l.b16 %v163
    %v484 = vunpack.c.h.b16 %v163
    %v485 = vunpack.c.l.b16 %v164
    %v486 = vunpack.c.h.b16 %v164
    %v487 = vunpack.c.l.b16 %v165
    %v488 = vunpack.c.h.b16 %v165
    %v489 = vunpack.c.l.b16 %v166
    %v490 = vunpack.c.h.b16 %v166
    %v491 = vunpack.c.l.b16 %v167
    %v492 = vunpack.c.h.b16 %v167
    %v493 = vunpack.c.l.b16 %v168
    %v494 = vunpack.c.h.b16 %v168
    %v495 = vunpack.c.l.b16 %v169
    %v496 = vunpack.c.h.b16 %v169
    %v497 = vunpack.c.l.b16 %v170
    %v498 = vunpack.c.h.b16 %v170
    %v499 = vunpack.c.l.b16 %v171
    %v500 = vunpack.c.h.b16 %v171
    %v501 = vunpack.c.l.b16 %v172
    %v502 = vunpack.c.h.b16 %v172
    %v503 = vunpack.c.l.b16 %v173
    %v504 = vunpack.c.h.b16 %v173
    %v505 = vunpack.c.l.b16 %v174
    %v506 = vunpack.c.h.b16 %v174
    %v507 = vunpack.c.l.b16 %v175
    %v508 = vunpack.c.h.b16 %v175
    %v509 = vunpack.c.l.b16 %v176
    %v510 = vunpack.c.h.b16 %v176
    %v511 = vunpack.c.l.b16 %v177
    %v512 = vunpack.c.h.b16 %v177
    %v513 = vunpack.c.l.b16 %v178
    %v514 = vunpack.c.h.b16 %v178
    %v515 = vunpack.c.l.b16 %v179
    %v516 = vunpack.c.h.b16 %v179
    %v517 = vunpack.c.l.b16 %v180
    %v518 = vunpack.c.h.b16 %v180
    %v519 = vunpack.c.l.b16 %v181
    %v520 = vunpack.c.h.b16 %v181
    %v521 = vunpack.c.l.b16 %v182
    %v522 = vunpack.c.h.b16 %v182
    %v523 = vunpack.c.l.b16 %v183
    %v524 = vunpack.c.h.b16 %v183
    %v525 = vunpack.c.l.b16 %v184
    %v526 = vunpack.c.h.b16 %v184
    %v527 = vunpack.c.l.b16 %v185
    %v528 = vunpack.c.h.b16 %v185
    %v529 = vunpack.c.l.b16 %v186
    %v530 = vunpack.c.h.b16 %v186
    %v531 = vunpack.c.l.b16 %v187
    %v532 = vunpack.c.h.b16 %v187
    %v533 = vunpack.c.l.b16 %v188
    %v534 = vunpack.c.h.b16 %v188
    %v535 = vunpack.c.l.b16 %v189
    %v536 = vunpack.c.h.b16 %v189
    %v537 = vunpack.c.l.b16 %v190
    %v538 = vunpack.c.h.b16 %v190
    %v539 = vunpack.c.l.b16 %v191
    %v540 = vunpack.c.h.b16 %v191
    %v541 = vunpack.c.l.b16 %v192
    %v542 = vunpack.c.h.b16 %v192
    %v543 = vunpack.c.l.b16 %v193
    %v544 = vunpack.c.h.b16 %v193
    %v545 = vunpack.c.l.b16 %v194
    %v546 = vunpack.c.h.b16 %v194
    %v547 = vunpack.c.l.b16 %v195
    %v548 = vunpack.c.h.b16 %v195
    %v549 = vunpack.c.l.b16 %v196
    %v550 = vunpack.c.h.b16 %v196
    %v551 = vunpack.c.l.b16 %v197
    %v552 = vunpack.c.h.b16 %v197
    %v553 = vunpack.c.l.b16 %v198
    %v554 = vunpack.c.h.b16 %v198
    %v555 = vunpack.c.l.b16 %v199
    %v556 = vunpack.c.h.b16 %v199
    %v557 = vunpack.c.l.b16 %v200
    %v558 = vunpack.c.h.b16 %v200
    %v559 = vunpack.c.l.b16 %v201
    %v560 = vunpack.c.h.b16 %v201
    %v561 = vunpack.c.l.b16 %v202
    %v562 = vunpack.c.h.b16 %v202
    %v563 = vunpack.c.l.b16 %v203
    %v564 = vunpack.c.h.b16 %v203
    %v565 = vunpack.c.l.b16 %v204
    %v566 = vunpack.c.h.b16 %v204
    %v567 = vunpack.c.l.b16 %v205
    %v568 = vunpack.c.h.b16 %v205
    %v569 = vunpack.c.l.b16 %v206
    %v570 = vunpack.c.h.b16 %v206
    %v571 = vunpack.c.l.b16 %v207
    %v572 = vunpack.c.h.b16 %v207
    %v573 = vunpack.c.l.b16 %v208
    %v574 = vunpack.c.h.b16 %v208
    %v575 = vunpack.c.l.b16 %v209
    %v576 = vunpack.c.h.b16 %v209
    %v577 = vunpack.c.l.b16 %v210
    %v578 = vunpack.c.h.b16 %v210
    %v579 = vunpack.c.l.b16 %v211
    %v580 = vunpack.c.h.b16 %v211
    %v581 = vunpack.c.l.b16 %v212
    %v582 = vunpack.c.h.b16 %v212
    %v583 = vunpack.c.l.b16 %v213
    %v584 = vunpack.c.h.b16 %v213
    %v585 = vunpack.c.l.b16 %v214
    %v586 = vunpack.c.h.b16 %v214
    %v587 = vunpack.c.l.b16 %v215
    %v588 = vunpack.c.h.b16 %v215
    %v589 = vunpack.c.l.b16 %v216
    %v590 = vunpack.c.h.b16 %v216
    %v591 = vunpack.c.l.b16 %v217
    %v592 = vunpack.c.h.b16 %v217
    %v593 = vunpack.c.l.b16 %v218
    %v594 = vunpack.c.h.b16 %v218
    %v595 = vunpack.c.l.b16 %v219
    %v596 = vunpack.c.h.b16 %v219
    %v597 = vunpack.c.l.b16 %v220
    %v598 = vunpack.c.h.b16 %v220
    %v599 = vunpack.c.l.b16 %v221
    %v600 = vunpack.c.h.b16 %v221
    %v601 = vunpack.c.l.b16 %v222
    %v602 = vunpack.c.h.b16 %v222
    %v603 = vunpack.c.l.b16 %v223
    %v604 = vunpack.c.h.b16 %v223
    %v605 = vunpack.c.l.b16 %v224
    %v606 = vunpack.c.h.b16 %v224
    %v607 = vunpack.c.l.b16 %v225
    %v608 = vunpack.c.h.b16 %v225
    %v609 = vunpack.c.l.b16 %v226
    %v610 = vunpack.c.h.b16 %v226
    %v611 = vunpack.c.l.b16 %v227
    %v612 = vunpack.c.h.b16 %v227
    %v613 = vunpack.c.l.b16 %v228
    %v614 = vunpack.c.h.b16 %v228
    %v615 = vunpack.c.l.b16 %v229
    %v616 = vunpack.c.h.b16 %v229
    %v617 = vunpack.c.l.b16 %v230
    %v618 = vunpack.c.h.b16 %v230
    %v619 = vunpack.c.l.b16 %v231
    %v620 = vunpack.c.h.b16 %v231
    %v621 = vunpack.c.l.b16 %v232
    %v622 = vunpack.c.h.b16 %v232
    %v623 = vunpack.c.l.b16 %v233
    %v624 = vunpack.c.h.b16 %v233
    %v625 = vunpack.c.l.b16 %v234
    %v626 = vunpack.c.h.b16 %v234
    %v627 = vunpack.c.l.b16 %v235
    %v628 = vunpack.c.h.b16 %v235
    %v629 = vunpack.c.l.b16 %v236
    %v630 = vunpack.c.h.b16 %v236
    %v631 = vunpack.c.l.b16 %v237
    %v632 = vunpack.c.h.b16 %v237
    %v633 = vunpack.c.l.b16 %v238
    %v634 = vunpack.c.h.b16 %v238
    %v635 = vunpack.c.l.b16 %v239
    %v636 = vunpack.c.h.b16 %v239
    %v637 = vunpack.c.l.b16 %v240
    %v638 = vunpack.c.h.b16 %v240
    %v639 = vunpack.c.l.b16 %v241
    %v640 = vunpack.c.h.b16 %v241
    %v641 = vunpack.c.l.b16 %v242
    %v642 = vunpack.c.h.b16 %v242
    %v643 = vunpack.c.l.b16 %v243
    %v644 = vunpack.c.h.b16 %v243
    %v645 = vunpack.c.l.b16 %v244
    %v646 = vunpack.c.h.b16 %v244
    %v647 = vunpack.c.l.b16 %v245
    %v648 = vunpack.c.h.b16 %v245
    %v649 = vpack.c.b16 %v395, %v393
    %v650 = vpack.c.b16 %v396, %v394
    %v651 = vpack.c.b16 %v399, %v397
    %v652 = vpack.c.b16 %v400, %v398
    %v653 = vpack.c.b16 %v403, %v401
    %v654 = vpack.c.b16 %v404, %v402
    %v655 = vpack.c.b16 %v407, %v405
    %v656 = vpack.c.b16 %v408, %v406
    %v657 = vpack.c.b16 %v411, %v409
    %v658 = vpack.c.b16 %v412, %v410
    %v659 = vpack.c.b16 %v415, %v413
    %v660 = vpack.c.b16 %v416, %v414
    %v661 = vpack.c.b16 %v419, %v417
    %v662 = vpack.c.b16 %v420, %v418
    %v663 = vpack.c.b16 %v423, %v421
    %v664 = vpack.c.b16 %v424, %v422
    %v665 = vpack.c.b16 %v427, %v425
    %v666 = vpack.c.b16 %v428, %v426
    %v667 = vpack.c.b16 %v431, %v429
    %v668 = vpack.c.b16 %v432, %v430
    %v669 = vpack.c.b16 %v435, %v433
    %v670 = vpack.c.b16 %v436, %v434
    %v671 = vpack.c.b16 %v439, %v437
    %v672 = vpack.c.b16 %v440, %v438
    %v673 = vpack.c.b16 %v443, %v441
    %v674 = vpack.c.b16 %v444, %v442
    %v675 = vpack.c.b16 %v447, %v445
    %v676 = vpack.c.b16 %v448, %v446
    %v677 = vpack.c.b16 %v451, %v449
    %v678 = vpack.c.b16 %v452, %v450
    %v679 = vpack.c.b16 %v455, %v453
    %v680 = vpack.c.b16 %v456, %v454
    %v681 = vpack.c.b16 %v459, %v457
    %v682 = vpack.c.b16 %v460, %v458
    %v683 = vpack.c.b16 %v463, %v461
    %v684 = vpack.c.b16 %v464, %v462
    %v685 = vpack.c.b16 %v467, %v465
    %v686 = vpack.c.b16 %v468, %v466
    %v687 = vpack.c.b16 %v471, %v469
    %v688 = vpack.c.b16 %v472, %v470
    %v689 = vpack.c.b16 %v475, %v473
    %v690 = vpack.c.b16 %v476, %v474
    %v691 = vpack.c.b16 %v479, %v477
    %v692 = vpack.c.b16 %v480, %v478
    %v693 = vpack.c.b16 %v483, %v481
    %v694 = vpack.c.b16 %v484, %v482
    %v695 = vpack.c.b16 %v487, %v485
    %v696 = vpack.c.b16 %v488, %v486
    %v697 = vpack.c.b16 %v491, %v489
    %v698 = vpack.c.b16 %v492, %v490
    %v699 = vpack.c.b16 %v495, %v493
    %v700 = vpack.c.b16 %v496, %v494
    %v701 = vpack.c.b16 %v499, %v497
    %v702 = vpack.c.b16 %v500, %v498
    %v703 = vpack.c.b16 %v503, %v501
    %v704 = vpack.c.b16 %v504, %v502
    %v705 = vpack.c.b16 %v507, %v505
    %v706 = vpack.c.b16 %v508, %v506
    %v707 = vpack.c.b16 %v511, %v509
    %v708 = vpack.c.b16 %v512, %v510
    %v709 = vpack.c.b16 %v515, %v513
    %v710 = vpack.c.b16 %v516, %v514
    %v711 = vpack.c.b16 %v519, %v517
    %v712 = vpack.c.b16 %v520, %v518
    %v713 = vpack.c.b16 %v523, %v521
    %v714 = vpack.c.b16 %v524, %v522
    %v715 = vpack.c.b16 %v527, %v525
    %v716 = vpack.c.b16 %v528, %v526
    %v717 = vpack.c.b16 %v531, %v529
    %v718 = vpack.c.b16 %v532, %v530
    %v719 = vpack.c.b16 %v535, %v533
    %v720 = vpack.c.b16 %v536, %v534
    %v721 = vpack.c.b16 %v539, %v537
    %v722 = vpack.c.b16 %v540, %v538
    %v723 = vpack.c.b16 %v543, %v541
    %v724 = vpack.c.b16 %v544, %v542
    %v725 = vpack.c.b16 %v547, %v545
    %v726 = vpack.c.b16 %v548, %v546
    %v727 = vpack.c.b16 %v551, %v549
    %v728 = vpack.c.b16 %v552, %v550
    %v729 = vpack.c.b16 %v555, %v553
    %v730 = vpack.c.b16 %v556, %v554
    %v731 = vpack.c.b16 %v559, %v557
    %v732 = vpack.c.b16 %v560, %v558
    %v733 = vpack.c.b16 %v563, %v561
    %v734 = vpack.c.b16 %v564, %v562
    %v735 = vpack.c.b16 %v567, %v565
    %v736 = vpack.c.b16 %v568, %v566
    %v737 = vpack.c.b16 %v571, %v569
    %v738 = vpack.c.b16 %v572, %v570
    %v739 = vpack.c.b16 %v575, %v573
    %v740 = vpack.c.b16 %v576, %v574
    %v741 = vpack.c.b16 %v579, %v577
    %v742 = vpack.c.b16 %v580, %v578
    %v743 = vpack.c.b16 %v583, %v581
    %v744 = vpack.c.b16 %v584, %v582
    %v745 = vpack.c.b16 %v587, %v585
    %v746 = vpack.c.b16 %v588, %v586
    %v747 = vpack.c.b16 %v591, %v589
    %v748 = vpack.c.b16 %v592, %v590
    %v749 = vpack.c.b16 %v595, %v593
    %v750 = vpack.c.b16 %v596, %v594
    %v751 = vpack.c.b16 %v599, %v597
    %v752 = vpack.c.b16 %v600, %v598
    %v753 = vpack.c.b16 %v603, %v601
    %v754 = vpack.c.b16 %v604, %v602
    %v755 = vpack.c.b16 %v607, %v605
    %v756 = vpack.c.b16 %v608, %v606
    %v757 = vpack.c.b16 %v611, %v609
    %v758 = vpack.c.b16 %v612, %v610
    %v759 = vpack.c.b16 %v615, %v613
    %v760 = vpack.c.b16 %v616, %v614
    %v761 = vpack.c.b16 %v619, %v617
    %v762 = vpack.c.b16 %v620, %v618
    %v763 = vpack.c.b16 %v623, %v621
    %v764 = vpack.c.b16 %v624, %v622
    %v765 = vpack.c.b16 %v627, %v625
    %v766 = vpack.c.b16 %v628, %v626
    %v767 = vpack.c.b16 %v631, %v629
    %v768 = vpack.c.b16 %v632, %v630
    %v769 = vpack.c.b16 %v635, %v633
    %v770 = vpack.c.b16 %v636, %v634
    %v771 = vpack.c.b16 %v639, %v637
    %v772 = vpack.c.b16 %v640, %v638
    %v773 = vpack.c.b16 %v643, %v641
    %v774 = vpack.c.b16 %v644, %v642
    %v775 = vpack.c.b16 %v647, %v645
    %v776 = vpack.c.b16 %v648, %v646
    %905 = vmatprep.subr.bf16.mxu0 %v650
    %906 = vmatpush1.bf16.msra.mxu0 %v649
    %907 = vmatprep.subr.bf16.mxu0 %v652
    %908 = vmatpush1.bf16.msra.mxu0 %v651
    %909 = vmatprep.subr.bf16.mxu0 %v654
    %910 = vmatpush1.bf16.msra.mxu0 %v653
    %911 = vmatprep.subr.bf16.mxu0 %v656
    %912 = vmatpush1.bf16.msra.mxu0 %v655
    %913 = vmatprep.subr.bf16.mxu0 %v658
    %914 = vmatpush1.bf16.msra.mxu0 %v657
    %915 = vmatprep.subr.bf16.mxu0 %v660
    %916 = vmatpush1.bf16.msra.mxu0 %v659
    %917 = vmatprep.subr.bf16.mxu0 %v662
    %918 = vmatpush1.bf16.msra.mxu0 %v661
    %919 = vmatprep.subr.bf16.mxu0 %v664
    %920 = vmatpush1.bf16.msra.mxu0 %v663
    %921 = vmatprep.subr.bf16.mxu0 %v666
    %922 = vmatpush1.bf16.msra.mxu0 %v665
    %923 = vmatprep.subr.bf16.mxu0 %v668
    %924 = vmatpush1.bf16.msra.mxu0 %v667
    %925 = vmatprep.subr.bf16.mxu0 %v670
    %926 = vmatpush1.bf16.msra.mxu0 %v669
    %927 = vmatprep.subr.bf16.mxu0 %v672
    %928 = vmatpush1.bf16.msra.mxu0 %v671
    %929 = vmatprep.subr.bf16.mxu0 %v674
    %930 = vmatpush1.bf16.msra.mxu0 %v673
    %931 = vmatprep.subr.bf16.mxu0 %v676
    %932 = vmatpush1.bf16.msra.mxu0 %v675
    %933 = vmatprep.subr.bf16.mxu0 %v678
    %934 = vmatpush1.bf16.msra.mxu0 %v677
    %935 = vmatprep.subr.bf16.mxu0 %v680
    %936 = vmatpush1.bf16.msra.mxu0 %v679
    %937 = vmatprep.mubr.bf16.mxu0 %v111
    %938 = vmatmul.mubr.bf16.gmra.mrb[0].mxu0 %v110
    %v939 = vpop.f32.mrb[0].mxu0
    %v940 = vadd.f32 %v263, %v939
    %v941 = vpop.f32.mrb[0].mxu0
    %v942 = vadd.f32 %v264, %v941
    %v943 = vpop.f32.mrb[0].mxu0
    %v944 = vpop.f32.mrb[0].mxu0
    %945 = vdwg.mxu0
    %946 = vmatprep.subr.bf16.mxu0 %v682
    %947 = vmatpush1.bf16.msra.mxu0 %v681
    %948 = vmatprep.subr.bf16.mxu0 %v684
    %949 = vmatpush1.bf16.msra.mxu0 %v683
    %950 = vmatprep.subr.bf16.mxu0 %v686
    %951 = vmatpush1.bf16.msra.mxu0 %v685
    %952 = vmatprep.subr.bf16.mxu0 %v688
    %953 = vmatpush1.bf16.msra.mxu0 %v687
    %954 = vmatprep.subr.bf16.mxu0 %v690
    %955 = vmatpush1.bf16.msra.mxu0 %v689
    %956 = vmatprep.subr.bf16.mxu0 %v692
    %957 = vmatpush1.bf16.msra.mxu0 %v691
    %958 = vmatprep.subr.bf16.mxu0 %v694
    %959 = vmatpush1.bf16.msra.mxu0 %v693
    %960 = vmatprep.subr.bf16.mxu0 %v696
    %961 = vmatpush1.bf16.msra.mxu0 %v695
    %962 = vmatprep.subr.bf16.mxu0 %v698
    %963 = vmatpush1.bf16.msra.mxu0 %v697
    %964 = vmatprep.subr.bf16.mxu0 %v700
    %965 = vmatpush1.bf16.msra.mxu0 %v699
    %966 = vmatprep.subr.bf16.mxu0 %v702
    %967 = vmatpush1.bf16.msra.mxu0 %v701
    %968 = vmatprep.subr.bf16.mxu0 %v704
    %969 = vmatpush1.bf16.msra.mxu0 %v703
    %970 = vmatprep.subr.bf16.mxu0 %v706
    %971 = vmatpush1.bf16.msra.mxu0 %v705
    %972 = vmatprep.subr.bf16.mxu0 %v708
    %973 = vmatpush1.bf16.msra.mxu0 %v707
    %974 = vmatprep.subr.bf16.mxu0 %v710
    %975 = vmatpush1.bf16.msra.mxu0 %v709
    %976 = vmatprep.subr.bf16.mxu0 %v712
    %977 = vmatpush1.bf16.msra.mxu0 %v711
    %978 = vmatprep.mubr.bf16.mxu0 %v113
    %979 = vmatmul.mubr.bf16.gmra.mrb[0].mxu0 %v112
    %v980 = vpop.f32.mrb[0].mxu0
    %v981 = vadd.f32 %v940, %v980
    %v982 = vpop.f32.mrb[0].mxu0
    %v983 = vadd.f32 %v942, %v982
    %v984 = vpop.f32.mrb[0].mxu0
    %v985 = vpop.f32.mrb[0].mxu0
    %986 = vdwg.mxu0
    %987 = vmatprep.subr.bf16.mxu0 %v714
    %988 = vmatpush1.bf16.msra.mxu0 %v713
    %989 = vmatprep.subr.bf16.mxu0 %v716
    %990 = vmatpush1.bf16.msra.mxu0 %v715
    %991 = vmatprep.subr.bf16.mxu0 %v718
    %992 = vmatpush1.bf16.msra.mxu0 %v717
    %993 = vmatprep.subr.bf16.mxu0 %v720
    %994 = vmatpush1.bf16.msra.mxu0 %v719
    %995 = vmatprep.subr.bf16.mxu0 %v722
    %996 = vmatpush1.bf16.msra.mxu0 %v721
    %997 = vmatprep.subr.bf16.mxu0 %v724
    %998 = vmatpush1.bf16.msra.mxu0 %v723
    %999 = vmatprep.subr.bf16.mxu0 %v726
    %1000 = vmatpush1.bf16.msra.mxu0 %v725
    %1001 = vmatprep.subr.bf16.mxu0 %v728
    %1002 = vmatpush1.bf16.msra.mxu0 %v727
    %1003 = vmatprep.subr.bf16.mxu0 %v730
    %1004 = vmatpush1.bf16.msra.mxu0 %v729
    %1005 = vmatprep.subr.bf16.mxu0 %v732
    %1006 = vmatpush1.bf16.msra.mxu0 %v731
    %1007 = vmatprep.subr.bf16.mxu0 %v734
    %1008 = vmatpush1.bf16.msra.mxu0 %v733
    %1009 = vmatprep.subr.bf16.mxu0 %v736
    %1010 = vmatpush1.bf16.msra.mxu0 %v735
    %1011 = vmatprep.subr.bf16.mxu0 %v738
    %1012 = vmatpush1.bf16.msra.mxu0 %v737
    %1013 = vmatprep.subr.bf16.mxu0 %v740
    %1014 = vmatpush1.bf16.msra.mxu0 %v739
    %1015 = vmatprep.subr.bf16.mxu0 %v742
    %1016 = vmatpush1.bf16.msra.mxu0 %v741
    %1017 = vmatprep.subr.bf16.mxu0 %v744
    %1018 = vmatpush1.bf16.msra.mxu0 %v743
    %1019 = vmatprep.mubr.bf16.mxu0 %v115
    %1020 = vmatmul.mubr.bf16.gmra.mrb[0].mxu0 %v114
    %v1021 = vpop.f32.mrb[0].mxu0
    %v1022 = vadd.f32 %v981, %v1021
    %v1023 = vpop.f32.mrb[0].mxu0
    %v1024 = vadd.f32 %v983, %v1023
    %v1025 = vpop.f32.mrb[0].mxu0
    %v1026 = vpop.f32.mrb[0].mxu0
    %1027 = vdwg.mxu0
    %1028 = vmatprep.subr.bf16.mxu0 %v746
    %1029 = vmatpush1.bf16.msra.mxu0 %v745
    %1030 = vmatprep.subr.bf16.mxu0 %v748
    %1031 = vmatpush1.bf16.msra.mxu0 %v747
    %1032 = vmatprep.subr.bf16.mxu0 %v750
    %1033 = vmatpush1.bf16.msra.mxu0 %v749
    %1034 = vmatprep.subr.bf16.mxu0 %v752
    %1035 = vmatpush1.bf16.msra.mxu0 %v751
    %1036 = vmatprep.subr.bf16.mxu0 %v754
    %1037 = vmatpush1.bf16.msra.mxu0 %v753
    %1038 = vmatprep.subr.bf16.mxu0 %v756
    %1039 = vmatpush1.bf16.msra.mxu0 %v755
    %1040 = vmatprep.subr.bf16.mxu0 %v758
    %1041 = vmatpush1.bf16.msra.mxu0 %v757
    %1042 = vmatprep.subr.bf16.mxu0 %v760
    %1043 = vmatpush1.bf16.msra.mxu0 %v759
    %1044 = vmatprep.subr.bf16.mxu0 %v762
    %1045 = vmatpush1.bf16.msra.mxu0 %v761
    %1046 = vmatprep.subr.bf16.mxu0 %v764
    %1047 = vmatpush1.bf16.msra.mxu0 %v763
    %1048 = vmatprep.subr.bf16.mxu0 %v766
    %1049 = vmatpush1.bf16.msra.mxu0 %v765
    %1050 = vmatprep.subr.bf16.mxu0 %v768
    %1051 = vmatpush1.bf16.msra.mxu0 %v767
    %1052 = vmatprep.subr.bf16.mxu0 %v770
    %1053 = vmatpush1.bf16.msra.mxu0 %v769
    %1054 = vmatprep.subr.bf16.mxu0 %v772
    %1055 = vmatpush1.bf16.msra.mxu0 %v771
    %1056 = vmatprep.subr.bf16.mxu0 %v774
    %1057 = vmatpush1.bf16.msra.mxu0 %v773
    %1058 = vmatprep.subr.bf16.mxu0 %v776
    %1059 = vmatpush1.bf16.msra.mxu0 %v775
    %1060 = vmatprep.mubr.bf16.mxu0 %v117
    %1061 = vmatmul.mubr.bf16.gmra.mrb[0].mxu0 %v116
    %v1062 = vpop.f32.mrb[0].mxu0
    %v1063 = vadd.f32 %v1022, %v1062
    %v1064 = vpop.f32.mrb[0].mxu0
    %v1065 = vadd.f32 %v1024, %v1064
    %v1066 = vpop.f32.mrb[0].mxu0
    %v1067 = vpop.f32.mrb[0].mxu0
    %1068 = vdwg.mxu0
    %v1069 = vld [vmem:[%s6] sm:$0x3]
    %v1071 = vlaneseq
    %v1072 = vshrl.u32 %v1071, 7
    %v1073 = vsub.s32 0, %v1072
    %v1074 = vrot.slane %v1069, %v1073
    %v1075 = vlaneseq
    %v1076 = vshrl.u32 %v1075, 7
    %v1077 = vsub.s32 1, %v1076
    %v1078 = vrot.slane %v1069, %v1077
    %v1081 = vadd.f32 %v1063, %v1074
    %v1082 = vadd.f32 %v1065, %v1078
    %v1083 = vmax.f32 %v1081, 0.0
    %v1084 = vmax.f32 %v1082, 0.0
    %v1085 = vld [vmem:[%s7] sm:$0x3]
    %v1087 = vlaneseq
    %v1088 = vshrl.u32 %v1087, 7
    %v1089 = vsub.s32 0, %v1088
    %v1090 = vrot.slane %v1085, %v1089
    %v1091 = vlaneseq
    %v1092 = vshrl.u32 %v1091, 7
    %v1093 = vsub.s32 1, %v1092
    %v1094 = vrot.slane %v1085, %v1093
    %v1097 = vmul.f32 %v1083, %v1090
    %v1098 = vmul.f32 %v1084, %v1094
    %v1099 = vld [vmem:[%s8] sm:$0x3]
    %v1101 = vlaneseq
    %v1102 = vshrl.u32 %v1101, 7
    %v1103 = vsub.s32 0, %v1102
    %v1104 = vrot.slane %v1099, %v1103
    %v1105 = vlaneseq
    %v1106 = vshrl.u32 %v1105, 7
    %v1107 = vsub.s32 1, %v1106
    %v1108 = vrot.slane %v1099, %v1107
    %v1111 = vadd.f32 %v1097, %v1104
    %v1112 = vadd.f32 %v1098, %v1108
    %v1113 = vpack.c.bf16 %v1111, %v1111
    %v1114 = vpack.c.bf16 %v1112, %v1112
    %v1115 = vld [vmem:[%s9] sm:$0xf]
    %v1116 = vld [vmem:[%s9 + $0x4] sm:$0xf]
    %v1117 = vld [vmem:[%s9 + $0x8] sm:$0xf]
    %v1118 = vld [vmem:[%s9 + $0xc] sm:$0xf]
    %v1119 = vld [vmem:[%s9 + $0x10] sm:$0xf]
    %v1120 = vld [vmem:[%s9 + $0x14] sm:$0xf]
    %v1121 = vld [vmem:[%s9 + $0x18] sm:$0xf]
    %v1122 = vld [vmem:[%s9 + $0x1c] sm:$0xf]
    %v1123 = vld [vmem:[%s9 + $0x20] sm:$0xf]
    %v1124 = vld [vmem:[%s9 + $0x24] sm:$0xf]
    %v1125 = vld [vmem:[%s9 + $0x28] sm:$0xf]
    %v1126 = vld [vmem:[%s9 + $0x2c] sm:$0xf]
    %v1127 = vld [vmem:[%s9 + $0x30] sm:$0xf]
    %v1128 = vld [vmem:[%s9 + $0x34] sm:$0xf]
    %v1129 = vld [vmem:[%s9 + $0x38] sm:$0xf]
    %v1130 = vld [vmem:[%s9 + $0x3c] sm:$0xf]
    %v1131 = vld [vmem:[%s9 + $0x40] sm:$0xf]
    %v1132 = vld [vmem:[%s9 + $0x44] sm:$0xf]
    %v1133 = vld [vmem:[%s9 + $0x48] sm:$0xf]
    %v1134 = vld [vmem:[%s9 + $0x4c] sm:$0xf]
    %v1135 = vld [vmem:[%s9 + $0x50] sm:$0xf]
    %v1136 = vld [vmem:[%s9 + $0x54] sm:$0xf]
    %v1137 = vld [vmem:[%s9 + $0x58] sm:$0xf]
    %v1138 = vld [vmem:[%s9 + $0x5c] sm:$0xf]
    %v1139 = vld [vmem:[%s9 + $0x60] sm:$0xf]
    %v1140 = vld [vmem:[%s9 + $0x64] sm:$0xf]
    %v1141 = vld [vmem:[%s9 + $0x68] sm:$0xf]
    %v1142 = vld [vmem:[%s9 + $0x6c] sm:$0xf]
    %v1143 = vld [vmem:[%s9 + $0x70] sm:$0xf]
    %v1144 = vld [vmem:[%s9 + $0x74] sm:$0xf]
    %v1145 = vld [vmem:[%s9 + $0x78] sm:$0xf]
    %v1146 = vld [vmem:[%s9 + $0x7c] sm:$0xf]
    %v1147 = vld [vmem:[%s10] sm:$0x1]
    %v1149 = vlaneseq
    %v1150 = vshrl.u32 %v1149, 7
    %v1151 = vsub.s32 0, %v1150
    %v1152 = vrot.slane %v1147, %v1151
    %v1186 = vunpack.c.l.b16 %v1115
    %v1187 = vunpack.c.l.b16 %v1116
    %v1188 = vunpack.c.l.b16 %v1117
    %v1189 = vunpack.c.l.b16 %v1118
    %v1190 = vunpack.c.l.b16 %v1119
    %v1191 = vunpack.c.l.b16 %v1120
    %v1192 = vunpack.c.l.b16 %v1121
    %v1193 = vunpack.c.l.b16 %v1122
    %v1194 = vunpack.c.l.b16 %v1123
    %v1195 = vunpack.c.l.b16 %v1124
    %v1196 = vunpack.c.l.b16 %v1125
    %v1197 = vunpack.c.l.b16 %v1126
    %v1198 = vunpack.c.l.b16 %v1127
    %v1199 = vunpack.c.l.b16 %v1128
    %v1200 = vunpack.c.l.b16 %v1129
    %v1201 = vunpack.c.l.b16 %v1130
    %v1202 = vunpack.c.l.b16 %v1131
    %v1203 = vunpack.c.l.b16 %v1132
    %v1204 = vunpack.c.l.b16 %v1133
    %v1205 = vunpack.c.l.b16 %v1134
    %v1206 = vunpack.c.l.b16 %v1135
    %v1207 = vunpack.c.l.b16 %v1136
    %v1208 = vunpack.c.l.b16 %v1137
    %v1209 = vunpack.c.l.b16 %v1138
    %v1210 = vunpack.c.l.b16 %v1139
    %v1211 = vunpack.c.l.b16 %v1140
    %v1212 = vunpack.c.l.b16 %v1141
    %v1213 = vunpack.c.l.b16 %v1142
    %v1214 = vunpack.c.l.b16 %v1143
    %v1215 = vunpack.c.l.b16 %v1144
    %v1216 = vunpack.c.l.b16 %v1145
    %v1217 = vunpack.c.l.b16 %v1146
    %v1218 = vpack.c.b16 %v1187, %v1186
    %v1219 = vpack.c.b16 %v1189, %v1188
    %v1220 = vpack.c.b16 %v1191, %v1190
    %v1221 = vpack.c.b16 %v1193, %v1192
    %v1222 = vpack.c.b16 %v1195, %v1194
    %v1223 = vpack.c.b16 %v1197, %v1196
    %v1224 = vpack.c.b16 %v1199, %v1198
    %v1225 = vpack.c.b16 %v1201, %v1200
    %v1226 = vpack.c.b16 %v1203, %v1202
    %v1227 = vpack.c.b16 %v1205, %v1204
    %v1228 = vpack.c.b16 %v1207, %v1206
    %v1229 = vpack.c.b16 %v1209, %v1208
    %v1230 = vpack.c.b16 %v1211, %v1210
    %v1231 = vpack.c.b16 %v1213, %v1212
    %v1232 = vpack.c.b16 %v1215, %v1214
    %v1233 = vpack.c.b16 %v1217, %v1216
    %1250 = vmatprep.subr.bf16.mxu0 0
    %1251 = vmatpush1.bf16.msra.mxu0 %v1218
    %1252 = vmatprep.subr.bf16.mxu0 0
    %1253 = vmatpush1.bf16.msra.mxu0 %v1219
    %1254 = vmatprep.subr.bf16.mxu0 0
    %1255 = vmatpush1.bf16.msra.mxu0 %v1220
    %1256 = vmatprep.subr.bf16.mxu0 0
    %1257 = vmatpush1.bf16.msra.mxu0 %v1221
    %1258 = vmatprep.subr.bf16.mxu0 0
    %1259 = vmatpush1.bf16.msra.mxu0 %v1222
    %1260 = vmatprep.subr.bf16.mxu0 0
    %1261 = vmatpush1.bf16.msra.mxu0 %v1223
    %1262 = vmatprep.subr.bf16.mxu0 0
    %1263 = vmatpush1.bf16.msra.mxu0 %v1224
    %1264 = vmatprep.subr.bf16.mxu0 0
    %1265 = vmatpush1.bf16.msra.mxu0 %v1225
    %1266 = vmatprep.subr.bf16.mxu0 0
    %1267 = vmatpush1.bf16.msra.mxu0 %v1226
    %1268 = vmatprep.subr.bf16.mxu0 0
    %1269 = vmatpush1.bf16.msra.mxu0 %v1227
    %1270 = vmatprep.subr.bf16.mxu0 0
    %1271 = vmatpush1.bf16.msra.mxu0 %v1228
    %1272 = vmatprep.subr.bf16.mxu0 0
    %1273 = vmatpush1.bf16.msra.mxu0 %v1229
    %1274 = vmatprep.subr.bf16.mxu0 0
    %1275 = vmatpush1.bf16.msra.mxu0 %v1230
    %1276 = vmatprep.subr.bf16.mxu0 0
    %1277 = vmatpush1.bf16.msra.mxu0 %v1231
    %1278 = vmatprep.subr.bf16.mxu0 0
    %1279 = vmatpush1.bf16.msra.mxu0 %v1232
    %1280 = vmatprep.subr.bf16.mxu0 0
    %1281 = vmatpush1.bf16.msra.mxu0 %v1233
    %1282 = vmatprep.mubr.bf16.mxu0 %v1114
    %1283 = vmatmul.mubr.bf16.gmra.mrb[0].mxu0 %v1113
    %v1284 = vpop.f32.mrb[0].mxu0
    %v1285 = vadd.f32 %v1152, %v1284
    %v1286 = vpop.f32.mrb[0].mxu0
    %v1287 = vpop.f32.mrb[0].mxu0
    %v1288 = vpop.f32.mrb[0].mxu0
    %1289 = vdwg.mxu0
    %1290 = vst [vmem:[#allocation3] sm:$0x3] %v1285
    // Predicated region
    $region46: #{capsulenet_forward.25} parent=1 // pred_check
      _
    $region47: #{capsulenet_forward.25} parent=1 // pred_check_branch
      %1292 = sbr.rel (0) target = $region49
    $region48: #{capsulenet_forward.25} parent=1 // pred_region
      %s1294 = ssub.s32 32, 32
      %1295 = vsyncadd [#allocation4], %s1294
      %s1297 = sshll.u32 [#allocation3], 4
      %s1298 = int_to_ptr.vmem [resolvable:$true] %s1297
      %1300 = dma.vmem_to_hbm [thread:$0]  %s1298, 32, %s11, [#allocation4]
    $region49: #{capsulenet_forward.25} parent=1 // pred_fallthru
      _
    // Predicated region
    $region50: #{capsulenet_forward.25} parent=1 // pred_check
      _
    $region51: #{capsulenet_forward.25} parent=1 // pred_check_branch
      %1302 = sbr.rel (0) target = $region53
    $region52: #{capsulenet_forward.25} parent=1 // pred_region
      %1303 = dma.done [#allocation4], 32
    $region53: #{capsulenet_forward.25} parent=1 // pred_fallthru
      _
    %1304 = vsyncpa [#allocation4], 1

</llo_original>
